<compile_context>
chip_gen: v7x
topology: tpu7x:2x2x1
jax: 0.10.0
libtpu: 0.0.40
codegen_flags: <defaults>
</compile_context>

<pallas_src>
import functools

import jax
import jax.numpy as jnp
from jax import lax
from jax.experimental import pallas as pl
from jax.experimental.pallas import tpu as pltpu


# ------------------------------ Pallas kernels ------------------------------ #

def _dot_pool_bias_relu_store(lhs, w_ref, b_ref, o_ref, Cout):
    # lhs  : (N, K) bf16   wide-K space-to-depth rows (K = n_taps * 4*Cin)
    # w_ref: (K, 4*Cout) bf16   effective weights (4 pool phases fused on columns)
    # b_ref: (1, Cout) f32
    # o_ref: (1, 1, Cout, N) bf16   channel-major, lane-dense output
    acc = jnp.dot(lhs, w_ref[...], preferred_element_type=jnp.float32)   # (N, 4*Cout)
    # 2x2 max-pool == elementwise max over the 4 fused pool-phase column groups.
    pooled = jnp.maximum(jnp.maximum(acc[:, 0 * Cout:1 * Cout],
                                     acc[:, 1 * Cout:2 * Cout]),
                         jnp.maximum(acc[:, 2 * Cout:3 * Cout],
                                     acc[:, 3 * Cout:4 * Cout]))         # (N, Cout)
    out = jnp.maximum(pooled + b_ref[...], 0.0)                          # bias+ReLU once
    # Small (N, Cout) f32 XLU transpose -> channel-major (Cout, N) lane-dense store.
    o_ref[0, 0] = out.T.astype(o_ref.dtype)


def _conv_pool_kernel(x_ref, w_ref, b_ref, o_ref, xw_ref, *, tap_offs, KC, Cout):
    # x_ref : (1, 1, Lin, KC) bf16   space-to-depth rows incl. halo (KC = 4*Cin)
    # xw_ref: (N, n_taps*KC) bf16    in-VMEM wide-K LHS scratch (local im2col, not HBM)
    N = o_ref.shape[-1]
    for t, off in enumerate(tap_offs):                 # static offsets: a*Wh + b
        xw_ref[:, t * KC:(t + 1) * KC] = x_ref[0, 0, off:off + N, :]
    _dot_pool_bias_relu_store(xw_ref[...], w_ref, b_ref, o_ref, Cout)


def _conv_pool_kernel_prebuilt(x_ref, w_ref, b_ref, o_ref, *, Cout):
    # Cin==1 path: the glue already built the wide-K LHS, x_ref is (1, 1, N, n_taps*4).
    _dot_pool_bias_relu_store(x_ref[0, 0], w_ref, b_ref, o_ref, Cout)


def _fc_kernel(x_ref, w_ref, b_ref, o_ref):
    # x: (B, F) bf16, w: (F, Out) bf16 (pre-transposed in the wrapper so the contraction
    # dim is the RHS major dim -- canonical MXU orientation), b: (1, Out) f32.
    o_ref[...] = (jnp.dot(x_ref[...], w_ref[...],
                          preferred_element_type=jnp.float32)
                  + b_ref[...]).astype(o_ref.dtype)


# ------------------------------ Python wrappers ------------------------------ #

_ACC_BYTES_CAP = 128 * 1024     # keep the f32 (N, 4*Cout) accumulator ~<= 32 vregs


def _choose_row_tile(Ho, Wh, four_cout):
    """Largest divisor d of Ho with d*Wh*four_cout*4 <= _ACC_BYTES_CAP (TR=1 always ok)."""
    cap_lanes = max(Wh, _ACC_BYTES_CAP // (4 * four_cout))
    best = 1
    for d in range(1, Ho + 1):
        if Ho % d == 0 and d * Wh <= cap_lanes:
            best = d
    return best


def _effective_weights(w_oihw, ksize):
    """OIHW conv weights -> (A*A*4*Cin, 4*Cout): per-tap matrices over the 2x2
    space-to-depth input phases (rows, order (tap=(a,b), p, q, ci)) and the 4 max-pool
    output phases (columns, order (s, t, co)), concatenated along K in tap order.
    Zero where the original kernel tap is out of range."""
    Cout, Cin = w_oihw.shape[0], w_oihw.shape[1]
    A = ksize // 2 + 1
    w = jnp.transpose(w_oihw, (2, 3, 1, 0))            # (kh, kw, Cin, Cout)
    taps = []
    for a in range(A):
        for b in range(A):
            m = jnp.zeros((4 * Cin, 4 * Cout), w.dtype)
            for p in range(2):
                for q in range(2):
                    for s in range(2):
                        for t in range(2):
                            kh, kw = 2 * a + p - s, 2 * b + q - t
                            if 0 <= kh < ksize and 0 <= kw < ksize:
                                m = m.at[(2 * p + q) * Cin:(2 * p + q + 1) * Cin,
                                         (2 * s + t) * Cout:(2 * s + t + 1) * Cout
                                         ].set(w[kh, kw])
            taps.append(m)
    return jnp.concatenate(taps, axis=0).astype(jnp.bfloat16)   # (A*A*4*Cin, 4*Cout)


def conv_relu_pool(x_nchw, w_oihw, bias, ksize):
    """conv2d(stride=1, SAME) -> ReLU -> 2x2 maxpool.  NCHW in, NCHW out (bf16)."""
    B, Cin, Hin, Win = x_nchw.shape
    Cout = w_oihw.shape[0]
    assert Hin % 2 == 0 and Win % 2 == 0
    P = (ksize - 1) // 2
    A = ksize // 2 + 1
    Ho, Wo = Hin // 2, Win // 2
    Hh, Wh = Ho + P, Wo + P                    # 2x2 space-to-depth (phase) grid
    KC = 4 * Cin
    n_taps = A * A
    TR = _choose_row_tile(Ho, Wh, 4 * Cout)    # pooled rows per grid step
    T = Ho // TR
    N = TR * Wh                                # output positions (incl. pad cols) / step
    Lin = N + (A - 1) * Wh + (A - 1)           # input rows per step (incl. halo)

    # ---- glue: pad + 2x2 space-to-depth + flatten + halo rows (pure data movement,
    # same order of magnitude as the activation -- no 25x/9x HBM im2col blowup) -------
    xb = x_nchw.astype(jnp.bfloat16)
    xp = jnp.pad(xb, ((0, 0), (0, 0), (P, P), (P, P)))
    y = xp.reshape(B, Cin, Hh, 2, Wh, 2)
    y = jnp.transpose(y, (0, 2, 4, 3, 5, 1)).reshape(B, Hh * Wh, KC)   # (p,q,ci) order
    yf = jnp.pad(y, ((0, 0), (0, A - 1), (0, 0)))                      # halo rows

    keff = _effective_weights(w_oihw, ksize)                 # (n_taps*KC, 4*Cout) bf16
    brow = bias.astype(jnp.float32).reshape(1, Cout)

    if Cin == 1:
        # Layer-1 special case: build the wide-K LHS in the glue (duplicating a
        # 1-channel input n_taps x is cheap); each row is self-contained (no halo).
        wide = jnp.concatenate(
            [yf[:, a * Wh + b: a * Wh + b + Ho * Wh, :]
             for a in range(A) for b in range(A)], axis=2)   # (B, Ho*Wh, n_taps*4)
        ys = wide.reshape(B, T, N, n_taps * KC)
        in_spec0 = pl.BlockSpec((1, 1, N, n_taps * KC), lambda b, t: (b, t, 0, 0))
        kernel = functools.partial(_conv_pool_kernel_prebuilt, Cout=Cout)
        scratch = []
    else:
        ys = jnp.stack([yf[:, t * TR * Wh: t * TR * Wh + Lin, :] for t in range(T)],
                       axis=1)                               # (B, T, Lin, KC)
        in_spec0 = pl.BlockSpec((1, 1, Lin, KC), lambda b, t: (b, t, 0, 0))
        tap_offs = tuple(a * Wh + b for a in range(A) for b in range(A))
        kernel = functools.partial(_conv_pool_kernel,
                                   tap_offs=tap_offs, KC=KC, Cout=Cout)
        scratch = [pltpu.VMEM((N, n_taps * KC), jnp.bfloat16)]

    out = pl.pallas_call(
        kernel,
        out_shape=jax.ShapeDtypeStruct((B, T, Cout, N), jnp.bfloat16),
        grid_spec=pltpu.PrefetchScalarGridSpec(
            num_scalar_prefetch=0,
            grid=(B, T),
            in_specs=[
                in_spec0,
                pl.BlockSpec((n_taps * KC, 4 * Cout), lambda b, t: (0, 0)),
                pl.BlockSpec((1, Cout), lambda b, t: (0, 0)),
            ],
            out_specs=pl.BlockSpec((1, 1, Cout, N), lambda b, t: (b, t, 0, 0)),
            scratch_shapes=scratch,
        ),
        compiler_params=pltpu.CompilerParams(
            dimension_semantics=("parallel", "parallel"),
            vmem_limit_bytes=32 * 1024 * 1024,   # well under v7x's 64 MiB/TC
        ),
    )(ys, keff, brow)

    # ---- glue: undo the row tiling, drop the P pad columns -> clean NCHW -----------
    out = out.reshape(B, T, Cout, TR, Wh)
    out = jnp.transpose(out, (0, 2, 1, 3, 4)).reshape(B, Cout, Ho, Wh)
    return out[:, :, :, :Wo]


def linear(x, w, bias):
    # x: (B, F), w: (Out, F) PyTorch layout, bias: (Out,)
    B, F = x.shape
    Out = w.shape[0]
    wt = jnp.transpose(w).astype(jnp.bfloat16)   # one-time small glue op, no HBM growth
    return pl.pallas_call(
        _fc_kernel,
        out_shape=jax.ShapeDtypeStruct((B, Out), jnp.float32),
        grid_spec=pltpu.PrefetchScalarGridSpec(
            num_scalar_prefetch=0,
            grid=(1,),
            in_specs=[
                pl.BlockSpec((B, F), lambda i: (0, 0)),
                pl.BlockSpec((F, Out), lambda i: (0, 0)),
                pl.BlockSpec((1, Out), lambda i: (0, 0)),
            ],
            out_specs=pl.BlockSpec((B, Out), lambda i: (0, 0)),
        ),
        compiler_params=pltpu.CompilerParams(vmem_limit_bytes=32 * 1024 * 1024),
    )(x.astype(jnp.bfloat16), wt, bias.astype(jnp.float32).reshape(1, Out))


def cnn_tempogram_forward(x, params):
    """x: (B, H, W) float32 tempogram (PyTorch forward does unsqueeze(1))."""
    B = x.shape[0]
    out = x[:, None, :, :]                                   # NCHW, Cin=1
    out = conv_relu_pool(out, params['w1'], params['b1'], ksize=5)
    out = conv_relu_pool(out, params['w2'], params['b2'], ksize=5)
    out = conv_relu_pool(out, params['w3'], params['b3'], ksize=3)
    # conv outputs are already channel-major NCHW -> PyTorch .view(B, -1) order for free
    flat = out.reshape(B, -1)
    return linear(flat, params['fc_w'], params['fc_b'])


# ------------------------------ params & reference --------------------------- #

def init_params(key, H, W):
    # fc in_features = 32*(H//8)*(W//8); equals 62208 for the original tempogram size.
    F = 32 * (H // 8) * (W // 8)
    ks = jax.random.split(key, 8)

    def u(k, shape, fan_in):
        bound = 1.0 / jnp.sqrt(float(fan_in))
        return jax.random.uniform(k, shape, jnp.float32, -bound, bound)

    return dict(
        w1=u(ks[0], (16, 1, 5, 5), 1 * 5 * 5),   b1=u(ks[1], (16,), 1 * 5 * 5),
        w2=u(ks[2], (16, 16, 5, 5), 16 * 5 * 5), b2=u(ks[3], (16,), 16 * 5 * 5),
        w3=u(ks[4], (32, 16, 3, 3), 16 * 3 * 3), b3=u(ks[5], (32,), 16 * 3 * 3),
        fc_w=u(ks[6], (10, F), F),               fc_b=u(ks[7], (10,), F),
    )


def ref_forward(x, params, compute_dtype=jnp.float32):
    """Pure-JAX reference.  compute_dtype=bfloat16 mirrors the kernels' dtypes exactly
    (bf16 inputs/weights, f32 accumulation); float32 is the PyTorch-f32 semantics."""
    cd = compute_dtype
    out = x[:, None, :, :]

    def block(o, w, b, pad):
        o = lax.conv_general_dilated(o.astype(cd), w.astype(cd), (1, 1),
                                     [(pad, pad), (pad, pad)],
                                     dimension_numbers=('NCHW', 'OIHW', 'NCHW'),
                                     preferred_element_type=jnp.float32)
        o = jnp.maximum(o + b[None, :, None, None], 0.0)
        return lax.reduce_window(o, -jnp.inf, lax.max,
                                 (1, 1, 2, 2), (1, 1, 2, 2), 'VALID')

    out = block(out, params['w1'], params['b1'], 2)
    out = block(out, params['w2'], params['b2'], 2)
    out = block(out, params['w3'], params['b3'], 1)
    flat = out.reshape(out.shape[0], -1)
    return (jnp.dot(flat.astype(cd), params['fc_w'].T.astype(cd),
                    preferred_element_type=jnp.float32)
            + params['fc_b'])


if __name__ == "__main__":
    B, H, W = 2, 32, 32  # small tempogram; same forward semantics as the PyTorch module
    key = jax.random.PRNGKey(0)
    kx, kp = jax.random.split(key)
    x = jax.random.normal(kx, (B, H, W), jnp.float32)
    params = init_params(kp, H, W)

    fwd = jax.jit(cnn_tempogram_forward)
    y = jax.block_until_ready(fwd(x, params))
    assert y.shape == (B, 10)

    # Tight check vs. a reference that uses the same bf16 compute dtypes as the kernels.
    y_bf = ref_forward(x, params, compute_dtype=jnp.bfloat16)
    err_bf = float(jnp.max(jnp.abs(y - y_bf)))
    assert jnp.allclose(y, y_bf, atol=5e-3, rtol=5e-3), err_bf

    # Loose check vs. the full-f32 reference (kernels run activations/weights in bf16).
    y_f32 = ref_forward(x, params, compute_dtype=jnp.float32)
    err_f32 = float(jnp.max(jnp.abs(y - y_f32)))
    assert jnp.allclose(y, y_f32, atol=5e-2, rtol=5e-2), err_f32

    print("KERNEL_OK")
</pallas_src>

<mosaic_0001>
module attributes {stable_mosaic.version = 11 : i64} {
  func.func @_conv_pool_kernel_prebuilt(%arg0: i32, %arg1: i32, %arg2: memref<1x1x288x36xbf16, #tpu.memory_space<vmem>>, %arg3: memref<36x64xbf16, #tpu.memory_space<vmem>>, %arg4: memref<1x16xf32, #tpu.memory_space<vmem>>, %arg5: memref<1x1x16x288xbf16, #tpu.memory_space<vmem>>) attributes {dimension_semantics = [#tpu.dimension_semantics<parallel>, #tpu.dimension_semantics<parallel>], iteration_bounds = array<i64: 2, 1>, scalar_prefetch = 0 : i64, scratch_operands = 0 : i64, tpu.core_type = #tpu.core_type<tc>, window_params = [{transform_indices = @transform_0, window_bounds = array<i64: 1, 1, 288, 36>}, {pipeline_mode = #tpu.pipeline_mode<synchronous>, transform_indices = @transform_1, window_bounds = array<i64: 36, 64>}, {pipeline_mode = #tpu.pipeline_mode<synchronous>, transform_indices = @transform_2, window_bounds = array<i64: 1, 16>}, {transform_indices = @transform_3, window_bounds = array<i64: 1, 1, 16, 288>}]} {
    %c0 = arith.constant 0 : index
    %c0_0 = arith.constant 0 : index
    %c0_1 = arith.constant 0 : index
    %c0_2 = arith.constant 0 : index
    %0 = vector.load %arg2[%c0, %c0_0, %c0_1, %c0_2] : memref<1x1x288x36xbf16, #tpu.memory_space<vmem>>, vector<1x1x288x36xbf16>
    %1 = vector.shape_cast %0 : vector<1x1x288x36xbf16> to vector<288x36xbf16>
    %c0_3 = arith.constant 0 : index
    %c0_4 = arith.constant 0 : index
    %2 = vector.load %arg3[%c0_3, %c0_4] : memref<36x64xbf16, #tpu.memory_space<vmem>>, vector<36x64xbf16>
    %cst = arith.constant dense<0.000000e+00> : vector<288x64xf32>
    %3 = tpu.matmul %1, %2, %cst {dimension_numbers = #tpu.dot_dimension_numbers<[1], [0], [0], [1], [0, 0, 1, 1], [], []>} : vector<288x36xbf16>, vector<36x64xbf16>, vector<288x64xf32> -> vector<288x64xf32>
    %4 = vector.extract_strided_slice %3 {offsets = [0, 0], sizes = [288, 16], strides = [1, 1]} : vector<288x64xf32> to vector<288x16xf32>
    %5 = vector.extract_strided_slice %3 {offsets = [0, 16], sizes = [288, 16], strides = [1, 1]} : vector<288x64xf32> to vector<288x16xf32>
    %6 = arith.maximumf %4, %5 : vector<288x16xf32>
    %7 = vector.extract_strided_slice %3 {offsets = [0, 32], sizes = [288, 16], strides = [1, 1]} : vector<288x64xf32> to vector<288x16xf32>
    %8 = vector.extract_strided_slice %3 {offsets = [0, 48], sizes = [288, 16], strides = [1, 1]} : vector<288x64xf32> to vector<288x16xf32>
    %9 = arith.maximumf %7, %8 : vector<288x16xf32>
    %10 = arith.maximumf %6, %9 : vector<288x16xf32>
    %c0_5 = arith.constant 0 : index
    %c0_6 = arith.constant 0 : index
    %11 = vector.load %arg4[%c0_5, %c0_6] : memref<1x16xf32, #tpu.memory_space<vmem>>, vector<1x16xf32>
    %12 = vector.broadcast %11 : vector<1x16xf32> to vector<288x16xf32>
    %13 = arith.addf %10, %12 : vector<288x16xf32>
    %cst_7 = arith.constant 0.000000e+00 : f32
    %14 = vector.broadcast %cst_7 : f32 to vector<288x16xf32>
    %15 = arith.maximumf %13, %14 : vector<288x16xf32>
    %16 = tpu.transpose %15, [1, 0] : vector<288x16xf32> -> vector<16x288xf32>
    %17 = arith.truncf %16 : vector<16x288xf32> to vector<16x288xbf16>
    %c0_8 = arith.constant 0 : index
    %c0_9 = arith.constant 0 : index
    %c0_10 = arith.constant 0 : index
    %c0_11 = arith.constant 0 : index
    %18 = vector.load %arg5[%c0_8, %c0_9, %c0_10, %c0_11] : memref<1x1x16x288xbf16, #tpu.memory_space<vmem>>, vector<1x1x16x288xbf16>
    %19 = vector.shape_cast %18 : vector<1x1x16x288xbf16> to vector<16x288xbf16>
    %20 = vector.shape_cast %17 : vector<16x288xbf16> to vector<1x1x16x288xbf16>
    tpu.vector_store %arg5[%c0_8, %c0_9, %c0_10, %c0_11], %20 {strides = array<i32>} : memref<1x1x16x288xbf16, #tpu.memory_space<vmem>>, vector<1x1x16x288xbf16>,
    return
  }
  func.func @transform_0(%arg0: i32, %arg1: i32) -> (i32, i32, i32, i32) {
    %c0_i32 = arith.constant 0 : i32
    %c0_i32_0 = arith.constant 0 : i32
    %c0_i32_1 = arith.constant 0 : i32
    return %arg0, %arg1, %c0_i32, %c0_i32_0 : i32, i32, i32, i32
  }
  func.func @transform_1(%arg0: i32, %arg1: i32) -> (i32, i32) {
    %c0_i32 = arith.constant 0 : i32
    %c0_i32_0 = arith.constant 0 : i32
    %c0_i32_1 = arith.constant 0 : i32
    return %c0_i32, %c0_i32_0 : i32, i32
  }
  func.func @transform_2(%arg0: i32, %arg1: i32) -> (i32, i32) {
    %c0_i32 = arith.constant 0 : i32
    %c0_i32_0 = arith.constant 0 : i32
    %c0_i32_1 = arith.constant 0 : i32
    return %c0_i32, %c0_i32_0 : i32, i32
  }
  func.func @transform_3(%arg0: i32, %arg1: i32) -> (i32, i32, i32, i32) {
    %c0_i32 = arith.constant 0 : i32
    %c0_i32_0 = arith.constant 0 : i32
    %c0_i32_1 = arith.constant 0 : i32
    return %arg0, %arg1, %c0_i32, %c0_i32_0 : i32, i32, i32, i32
  }
}

module attributes {stable_mosaic.version = 11 : i64} {
  func.func @_conv_pool_kernel(%arg0: i32, %arg1: i32, %arg2: memref<1x1x102x64xbf16, #tpu.memory_space<vmem>>, %arg3: memref<576x64xbf16, #tpu.memory_space<vmem>>, %arg4: memref<1x16xf32, #tpu.memory_space<vmem>>, %arg5: memref<1x1x16x80xbf16, #tpu.memory_space<vmem>>, %arg6: memref<80x576xbf16, #tpu.memory_space<vmem>>) attributes {dimension_semantics = [#tpu.dimension_semantics<parallel>, #tpu.dimension_semantics<parallel>], iteration_bounds = array<i64: 2, 1>, scalar_prefetch = 0 : i64, scratch_operands = 1 : i64, tpu.core_type = #tpu.core_type<tc>, window_params = [{transform_indices = @transform_0, window_bounds = array<i64: 1, 1, 102, 64>}, {pipeline_mode = #tpu.pipeline_mode<synchronous>, transform_indices = @transform_1, window_bounds = array<i64: 576, 64>}, {pipeline_mode = #tpu.pipeline_mode<synchronous>, transform_indices = @transform_2, window_bounds = array<i64: 1, 16>}, {transform_indices = @transform_3, window_bounds = array<i64: 1, 1, 16, 80>}]} {
    %c0 = arith.constant 0 : index
    %c0_0 = arith.constant 0 : index
    %c0_1 = arith.constant 0 : index
    %c0_2 = arith.constant 0 : index
    %0 = vector.load %arg2[%c0, %c0_0, %c0_1, %c0_2] : memref<1x1x102x64xbf16, #tpu.memory_space<vmem>>, vector<1x1x80x64xbf16>
    %1 = vector.shape_cast %0 : vector<1x1x80x64xbf16> to vector<80x64xbf16>
    %c0_3 = arith.constant 0 : index
    %c0_4 = arith.constant 0 : index
    %2 = vector.load %arg6[%c0_3, %c0_4] : memref<80x576xbf16, #tpu.memory_space<vmem>>, vector<80x64xbf16>
    tpu.vector_store %arg6[%c0_3, %c0_4], %1 {strides = array<i32>} : memref<80x576xbf16, #tpu.memory_space<vmem>>, vector<80x64xbf16>,
    %c0_5 = arith.constant 0 : index
    %c0_6 = arith.constant 0 : index
    %c1 = arith.constant 1 : index
    %c0_7 = arith.constant 0 : index
    %3 = vector.load %arg2[%c0_5, %c0_6, %c1, %c0_7] : memref<1x1x102x64xbf16, #tpu.memory_space<vmem>>, vector<1x1x80x64xbf16>
    %4 = vector.shape_cast %3 : vector<1x1x80x64xbf16> to vector<80x64xbf16>
    %c0_8 = arith.constant 0 : index
    %c64 = arith.constant 64 : index
    %5 = vector.load %arg6[%c0_8, %c64] : memref<80x576xbf16, #tpu.memory_space<vmem>>, vector<80x64xbf16>
    tpu.vector_store %arg6[%c0_8, %c64], %4 {strides = array<i32>} : memref<80x576xbf16, #tpu.memory_space<vmem>>, vector<80x64xbf16>,
    %c0_9 = arith.constant 0 : index
    %c0_10 = arith.constant 0 : index
    %c2 = arith.constant 2 : index
    %c0_11 = arith.constant 0 : index
    %6 = vector.load %arg2[%c0_9, %c0_10, %c2, %c0_11] : memref<1x1x102x64xbf16, #tpu.memory_space<vmem>>, vector<1x1x80x64xbf16>
    %7 = vector.shape_cast %6 : vector<1x1x80x64xbf16> to vector<80x64xbf16>
    %c0_12 = arith.constant 0 : index
    %c128 = arith.constant 128 : index
    %8 = vector.load %arg6[%c0_12, %c128] : memref<80x576xbf16, #tpu.memory_space<vmem>>, vector<80x64xbf16>
    tpu.vector_store %arg6[%c0_12, %c128], %7 {strides = array<i32>} : memref<80x576xbf16, #tpu.memory_space<vmem>>, vector<80x64xbf16>,
    %c0_13 = arith.constant 0 : index
    %c0_14 = arith.constant 0 : index
    %c10 = arith.constant 10 : index
    %c0_15 = arith.constant 0 : index
    %9 = vector.load %arg2[%c0_13, %c0_14, %c10, %c0_15] : memref<1x1x102x64xbf16, #tpu.memory_space<vmem>>, vector<1x1x80x64xbf16>
    %10 = vector.shape_cast %9 : vector<1x1x80x64xbf16> to vector<80x64xbf16>
    %c0_16 = arith.constant 0 : index
    %c192 = arith.constant 192 : index
    %11 = vector.load %arg6[%c0_16, %c192] : memref<80x576xbf16, #tpu.memory_space<vmem>>, vector<80x64xbf16>
    tpu.vector_store %arg6[%c0_16, %c192], %10 {strides = array<i32>} : memref<80x576xbf16, #tpu.memory_space<vmem>>, vector<80x64xbf16>,
    %c0_17 = arith.constant 0 : index
    %c0_18 = arith.constant 0 : index
    %c11 = arith.constant 11 : index
    %c0_19 = arith.constant 0 : index
    %12 = vector.load %arg2[%c0_17, %c0_18, %c11, %c0_19] : memref<1x1x102x64xbf16, #tpu.memory_space<vmem>>, vector<1x1x80x64xbf16>
    %13 = vector.shape_cast %12 : vector<1x1x80x64xbf16> to vector<80x64xbf16>
    %c0_20 = arith.constant 0 : index
    %c256 = arith.constant 256 : index
    %14 = vector.load %arg6[%c0_20, %c256] : memref<80x576xbf16, #tpu.memory_space<vmem>>, vector<80x64xbf16>
    tpu.vector_store %arg6[%c0_20, %c256], %13 {strides = array<i32>} : memref<80x576xbf16, #tpu.memory_space<vmem>>, vector<80x64xbf16>,
    %c0_21 = arith.constant 0 : index
    %c0_22 = arith.constant 0 : index
    %c12 = arith.constant 12 : index
    %c0_23 = arith.constant 0 : index
    %15 = vector.load %arg2[%c0_21, %c0_22, %c12, %c0_23] : memref<1x1x102x64xbf16, #tpu.memory_space<vmem>>, vector<1x1x80x64xbf16>
    %16 = vector.shape_cast %15 : vector<1x1x80x64xbf16> to vector<80x64xbf16>
    %c0_24 = arith.constant 0 : index
    %c320 = arith.constant 320 : index
    %17 = vector.load %arg6[%c0_24, %c320] : memref<80x576xbf16, #tpu.memory_space<vmem>>, vector<80x64xbf16>
    tpu.vector_store %arg6[%c0_24, %c320], %16 {strides = array<i32>} : memref<80x576xbf16, #tpu.memory_space<vmem>>, vector<80x64xbf16>,
    %c0_25 = arith.constant 0 : index
    %c0_26 = arith.constant 0 : index
    %c20 = arith.constant 20 : index
    %c0_27 = arith.constant 0 : index
    %18 = vector.load %arg2[%c0_25, %c0_26, %c20, %c0_27] : memref<1x1x102x64xbf16, #tpu.memory_space<vmem>>, vector<1x1x80x64xbf16>
    %19 = vector.shape_cast %18 : vector<1x1x80x64xbf16> to vector<80x64xbf16>
    %c0_28 = arith.constant 0 : index
    %c384 = arith.constant 384 : index
    %20 = vector.load %arg6[%c0_28, %c384] : memref<80x576xbf16, #tpu.memory_space<vmem>>, vector<80x64xbf16>
    tpu.vector_store %arg6[%c0_28, %c384], %19 {strides = array<i32>} : memref<80x576xbf16, #tpu.memory_space<vmem>>, vector<80x64xbf16>,
    %c0_29 = arith.constant 0 : index
    %c0_30 = arith.constant 0 : index
    %c21 = arith.constant 21 : index
    %c0_31 = arith.constant 0 : index
    %21 = vector.load %arg2[%c0_29, %c0_30, %c21, %c0_31] : memref<1x1x102x64xbf16, #tpu.memory_space<vmem>>, vector<1x1x80x64xbf16>
    %22 = vector.shape_cast %21 : vector<1x1x80x64xbf16> to vector<80x64xbf16>
    %c0_32 = arith.constant 0 : index
    %c448 = arith.constant 448 : index
    %23 = vector.load %arg6[%c0_32, %c448] : memref<80x576xbf16, #tpu.memory_space<vmem>>, vector<80x64xbf16>
    tpu.vector_store %arg6[%c0_32, %c448], %22 {strides = array<i32>} : memref<80x576xbf16, #tpu.memory_space<vmem>>, vector<80x64xbf16>,
    %c0_33 = arith.constant 0 : index
    %c0_34 = arith.constant 0 : index
    %c22 = arith.constant 22 : index
    %c0_35 = arith.constant 0 : index
    %24 = vector.load %arg2[%c0_33, %c0_34, %c22, %c0_35] : memref<1x1x102x64xbf16, #tpu.memory_space<vmem>>, vector<1x1x80x64xbf16>
    %25 = vector.shape_cast %24 : vector<1x1x80x64xbf16> to vector<80x64xbf16>
    %c0_36 = arith.constant 0 : index
    %c512 = arith.constant 512 : index
    %26 = vector.load %arg6[%c0_36, %c512] : memref<80x576xbf16, #tpu.memory_space<vmem>>, vector<80x64xbf16>
    tpu.vector_store %arg6[%c0_36, %c512], %25 {strides = array<i32>} : memref<80x576xbf16, #tpu.memory_space<vmem>>, vector<80x64xbf16>,
    %c0_37 = arith.constant 0 : index
    %c0_38 = arith.constant 0 : index
    %27 = vector.load %arg6[%c0_37, %c0_38] : memref<80x576xbf16, #tpu.memory_space<vmem>>, vector<80x576xbf16>
    %c0_39 = arith.constant 0 : index
    %c0_40 = arith.constant 0 : index
    %28 = vector.load %arg3[%c0_39, %c0_40] : memref<576x64xbf16, #tpu.memory_space<vmem>>, vector<576x64xbf16>
    %cst = arith.constant dense<0.000000e+00> : vector<80x64xf32>
    %29 = tpu.matmul %27, %28, %cst {dimension_numbers = #tpu.dot_dimension_numbers<[1], [0], [0], [1], [0, 0, 1, 1], [], []>} : vector<80x576xbf16>, vector<576x64xbf16>, vector<80x64xf32> -> vector<80x64xf32>
    %30 = vector.extract_strided_slice %29 {offsets = [0, 0], sizes = [80, 16], strides = [1, 1]} : vector<80x64xf32> to vector<80x16xf32>
    %31 = vector.extract_strided_slice %29 {offsets = [0, 16], sizes = [80, 16], strides = [1, 1]} : vector<80x64xf32> to vector<80x16xf32>
    %32 = arith.maximumf %30, %31 : vector<80x16xf32>
    %33 = vector.extract_strided_slice %29 {offsets = [0, 32], sizes = [80, 16], strides = [1, 1]} : vector<80x64xf32> to vector<80x16xf32>
    %34 = vector.extract_strided_slice %29 {offsets = [0, 48], sizes = [80, 16], strides = [1, 1]} : vector<80x64xf32> to vector<80x16xf32>
    %35 = arith.maximumf %33, %34 : vector<80x16xf32>
    %36 = arith.maximumf %32, %35 : vector<80x16xf32>
    %c0_41 = arith.constant 0 : index
    %c0_42 = arith.constant 0 : index
    %37 = vector.load %arg4[%c0_41, %c0_42] : memref<1x16xf32, #tpu.memory_space<vmem>>, vector<1x16xf32>
    %38 = vector.broadcast %37 : vector<1x16xf32> to vector<80x16xf32>
    %39 = arith.addf %36, %38 : vector<80x16xf32>
    %cst_43 = arith.constant 0.000000e+00 : f32
    %40 = vector.broadcast %cst_43 : f32 to vector<80x16xf32>
    %41 = arith.maximumf %39, %40 : vector<80x16xf32>
    %42 = tpu.transpose %41, [1, 0] : vector<80x16xf32> -> vector<16x80xf32>
    %43 = arith.truncf %42 : vector<16x80xf32> to vector<16x80xbf16>
    %c0_44 = arith.constant 0 : index
    %c0_45 = arith.constant 0 : index
    %c0_46 = arith.constant 0 : index
    %c0_47 = arith.constant 0 : index
    %44 = vector.load %arg5[%c0_44, %c0_45, %c0_46, %c0_47] : memref<1x1x16x80xbf16, #tpu.memory_space<vmem>>, vector<1x1x16x80xbf16>
    %45 = vector.shape_cast %44 : vector<1x1x16x80xbf16> to vector<16x80xbf16>
    %46 = vector.shape_cast %43 : vector<16x80xbf16> to vector<1x1x16x80xbf16>
    tpu.vector_store %arg5[%c0_44, %c0_45, %c0_46, %c0_47], %46 {strides = array<i32>} : memref<1x1x16x80xbf16, #tpu.memory_space<vmem>>, vector<1x1x16x80xbf16>,
    return
  }
  func.func @transform_0(%arg0: i32, %arg1: i32) -> (i32, i32, i32, i32) {
    %c0_i32 = arith.constant 0 : i32
    %c0_i32_0 = arith.constant 0 : i32
    %c0_i32_1 = arith.constant 0 : i32
    return %arg0, %arg1, %c0_i32, %c0_i32_0 : i32, i32, i32, i32
  }
  func.func @transform_1(%arg0: i32, %arg1: i32) -> (i32, i32) {
    %c0_i32 = arith.constant 0 : i32
    %c0_i32_0 = arith.constant 0 : i32
    %c0_i32_1 = arith.constant 0 : i32
    return %c0_i32, %c0_i32_0 : i32, i32
  }
  func.func @transform_2(%arg0: i32, %arg1: i32) -> (i32, i32) {
    %c0_i32 = arith.constant 0 : i32
    %c0_i32_0 = arith.constant 0 : i32
    %c0_i32_1 = arith.constant 0 : i32
    return %c0_i32, %c0_i32_0 : i32, i32
  }
  func.func @transform_3(%arg0: i32, %arg1: i32) -> (i32, i32, i32, i32) {
    %c0_i32 = arith.constant 0 : i32
    %c0_i32_0 = arith.constant 0 : i32
    %c0_i32_1 = arith.constant 0 : i32
    return %arg0, %arg1, %c0_i32, %c0_i32_0 : i32, i32, i32, i32
  }
}

module attributes {stable_mosaic.version = 11 : i64} {
  func.func @_conv_pool_kernel(%arg0: i32, %arg1: i32, %arg2: memref<1x1x26x64xbf16, #tpu.memory_space<vmem>>, %arg3: memref<256x128xbf16, #tpu.memory_space<vmem>>, %arg4: memref<1x32xf32, #tpu.memory_space<vmem>>, %arg5: memref<1x1x32x20xbf16, #tpu.memory_space<vmem>>, %arg6: memref<20x256xbf16, #tpu.memory_space<vmem>>) attributes {dimension_semantics = [#tpu.dimension_semantics<parallel>, #tpu.dimension_semantics<parallel>], iteration_bounds = array<i64: 2, 1>, scalar_prefetch = 0 : i64, scratch_operands = 1 : i64, tpu.core_type = #tpu.core_type<tc>, window_params = [{transform_indices = @transform_0, window_bounds = array<i64: 1, 1, 26, 64>}, {pipeline_mode = #tpu.pipeline_mode<synchronous>, transform_indices = @transform_1, window_bounds = array<i64: 256, 128>}, {pipeline_mode = #tpu.pipeline_mode<synchronous>, transform_indices = @transform_2, window_bounds = array<i64: 1, 32>}, {transform_indices = @transform_3, window_bounds = array<i64: 1, 1, 32, 20>}]} {
    %c0 = arith.constant 0 : index
    %c0_0 = arith.constant 0 : index
    %c0_1 = arith.constant 0 : index
    %c0_2 = arith.constant 0 : index
    %0 = vector.load %arg2[%c0, %c0_0, %c0_1, %c0_2] : memref<1x1x26x64xbf16, #tpu.memory_space<vmem>>, vector<1x1x20x64xbf16>
    %1 = vector.shape_cast %0 : vector<1x1x20x64xbf16> to vector<20x64xbf16>
    %c0_3 = arith.constant 0 : index
    %c0_4 = arith.constant 0 : index
    %2 = vector.load %arg6[%c0_3, %c0_4] : memref<20x256xbf16, #tpu.memory_space<vmem>>, vector<20x64xbf16>
    tpu.vector_store %arg6[%c0_3, %c0_4], %1 {strides = array<i32>} : memref<20x256xbf16, #tpu.memory_space<vmem>>, vector<20x64xbf16>,
    %c0_5 = arith.constant 0 : index
    %c0_6 = arith.constant 0 : index
    %c1 = arith.constant 1 : index
    %c0_7 = arith.constant 0 : index
    %3 = vector.load %arg2[%c0_5, %c0_6, %c1, %c0_7] : memref<1x1x26x64xbf16, #tpu.memory_space<vmem>>, vector<1x1x20x64xbf16>
    %4 = vector.shape_cast %3 : vector<1x1x20x64xbf16> to vector<20x64xbf16>
    %c0_8 = arith.constant 0 : index
    %c64 = arith.constant 64 : index
    %5 = vector.load %arg6[%c0_8, %c64] : memref<20x256xbf16, #tpu.memory_space<vmem>>, vector<20x64xbf16>
    tpu.vector_store %arg6[%c0_8, %c64], %4 {strides = array<i32>} : memref<20x256xbf16, #tpu.memory_space<vmem>>, vector<20x64xbf16>,
    %c0_9 = arith.constant 0 : index
    %c0_10 = arith.constant 0 : index
    %c5 = arith.constant 5 : index
    %c0_11 = arith.constant 0 : index
    %6 = vector.load %arg2[%c0_9, %c0_10, %c5, %c0_11] : memref<1x1x26x64xbf16, #tpu.memory_space<vmem>>, vector<1x1x20x64xbf16>
    %7 = vector.shape_cast %6 : vector<1x1x20x64xbf16> to vector<20x64xbf16>
    %c0_12 = arith.constant 0 : index
    %c128 = arith.constant 128 : index
    %8 = vector.load %arg6[%c0_12, %c128] : memref<20x256xbf16, #tpu.memory_space<vmem>>, vector<20x64xbf16>
    tpu.vector_store %arg6[%c0_12, %c128], %7 {strides = array<i32>} : memref<20x256xbf16, #tpu.memory_space<vmem>>, vector<20x64xbf16>,
    %c0_13 = arith.constant 0 : index
    %c0_14 = arith.constant 0 : index
    %c6 = arith.constant 6 : index
    %c0_15 = arith.constant 0 : index
    %9 = vector.load %arg2[%c0_13, %c0_14, %c6, %c0_15] : memref<1x1x26x64xbf16, #tpu.memory_space<vmem>>, vector<1x1x20x64xbf16>
    %10 = vector.shape_cast %9 : vector<1x1x20x64xbf16> to vector<20x64xbf16>
    %c0_16 = arith.constant 0 : index
    %c192 = arith.constant 192 : index
    %11 = vector.load %arg6[%c0_16, %c192] : memref<20x256xbf16, #tpu.memory_space<vmem>>, vector<20x64xbf16>
    tpu.vector_store %arg6[%c0_16, %c192], %10 {strides = array<i32>} : memref<20x256xbf16, #tpu.memory_space<vmem>>, vector<20x64xbf16>,
    %c0_17 = arith.constant 0 : index
    %c0_18 = arith.constant 0 : index
    %12 = vector.load %arg6[%c0_17, %c0_18] : memref<20x256xbf16, #tpu.memory_space<vmem>>, vector<20x256xbf16>
    %c0_19 = arith.constant 0 : index
    %c0_20 = arith.constant 0 : index
    %13 = vector.load %arg3[%c0_19, %c0_20] : memref<256x128xbf16, #tpu.memory_space<vmem>>, vector<256x128xbf16>
    %cst = arith.constant dense<0.000000e+00> : vector<20x128xf32>
    %14 = tpu.matmul %12, %13, %cst {dimension_numbers = #tpu.dot_dimension_numbers<[1], [0], [0], [1], [0, 0, 1, 1], [], []>} : vector<20x256xbf16>, vector<256x128xbf16>, vector<20x128xf32> -> vector<20x128xf32>
    %15 = vector.extract_strided_slice %14 {offsets = [0, 0], sizes = [20, 32], strides = [1, 1]} : vector<20x128xf32> to vector<20x32xf32>
    %16 = vector.extract_strided_slice %14 {offsets = [0, 32], sizes = [20, 32], strides = [1, 1]} : vector<20x128xf32> to vector<20x32xf32>
    %17 = arith.maximumf %15, %16 : vector<20x32xf32>
    %18 = vector.extract_strided_slice %14 {offsets = [0, 64], sizes = [20, 32], strides = [1, 1]} : vector<20x128xf32> to vector<20x32xf32>
    %19 = vector.extract_strided_slice %14 {offsets = [0, 96], sizes = [20, 32], strides = [1, 1]} : vector<20x128xf32> to vector<20x32xf32>
    %20 = arith.maximumf %18, %19 : vector<20x32xf32>
    %21 = arith.maximumf %17, %20 : vector<20x32xf32>
    %c0_21 = arith.constant 0 : index
    %c0_22 = arith.constant 0 : index
    %22 = vector.load %arg4[%c0_21, %c0_22] : memref<1x32xf32, #tpu.memory_space<vmem>>, vector<1x32xf32>
    %23 = vector.broadcast %22 : vector<1x32xf32> to vector<20x32xf32>
    %24 = arith.addf %21, %23 : vector<20x32xf32>
    %cst_23 = arith.constant 0.000000e+00 : f32
    %25 = vector.broadcast %cst_23 : f32 to vector<20x32xf32>
    %26 = arith.maximumf %24, %25 : vector<20x32xf32>
    %27 = tpu.transpose %26, [1, 0] : vector<20x32xf32> -> vector<32x20xf32>
    %28 = arith.truncf %27 : vector<32x20xf32> to vector<32x20xbf16>
    %c0_24 = arith.constant 0 : index
    %c0_25 = arith.constant 0 : index
    %c0_26 = arith.constant 0 : index
    %c0_27 = arith.constant 0 : index
    %29 = vector.load %arg5[%c0_24, %c0_25, %c0_26, %c0_27] : memref<1x1x32x20xbf16, #tpu.memory_space<vmem>>, vector<1x1x32x20xbf16>
    %30 = vector.shape_cast %29 : vector<1x1x32x20xbf16> to vector<32x20xbf16>
    %31 = vector.shape_cast %28 : vector<32x20xbf16> to vector<1x1x32x20xbf16>
    tpu.vector_store %arg5[%c0_24, %c0_25, %c0_26, %c0_27], %31 {strides = array<i32>} : memref<1x1x32x20xbf16, #tpu.memory_space<vmem>>, vector<1x1x32x20xbf16>,
    return
  }
  func.func @transform_0(%arg0: i32, %arg1: i32) -> (i32, i32, i32, i32) {
    %c0_i32 = arith.constant 0 : i32
    %c0_i32_0 = arith.constant 0 : i32
    %c0_i32_1 = arith.constant 0 : i32
    return %arg0, %arg1, %c0_i32, %c0_i32_0 : i32, i32, i32, i32
  }
  func.func @transform_1(%arg0: i32, %arg1: i32) -> (i32, i32) {
    %c0_i32 = arith.constant 0 : i32
    %c0_i32_0 = arith.constant 0 : i32
    %c0_i32_1 = arith.constant 0 : i32
    return %c0_i32, %c0_i32_0 : i32, i32
  }
  func.func @transform_2(%arg0: i32, %arg1: i32) -> (i32, i32) {
    %c0_i32 = arith.constant 0 : i32
    %c0_i32_0 = arith.constant 0 : i32
    %c0_i32_1 = arith.constant 0 : i32
    return %c0_i32, %c0_i32_0 : i32, i32
  }
  func.func @transform_3(%arg0: i32, %arg1: i32) -> (i32, i32, i32, i32) {
    %c0_i32 = arith.constant 0 : i32
    %c0_i32_0 = arith.constant 0 : i32
    %c0_i32_1 = arith.constant 0 : i32
    return %arg0, %arg1, %c0_i32, %c0_i32_0 : i32, i32, i32, i32
  }
}

module attributes {stable_mosaic.version = 11 : i64} {
  func.func @_fc_kernel(%arg0: i32, %arg1: memref<2x512xbf16, #tpu.memory_space<vmem>>, %arg2: memref<512x10xbf16, #tpu.memory_space<vmem>>, %arg3: memref<1x10xf32, #tpu.memory_space<vmem>>, %arg4: memref<2x10xf32, #tpu.memory_space<vmem>>) attributes {dimension_semantics = [#tpu.dimension_semantics<arbitrary>], iteration_bounds = array<i64: 1>, scalar_prefetch = 0 : i64, scratch_operands = 0 : i64, tpu.core_type = #tpu.core_type<tc>, window_params = [{pipeline_mode = #tpu.pipeline_mode<synchronous>, transform_indices = @transform_0, window_bounds = array<i64: 2, 512>}, {pipeline_mode = #tpu.pipeline_mode<synchronous>, transform_indices = @transform_1, window_bounds = array<i64: 512, 10>}, {pipeline_mode = #tpu.pipeline_mode<synchronous>, transform_indices = @transform_2, window_bounds = array<i64: 1, 10>}, {pipeline_mode = #tpu.pipeline_mode<synchronous>, transform_indices = @transform_3, window_bounds = array<i64: 2, 10>}]} {
    %c0 = arith.constant 0 : index
    %c0_0 = arith.constant 0 : index
    %0 = vector.load %arg1[%c0, %c0_0] : memref<2x512xbf16, #tpu.memory_space<vmem>>, vector<2x512xbf16>
    %c0_1 = arith.constant 0 : index
    %c0_2 = arith.constant 0 : index
    %1 = vector.load %arg2[%c0_1, %c0_2] : memref<512x10xbf16, #tpu.memory_space<vmem>>, vector<512x10xbf16>
    %cst = arith.constant dense<0.000000e+00> : vector<2x10xf32>
    %2 = tpu.matmul %0, %1, %cst {dimension_numbers = #tpu.dot_dimension_numbers<[1], [0], [0], [1], [0, 0, 1, 1], [], []>} : vector<2x512xbf16>, vector<512x10xbf16>, vector<2x10xf32> -> vector<2x10xf32>
    %c0_3 = arith.constant 0 : index
    %c0_4 = arith.constant 0 : index
    %3 = vector.load %arg3[%c0_3, %c0_4] : memref<1x10xf32, #tpu.memory_space<vmem>>, vector<1x10xf32>
    %4 = vector.broadcast %3 : vector<1x10xf32> to vector<2x10xf32>
    %5 = arith.addf %2, %4 : vector<2x10xf32>
    %c0_5 = arith.constant 0 : index
    %c0_6 = arith.constant 0 : index
    %6 = vector.load %arg4[%c0_5, %c0_6] : memref<2x10xf32, #tpu.memory_space<vmem>>, vector<2x10xf32>
    tpu.vector_store %arg4[%c0_5, %c0_6], %5 {strides = array<i32>} : memref<2x10xf32, #tpu.memory_space<vmem>>, vector<2x10xf32>,
    return
  }
  func.func @transform_0(%arg0: i32) -> (i32, i32) {
    %c0_i32 = arith.constant 0 : i32
    %c0_i32_0 = arith.constant 0 : i32
    %c0_i32_1 = arith.constant 0 : i32
    return %c0_i32, %c0_i32_0 : i32, i32
  }
  func.func @transform_1(%arg0: i32) -> (i32, i32) {
    %c0_i32 = arith.constant 0 : i32
    %c0_i32_0 = arith.constant 0 : i32
    %c0_i32_1 = arith.constant 0 : i32
    return %c0_i32, %c0_i32_0 : i32, i32
  }
  func.func @transform_2(%arg0: i32) -> (i32, i32) {
    %c0_i32 = arith.constant 0 : i32
    %c0_i32_0 = arith.constant 0 : i32
    %c0_i32_1 = arith.constant 0 : i32
    return %c0_i32, %c0_i32_0 : i32, i32
  }
  func.func @transform_3(%arg0: i32) -> (i32, i32) {
    %c0_i32 = arith.constant 0 : i32
    %c0_i32_0 = arith.constant 0 : i32
    %c0_i32_1 = arith.constant 0 : i32
    return %c0_i32, %c0_i32_0 : i32, i32
  }
}

</mosaic_0001>

<llo_original>
// kernel: cnn_tempogram_forward.4
$region0: #{cnn_tempogram_forward.4}
  #allocation0 [shape = 'u32[]', space=smem, size = 0x4, offset = 0x4, fixed_abs, tag = 'smem constant byte address 0x4 - core index']
  #allocation1 [shape = 'u32[144,128]{1,0:T(1,128)}', space=vmem, size = 0x12000, scoped, tag = 'internal scratch']
  %s0 = inlined_call_operand.vmem [shape: bf16[2,1,288,36], index: 0, kind: input, shape index: {}]
  %s1 = inlined_call_operand.vmem [shape: bf16[36,64], index: 1, kind: input, shape index: {}]
  %s2 = inlined_call_operand.vmem [shape: f32[1,16], index: 2, kind: input, shape index: {}]
  %s3 = inlined_call_operand.vmem [shape: bf16[2,1,16,288], index: 3, kind: output, shape index: {}]
  %s4 = sld [smem:[#allocation0]]
  $region45: #{cnn_tempogram_forward.4} parent=0
    _
  %s6 = ssub.s32 1, %s4
  %s7 = scalar_select 0, %s6, %s4
  loop: start=0, step=1, limit=4
  $region2: #{cnn_tempogram_forward.4} parent=0 // loop_pre_header
    _
  $region3: #{cnn_tempogram_forward.4} parent=0 // loop_header
    %s9 = sphi 0, %s13
    %p10 = scmp.ge.s32.totalorder %s9, 4
    %s16 = sphi 0, %s28
    %s17 = sphi 0, %s24
    %s18 = sphi 0, %s16
    %s19 = sphi 0, %s17
    %s20 = sphi 0, %s18
    %s21 = sphi 0, %s19
    %s33 = sphi 0, %s35
    %s36 = sphi 0, %s33
    %s37 = sphi 0, %s36
    %s53 = sphi 0, %s37
    %s57 = sphi 0, %s57
    %s59 = sphi 0, %s57
    %s60 = sphi 0, %s59
    %s74 = sphi 0, %s60
    %s78 = sphi 0, %s78
    %s80 = sphi 0, %s78
    %s81 = sphi 0, %s80
    %s95 = sphi 0, %s81
    %s103 = sphi 0, %s105
    %s106 = sphi 0, %s103
    %s107 = sphi 0, %s106
    %s123 = sphi 0, %s107
  $region4: #{cnn_tempogram_forward.4} parent=0 // loop_header_branch
    %12 = sbr.rel (%p10) target = $region8
  $region5: #{cnn_tempogram_forward.4} parent=0 // loop_body
    %s14 = ssub.s32 %s9, 1
    %s15 = ssub.s32 %s9, 2
    %s22 = sadd.s32 1, %s17
    %p23 = scmp.ge.s32.totalorder %s22, 1
    %s24 = scalar_select %p23, 0, %s22
    %s25 = sadd.s32 1, %s16
    %s26 = scalar_select %p23, %s25, %s16
    %p27 = scmp.ge.s32.totalorder %s26, 2
    %s28 = scalar_select %p27, 0, %s26
    %s29 = ssub.s32 %s16, %s28
    %s30 = ssub.s32 %s17, %s24
    %s31 = sor.u32 %s29, %s30
    %p32 = scmp.eq.s32.totalorder %s31, 0
    %s34 = sadd.s32 %s33, 1
    %s35 = scalar_select %p32, %s33, %s34
    %p38 = pneg %p32
    %p39 = scmp.eq.s32.totalorder %s9, 1
    %p40 = por %p38, %p39
    %p41 = scmp.ne.s32.totalorder %s33, %s36
    %p42 = scmp.eq.s32.totalorder %s9, 0
    %p43 = por %p41, %p42
    %p44 = scmp.ne.s32.totalorder %s33, %s36
    %p45 = scmp.eq.s32.totalorder %s14, 1
    %p46 = por %p44, %p45
    %p47 = scmp.ne.s32.totalorder %s36, %s37
    %p48 = scmp.eq.s32.totalorder %s14, 0
    %p49 = por %p47, %p48
    %p50 = scmp.ne.s32.totalorder %s36, %s37
    %p51 = scmp.eq.s32.totalorder %s15, 1
    %p52 = por %p50, %p51
    %p54 = scmp.ne.s32.totalorder %s37, %s53
    %p55 = scmp.eq.s32.totalorder %s15, 0
    %p56 = por %p54, %p55
    %s58 = sadd.s32 %s57, 1
    %p61 = scmp.eq.s32.totalorder %s9, 1
    %p62 = scmp.ne.s32.totalorder %s57, %s59
    %p63 = scmp.eq.s32.totalorder %s9, 0
    %p64 = por %p62, %p63
    %p65 = scmp.ne.s32.totalorder %s57, %s59
    %p66 = scmp.eq.s32.totalorder %s14, 1
    %p67 = por %p65, %p66
    %p68 = scmp.ne.s32.totalorder %s59, %s60
    %p69 = scmp.eq.s32.totalorder %s14, 0
    %p70 = por %p68, %p69
    %p71 = scmp.ne.s32.totalorder %s59, %s60
    %p72 = scmp.eq.s32.totalorder %s15, 1
    %p73 = por %p71, %p72
    %p75 = scmp.ne.s32.totalorder %s60, %s74
    %p76 = scmp.eq.s32.totalorder %s15, 0
    %p77 = por %p75, %p76
    %s79 = sadd.s32 %s78, 1
    %p82 = scmp.eq.s32.totalorder %s9, 1
    %p83 = scmp.ne.s32.totalorder %s78, %s80
    %p84 = scmp.eq.s32.totalorder %s9, 0
    %p85 = por %p83, %p84
    %p86 = scmp.ne.s32.totalorder %s78, %s80
    %p87 = scmp.eq.s32.totalorder %s14, 1
    %p88 = por %p86, %p87
    %p89 = scmp.ne.s32.totalorder %s80, %s81
    %p90 = scmp.eq.s32.totalorder %s14, 0
    %p91 = por %p89, %p90
    %p92 = scmp.ne.s32.totalorder %s80, %s81
    %p93 = scmp.eq.s32.totalorder %s15, 1
    %p94 = por %p92, %p93
    %p96 = scmp.ne.s32.totalorder %s81, %s95
    %p97 = scmp.eq.s32.totalorder %s15, 0
    %p98 = por %p96, %p97
    %s99 = ssub.s32 %s16, %s28
    %s100 = ssub.s32 %s17, %s24
    %s101 = sor.u32 %s99, %s100
    %p102 = scmp.eq.s32.totalorder %s101, 0
    %s104 = sadd.s32 %s103, 1
    %s105 = scalar_select %p102, %s103, %s104
    %p108 = pneg %p102
    %p109 = scmp.eq.s32.totalorder %s9, 1
    %p110 = por %p108, %p109
    %p111 = scmp.ne.s32.totalorder %s103, %s106
    %p112 = scmp.eq.s32.totalorder %s9, 0
    %p113 = por %p111, %p112
    %p114 = scmp.ne.s32.totalorder %s103, %s106
    %p115 = scmp.eq.s32.totalorder %s14, 1
    %p116 = por %p114, %p115
    %p117 = scmp.ne.s32.totalorder %s106, %s107
    %p118 = scmp.eq.s32.totalorder %s14, 0
    %p119 = por %p117, %p118
    %p120 = scmp.ne.s32.totalorder %s106, %s107
    %p121 = scmp.eq.s32.totalorder %s15, 1
    %p122 = por %p120, %p121
    %p124 = scmp.ne.s32.totalorder %s107, %s123
    %p125 = scmp.eq.s32.totalorder %s15, 0
    %p126 = por %p124, %p125
    %p127 = scmp.le.s32.totalorder 1, %s9
    %p128 = scmp.lt.s32.totalorder %s9, 3
    %p129 = pnand %p127, %p128
    %p130 = pneg %p129
    // Predicated region
    $region9: #{cnn_tempogram_forward.4} parent=5 // pred_check
      _
    $region10: #{cnn_tempogram_forward.4} parent=5 // pred_check_branch
      %132 = sbr.rel (%p129) target = $region12
    $region11: #{cnn_tempogram_forward.4} parent=5 // pred_region
      %s133 = ssub.s32 %s9, 1
      // Predicated region
      $region13: #{cnn_tempogram_forward.4} parent=11 // pred_check
        %p134 = pneg %p70
      $region14: #{cnn_tempogram_forward.4} parent=11 // pred_check_branch
        %136 = sbr.rel (%p134) target = $region16
      $region15: #{cnn_tempogram_forward.4} parent=11 // pred_region
        _
      $region16: #{cnn_tempogram_forward.4} parent=11 // pred_fallthru
        _
      // Predicated region
      $region17: #{cnn_tempogram_forward.4} parent=11 // pred_check
        %p137 = pneg %p91
      $region18: #{cnn_tempogram_forward.4} parent=11 // pred_check_branch
        %139 = sbr.rel (%p137) target = $region20
      $region19: #{cnn_tempogram_forward.4} parent=11 // pred_region
        _
      $region20: #{cnn_tempogram_forward.4} parent=11 // pred_fallthru
        _
    $region12: #{cnn_tempogram_forward.4} parent=5 // pred_fallthru
      _
    %p140 = scmp.lt.s32.totalorder %s9, 2
    // Predicated region
    $region21: #{cnn_tempogram_forward.4} parent=5 // pred_check
      %p141 = pneg %p140
    $region22: #{cnn_tempogram_forward.4} parent=5 // pred_check_branch
      %143 = sbr.rel (%p141) target = $region24
    $region23: #{cnn_tempogram_forward.4} parent=5 // pred_region
      // Predicated region
      $region25: #{cnn_tempogram_forward.4} parent=23 // pred_check
        %p144 = pneg %p43
      $region26: #{cnn_tempogram_forward.4} parent=23 // pred_check_branch
        %146 = sbr.rel (%p144) target = $region28
      $region27: #{cnn_tempogram_forward.4} parent=23 // pred_region
        %p147 = scmp.lt.s32.totalorder %s16, 1
        %s148 = scalar_select %p147, %s16, 1
        %p149 = scmp.lt.s32.totalorder %s17, 0
        %s150 = scalar_select %p149, %s17, 0
        %s151 = smul.addr %s150, 36
        %s152 = smul.addr %s148, 36
        %s153 = sadd.s32 %s151, %s152
        %s154 = smul.addr %s153, 4
        %s155 = scalar_lea.vmem %s0, %s154
      $region28: #{cnn_tempogram_forward.4} parent=23 // pred_fallthru
        _
    $region24: #{cnn_tempogram_forward.4} parent=5 // pred_fallthru
      _
    %p156 = scmp.le.s32.totalorder 1, %s9
    %p157 = scmp.lt.s32.totalorder %s9, 3
    %p158 = pnand %p156, %p157
    %p159 = pneg %p158
    // Predicated region
    $region29: #{cnn_tempogram_forward.4} parent=5 // pred_check
      _
    $region30: #{cnn_tempogram_forward.4} parent=5 // pred_check_branch
      %161 = sbr.rel (%p158) target = $region32
    $region31: #{cnn_tempogram_forward.4} parent=5 // pred_region
      %s162 = ssub.s32 %s9, 1
      %p163 = scmp.lt.s32.totalorder %s18, 1
      %s164 = scalar_select %p163, %s18, 1
      %p165 = scmp.lt.s32.totalorder %s19, 0
      %s166 = scalar_select %p165, %s19, 0
      %s167 = smul.addr %s166, 36
      %s168 = smul.addr %s164, 36
      %s169 = sadd.s32 %s167, %s168
      %s170 = smul.addr %s169, 4
      %s171 = scalar_lea.vmem %s0, %s170
      %p172 = pneg %p49
      %p173 = pneg %p46
      %p174 = pneg %p70
      %p175 = pneg %p67
      %p176 = pneg %p91
      %p177 = pneg %p88
      %p178 = pneg %p119
      %p179 = pneg %p116
      %p180 = scmp.lt.s32.totalorder %s18, 1
      %s181 = scalar_select %p180, %s18, 1
      %p182 = scmp.lt.s32.totalorder %s19, 0
      %s183 = scalar_select %p182, %s19, 0
      %s184 = smul.addr %s183, 6
      %s185 = smul.addr %s181, 6
      %s186 = sadd.s32 %s184, %s185
      %s187 = smul.addr %s186, 4
      %s188 = scalar_lea.vmem %s3, %s187
      %p189 = scmp.lt.s32.totalorder %s18, 1
      %s190 = scalar_select %p189, %s18, 1
      %p191 = scmp.lt.s32.totalorder %s19, 0
      %s192 = scalar_select %p191, %s19, 0
      %s193 = smul.addr %s192, 36
      %s194 = smul.addr %s190, 36
      %s195 = sadd.s32 %s193, %s194
      %s196 = smul.addr %s195, 4
      %s197 = scalar_lea.vmem %s0, %s196
      %p198 = scmp.lt.s32.totalorder %s18, 1
      %s199 = scalar_select %p198, %s18, 1
      %p200 = scmp.lt.s32.totalorder %s19, 0
      %s201 = scalar_select %p200, %s19, 0
      %s202 = smul.addr %s201, 6
      %s203 = smul.addr %s199, 6
      %s204 = sadd.s32 %s202, %s203
      %s205 = smul.addr %s204, 4
      %s206 = scalar_lea.vmem %s3, %s205
      %v208 = vld [vmem:[%s197] sm:$0xf]
      %v209 = vld [vmem:[%s197 + $0x4] sm:$0xf]
      %v210 = vld [vmem:[%s197 + $0x8] sm:$0xf]
      %v211 = vld [vmem:[%s197 + $0xc] sm:$0xf]
      %v212 = vld [vmem:[%s197 + $0x10] sm:$0xf]
      %v213 = vld [vmem:[%s197 + $0x14] sm:$0xf]
      %v214 = vld [vmem:[%s197 + $0x18] sm:$0xf]
      %v215 = vld [vmem:[%s197 + $0x1c] sm:$0xf]
      %v216 = vld [vmem:[%s197 + $0x20] sm:$0xf]
      %v217 = vld [vmem:[%s197 + $0x24] sm:$0xf]
      %v218 = vld [vmem:[%s197 + $0x28] sm:$0xf]
      %v219 = vld [vmem:[%s197 + $0x2c] sm:$0xf]
      %v220 = vld [vmem:[%s197 + $0x30] sm:$0xf]
      %v221 = vld [vmem:[%s197 + $0x34] sm:$0xf]
      %v222 = vld [vmem:[%s197 + $0x38] sm:$0xf]
      %v223 = vld [vmem:[%s197 + $0x3c] sm:$0xf]
      %v224 = vld [vmem:[%s197 + $0x40] sm:$0xf]
      %v225 = vld [vmem:[%s197 + $0x44] sm:$0xf]
      %v226 = vld [vmem:[%s197 + $0x48] sm:$0xf]
      %v227 = vld [vmem:[%s197 + $0x4c] sm:$0xf]
      %v228 = vld [vmem:[%s197 + $0x50] sm:$0xf]
      %v229 = vld [vmem:[%s197 + $0x54] sm:$0xf]
      %v230 = vld [vmem:[%s197 + $0x58] sm:$0xf]
      %v231 = vld [vmem:[%s197 + $0x5c] sm:$0xf]
      %v232 = vld [vmem:[%s197 + $0x60] sm:$0xf]
      %v233 = vld [vmem:[%s197 + $0x64] sm:$0xf]
      %v234 = vld [vmem:[%s197 + $0x68] sm:$0xf]
      %v235 = vld [vmem:[%s197 + $0x6c] sm:$0xf]
      %v236 = vld [vmem:[%s197 + $0x70] sm:$0xf]
      %v237 = vld [vmem:[%s197 + $0x74] sm:$0xf]
      %v238 = vld [vmem:[%s197 + $0x78] sm:$0xf]
      %v239 = vld [vmem:[%s197 + $0x7c] sm:$0xf]
      %v240 = vld [vmem:[%s197 + $0x80] sm:$0xf]
      %v241 = vld [vmem:[%s197 + $0x84] sm:$0xf]
      %v242 = vld [vmem:[%s197 + $0x88] sm:$0xf]
      %v243 = vld [vmem:[%s197 + $0x8c] sm:$0xf]
      %v244 = vld [vmem:[%s1] sm:$0xf]
      %v245 = vld [vmem:[%s1 + $0x4] sm:$0xf]
      %v246 = vld [vmem:[%s1 + $0x8] sm:$0xf]
      %v247 = vld [vmem:[%s1 + $0xc] sm:$0xf]
      %v248 = vld [vmem:[%s1 + $0x10] sm:$0x3]
      %v285 = vunpack.c.l.b16 %v208
      %v286 = vunpack.c.l.b16 %v209
      %v287 = vunpack.c.l.b16 %v210
      %v288 = vunpack.c.l.b16 %v211
      %v289 = vunpack.c.l.b16 %v212
      %v290 = vunpack.c.l.b16 %v213
      %v291 = vunpack.c.l.b16 %v214
      %v292 = vunpack.c.l.b16 %v215
      %v293 = vunpack.c.l.b16 %v216
      %v294 = vunpack.c.l.b16 %v217
      %v295 = vunpack.c.l.b16 %v218
      %v296 = vunpack.c.l.b16 %v219
      %v297 = vunpack.c.l.b16 %v220
      %v298 = vunpack.c.l.b16 %v221
      %v299 = vunpack.c.l.b16 %v222
      %v300 = vunpack.c.l.b16 %v223
      %v301 = vunpack.c.l.b16 %v224
      %v302 = vunpack.c.l.b16 %v225
      %v303 = vunpack.c.l.b16 %v226
      %v304 = vunpack.c.l.b16 %v227
      %v305 = vunpack.c.l.b16 %v228
      %v306 = vunpack.c.l.b16 %v229
      %v307 = vunpack.c.l.b16 %v230
      %v308 = vunpack.c.l.b16 %v231
      %v309 = vunpack.c.l.b16 %v232
      %v310 = vunpack.c.l.b16 %v233
      %v311 = vunpack.c.l.b16 %v234
      %v312 = vunpack.c.l.b16 %v235
      %v313 = vunpack.c.l.b16 %v236
      %v314 = vunpack.c.l.b16 %v237
      %v315 = vunpack.c.l.b16 %v238
      %v316 = vunpack.c.l.b16 %v239
      %v317 = vunpack.c.l.b16 %v240
      %v318 = vunpack.c.l.b16 %v241
      %v319 = vunpack.c.l.b16 %v242
      %v320 = vunpack.c.l.b16 %v243
      %v321 = vpack.c.b16 %v286, %v285
      %v322 = vpack.c.b16 %v288, %v287
      %v323 = vpack.c.b16 %v290, %v289
      %v324 = vpack.c.b16 %v292, %v291
      %v325 = vpack.c.b16 %v294, %v293
      %v326 = vpack.c.b16 %v296, %v295
      %v327 = vpack.c.b16 %v298, %v297
      %v328 = vpack.c.b16 %v300, %v299
      %v329 = vpack.c.b16 %v302, %v301
      %v330 = vpack.c.b16 %v304, %v303
      %v331 = vpack.c.b16 %v306, %v305
      %v332 = vpack.c.b16 %v308, %v307
      %v333 = vpack.c.b16 %v310, %v309
      %v334 = vpack.c.b16 %v312, %v311
      %v335 = vpack.c.b16 %v314, %v313
      %v336 = vpack.c.b16 %v316, %v315
      %v337 = vpack.c.b16 %v318, %v317
      %v338 = vpack.c.b16 %v320, %v319
      %v344 = vunpack.c.l.b16 %v244
      %v345 = vunpack.c.l.b16 %v245
      %v346 = vunpack.c.l.b16 %v246
      %v347 = vunpack.c.l.b16 %v247
      %v348 = vunpack.c.l.b16 %v248
      %v349 = vpack.c.b16 %v345, %v344
      %v350 = vpack.c.b16 %v347, %v346
      %v351 = vpack.c.b16 %v348, %v348
      %vm354 = vcmask 293888
      %v356 = vsel %vm354, %v321, 0
      %v359 = vsel %vm354, %v322, 0
      %v362 = vsel %vm354, %v323, 0
      %v365 = vsel %vm354, %v324, 0
      %v368 = vsel %vm354, %v325, 0
      %v371 = vsel %vm354, %v326, 0
      %v374 = vsel %vm354, %v327, 0
      %v377 = vsel %vm354, %v328, 0
      %v380 = vsel %vm354, %v329, 0
      %v383 = vsel %vm354, %v330, 0
      %v386 = vsel %vm354, %v331, 0
      %v389 = vsel %vm354, %v332, 0
      %v392 = vsel %vm354, %v333, 0
      %v395 = vsel %vm354, %v334, 0
      %v398 = vsel %vm354, %v335, 0
      %v401 = vsel %vm354, %v336, 0
      %v404 = vsel %vm354, %v337, 0
      %v407 = vsel %vm354, %v338, 0
      %vm409 = vcmask 1041408
      %v411 = vsel %vm409, %v351, 0
      %413 = vmatprep.subr.bf16.mxu0 0
      %414 = vmatpush1.bf16.msra.mxu0 %v349
      %415 = vmatprep.subr.bf16.mxu0 0
      %416 = vmatpush1.bf16.msra.mxu0 %v350
      %417 = vmatprep.subr.bf16.mxu0 0
      %418 = vmatpush1.bf16.msra.mxu0 %v411
      %419 = vmatprep.subr.bf16.mxu0 0
      %420 = vmatpush1.bf16.msra.mxu0 0
      %421 = vmatprep.subr.bf16.mxu0 0
      %422 = vmatpush1.bf16.msra.mxu0 0
      %423 = vmatprep.subr.bf16.mxu0 0
      %424 = vmatpush1.bf16.msra.mxu0 0
      %425 = vmatprep.subr.bf16.mxu0 0
      %426 = vmatpush1.bf16.msra.mxu0 0
      %427 = vmatprep.subr.bf16.mxu0 0
      %428 = vmatpush1.bf16.msra.mxu0 0
      %429 = vmatprep.subr.bf16.mxu0 0
      %430 = vmatpush1.bf16.msra.mxu0 0
      %431 = vmatprep.subr.bf16.mxu0 0
      %432 = vmatpush1.bf16.msra.mxu0 0
      %433 = vmatprep.subr.bf16.mxu0 0
      %434 = vmatpush1.bf16.msra.mxu0 0
      %435 = vmatprep.subr.bf16.mxu0 0
      %436 = vmatpush1.bf16.msra.mxu0 0
      %437 = vmatprep.subr.bf16.mxu0 0
      %438 = vmatpush1.bf16.msra.mxu0 0
      %439 = vmatprep.subr.bf16.mxu0 0
      %440 = vmatpush1.bf16.msra.mxu0 0
      %441 = vmatprep.subr.bf16.mxu0 0
      %442 = vmatpush1.bf16.msra.mxu0 0
      %443 = vmatprep.subr.bf16.mxu0 0
      %444 = vmatpush1.bf16.msra.mxu0 0
      %445 = vmatprep.mubr.bf16.mxu0 0
      %446 = vmatmul.mubr.bf16.gmra.mrb[0].mxu0 %v356
      %v447 = vpop.f32.mrb[0].mxu0
      %v448 = vadd.f32 0.0, %v447
      %v449 = vpop.f32.mrb[0].mxu0
      %v450 = vpop.f32.mrb[0].mxu0
      %v451 = vadd.f32 0.0, %v450
      %v452 = vpop.f32.mrb[0].mxu0
      %453 = vmatprep.mubr.bf16.mxu0 0
      %454 = vmatmul.mubr.bf16.gmra.mrb[0].mxu0 %v359
      %v455 = vpop.f32.mrb[0].mxu0
      %v456 = vadd.f32 0.0, %v455
      %v457 = vpop.f32.mrb[0].mxu0
      %v458 = vpop.f32.mrb[0].mxu0
      %v459 = vadd.f32 0.0, %v458
      %v460 = vpop.f32.mrb[0].mxu0
      %461 = vmatprep.mubr.bf16.mxu0 0
      %462 = vmatmul.mubr.bf16.gmra.mrb[0].mxu0 %v362
      %v463 = vpop.f32.mrb[0].mxu0
      %v464 = vadd.f32 0.0, %v463
      %v465 = vpop.f32.mrb[0].mxu0
      %v466 = vpop.f32.mrb[0].mxu0
      %v467 = vadd.f32 0.0, %v466
      %v468 = vpop.f32.mrb[0].mxu0
      %469 = vmatprep.mubr.bf16.mxu0 0
      %470 = vmatmul.mubr.bf16.gmra.mrb[0].mxu0 %v365
      %v471 = vpop.f32.mrb[0].mxu0
      %v472 = vadd.f32 0.0, %v471
      %v473 = vpop.f32.mrb[0].mxu0
      %v474 = vpop.f32.mrb[0].mxu0
      %v475 = vadd.f32 0.0, %v474
      %v476 = vpop.f32.mrb[0].mxu0
      %477 = vmatprep.mubr.bf16.mxu0 0
      %478 = vmatmul.mubr.bf16.gmra.mrb[0].mxu0 %v368
      %v479 = vpop.f32.mrb[0].mxu0
      %v480 = vadd.f32 0.0, %v479
      %v481 = vpop.f32.mrb[0].mxu0
      %v482 = vpop.f32.mrb[0].mxu0
      %v483 = vadd.f32 0.0, %v482
      %v484 = vpop.f32.mrb[0].mxu0
      %485 = vmatprep.mubr.bf16.mxu0 0
      %486 = vmatmul.mubr.bf16.gmra.mrb[0].mxu0 %v371
      %v487 = vpop.f32.mrb[0].mxu0
      %v488 = vadd.f32 0.0, %v487
      %v489 = vpop.f32.mrb[0].mxu0
      %v490 = vpop.f32.mrb[0].mxu0
      %v491 = vadd.f32 0.0, %v490
      %v492 = vpop.f32.mrb[0].mxu0
      %493 = vmatprep.mubr.bf16.mxu0 0
      %494 = vmatmul.mubr.bf16.gmra.mrb[0].mxu0 %v374
      %v495 = vpop.f32.mrb[0].mxu0
      %v496 = vadd.f32 0.0, %v495
      %v497 = vpop.f32.mrb[0].mxu0
      %v498 = vpop.f32.mrb[0].mxu0
      %v499 = vadd.f32 0.0, %v498
      %v500 = vpop.f32.mrb[0].mxu0
      %501 = vmatprep.mubr.bf16.mxu0 0
      %502 = vmatmul.mubr.bf16.gmra.mrb[0].mxu0 %v377
      %v503 = vpop.f32.mrb[0].mxu0
      %v504 = vadd.f32 0.0, %v503
      %v505 = vpop.f32.mrb[0].mxu0
      %v506 = vpop.f32.mrb[0].mxu0
      %v507 = vadd.f32 0.0, %v506
      %v508 = vpop.f32.mrb[0].mxu0
      %509 = vmatprep.mubr.bf16.mxu0 0
      %510 = vmatmul.mubr.bf16.gmra.mrb[0].mxu0 %v380
      %v511 = vpop.f32.mrb[0].mxu0
      %v512 = vadd.f32 0.0, %v511
      %v513 = vpop.f32.mrb[0].mxu0
      %v514 = vpop.f32.mrb[0].mxu0
      %v515 = vadd.f32 0.0, %v514
      %v516 = vpop.f32.mrb[0].mxu0
      %517 = vmatprep.mubr.bf16.mxu0 0
      %518 = vmatmul.mubr.bf16.gmra.mrb[0].mxu0 %v383
      %v519 = vpop.f32.mrb[0].mxu0
      %v520 = vadd.f32 0.0, %v519
      %v521 = vpop.f32.mrb[0].mxu0
      %v522 = vpop.f32.mrb[0].mxu0
      %v523 = vadd.f32 0.0, %v522
      %v524 = vpop.f32.mrb[0].mxu0
      %525 = vmatprep.mubr.bf16.mxu0 0
      %526 = vmatmul.mubr.bf16.gmra.mrb[0].mxu0 %v386
      %v527 = vpop.f32.mrb[0].mxu0
      %v528 = vadd.f32 0.0, %v527
      %v529 = vpop.f32.mrb[0].mxu0
      %v530 = vpop.f32.mrb[0].mxu0
      %v531 = vadd.f32 0.0, %v530
      %v532 = vpop.f32.mrb[0].mxu0
      %533 = vmatprep.mubr.bf16.mxu0 0
      %534 = vmatmul.mubr.bf16.gmra.mrb[0].mxu0 %v389
      %v535 = vpop.f32.mrb[0].mxu0
      %v536 = vadd.f32 0.0, %v535
      %v537 = vpop.f32.mrb[0].mxu0
      %v538 = vpop.f32.mrb[0].mxu0
      %v539 = vadd.f32 0.0, %v538
      %v540 = vpop.f32.mrb[0].mxu0
      %541 = vmatprep.mubr.bf16.mxu0 0
      %542 = vmatmul.mubr.bf16.gmra.mrb[0].mxu0 %v392
      %v543 = vpop.f32.mrb[0].mxu0
      %v544 = vadd.f32 0.0, %v543
      %v545 = vpop.f32.mrb[0].mxu0
      %v546 = vpop.f32.mrb[0].mxu0
      %v547 = vadd.f32 0.0, %v546
      %v548 = vpop.f32.mrb[0].mxu0
      %549 = vmatprep.mubr.bf16.mxu0 0
      %550 = vmatmul.mubr.bf16.gmra.mrb[0].mxu0 %v395
      %v551 = vpop.f32.mrb[0].mxu0
      %v552 = vadd.f32 0.0, %v551
      %v553 = vpop.f32.mrb[0].mxu0
      %v554 = vpop.f32.mrb[0].mxu0
      %v555 = vadd.f32 0.0, %v554
      %v556 = vpop.f32.mrb[0].mxu0
      %557 = vmatprep.mubr.bf16.mxu0 0
      %558 = vmatmul.mubr.bf16.gmra.mrb[0].mxu0 %v398
      %v559 = vpop.f32.mrb[0].mxu0
      %v560 = vadd.f32 0.0, %v559
      %v561 = vpop.f32.mrb[0].mxu0
      %v562 = vpop.f32.mrb[0].mxu0
      %v563 = vadd.f32 0.0, %v562
      %v564 = vpop.f32.mrb[0].mxu0
      %565 = vmatprep.mubr.bf16.mxu0 0
      %566 = vmatmul.mubr.bf16.gmra.mrb[0].mxu0 %v401
      %v567 = vpop.f32.mrb[0].mxu0
      %v568 = vadd.f32 0.0, %v567
      %v569 = vpop.f32.mrb[0].mxu0
      %v570 = vpop.f32.mrb[0].mxu0
      %v571 = vadd.f32 0.0, %v570
      %v572 = vpop.f32.mrb[0].mxu0
      %573 = vmatprep.mubr.bf16.mxu0 0
      %574 = vmatmul.mubr.bf16.gmra.mrb[0].mxu0 %v404
      %v575 = vpop.f32.mrb[0].mxu0
      %v576 = vadd.f32 0.0, %v575
      %v577 = vpop.f32.mrb[0].mxu0
      %v578 = vpop.f32.mrb[0].mxu0
      %v579 = vadd.f32 0.0, %v578
      %v580 = vpop.f32.mrb[0].mxu0
      %581 = vmatprep.mubr.bf16.mxu0 0
      %582 = vmatmul.mubr.bf16.gmra.mrb[0].mxu0 %v407
      %v583 = vpop.f32.mrb[0].mxu0
      %v584 = vadd.f32 0.0, %v583
      %v585 = vpop.f32.mrb[0].mxu0
      %v586 = vpop.f32.mrb[0].mxu0
      %v587 = vadd.f32 0.0, %v586
      %v588 = vpop.f32.mrb[0].mxu0
      %589 = vdwg.mxu0
      %626 = vrot.lane.b32.xlu0 %v448, 112
      %v627 = vpop.permute.xlu0 %626
      %628 = vrot.lane.b32.xlu0 %v451, 112
      %v629 = vpop.permute.xlu0 %628
      %630 = vrot.lane.b32.xlu0 %v456, 112
      %v631 = vpop.permute.xlu0 %630
      %632 = vrot.lane.b32.xlu0 %v459, 112
      %v633 = vpop.permute.xlu0 %632
      %634 = vrot.lane.b32.xlu0 %v464, 112
      %v635 = vpop.permute.xlu0 %634
      %636 = vrot.lane.b32.xlu0 %v467, 112
      %v637 = vpop.permute.xlu0 %636
      %638 = vrot.lane.b32.xlu0 %v472, 112
      %v639 = vpop.permute.xlu0 %638
      %640 = vrot.lane.b32.xlu0 %v475, 112
      %v641 = vpop.permute.xlu0 %640
      %642 = vrot.lane.b32.xlu0 %v480, 112
      %v643 = vpop.permute.xlu0 %642
      %644 = vrot.lane.b32.xlu0 %v483, 112
      %v645 = vpop.permute.xlu0 %644
      %646 = vrot.lane.b32.xlu0 %v488, 112
      %v647 = vpop.permute.xlu0 %646
      %648 = vrot.lane.b32.xlu0 %v491, 112
      %v649 = vpop.permute.xlu0 %648
      %650 = vrot.lane.b32.xlu0 %v496, 112
      %v651 = vpop.permute.xlu0 %650
      %652 = vrot.lane.b32.xlu0 %v499, 112
      %v653 = vpop.permute.xlu0 %652
      %654 = vrot.lane.b32.xlu0 %v504, 112
      %v655 = vpop.permute.xlu0 %654
      %656 = vrot.lane.b32.xlu0 %v507, 112
      %v657 = vpop.permute.xlu0 %656
      %658 = vrot.lane.b32.xlu0 %v512, 112
      %v659 = vpop.permute.xlu0 %658
      %660 = vrot.lane.b32.xlu0 %v515, 112
      %v661 = vpop.permute.xlu0 %660
      %662 = vrot.lane.b32.xlu0 %v520, 112
      %v663 = vpop.permute.xlu0 %662
      %664 = vrot.lane.b32.xlu0 %v523, 112
      %v665 = vpop.permute.xlu0 %664
      %666 = vrot.lane.b32.xlu0 %v528, 112
      %v667 = vpop.permute.xlu0 %666
      %668 = vrot.lane.b32.xlu0 %v531, 112
      %v669 = vpop.permute.xlu0 %668
      %670 = vrot.lane.b32.xlu0 %v536, 112
      %v671 = vpop.permute.xlu0 %670
      %672 = vrot.lane.b32.xlu0 %v539, 112
      %v673 = vpop.permute.xlu0 %672
      %674 = vrot.lane.b32.xlu0 %v544, 112
      %v675 = vpop.permute.xlu0 %674
      %676 = vrot.lane.b32.xlu0 %v547, 112
      %v677 = vpop.permute.xlu0 %676
      %678 = vrot.lane.b32.xlu0 %v552, 112
      %v679 = vpop.permute.xlu0 %678
      %680 = vrot.lane.b32.xlu0 %v555, 112
      %v681 = vpop.permute.xlu0 %680
      %682 = vrot.lane.b32.xlu0 %v560, 112
      %v683 = vpop.permute.xlu0 %682
      %684 = vrot.lane.b32.xlu0 %v563, 112
      %v685 = vpop.permute.xlu0 %684
      %686 = vrot.lane.b32.xlu0 %v568, 112
      %v687 = vpop.permute.xlu0 %686
      %688 = vrot.lane.b32.xlu0 %v571, 112
      %v689 = vpop.permute.xlu0 %688
      %690 = vrot.lane.b32.xlu0 %v576, 112
      %v691 = vpop.permute.xlu0 %690
      %692 = vrot.lane.b32.xlu0 %v579, 112
      %v693 = vpop.permute.xlu0 %692
      %694 = vrot.lane.b32.xlu0 %v584, 112
      %v695 = vpop.permute.xlu0 %694
      %696 = vrot.lane.b32.xlu0 %v587, 112
      %v697 = vpop.permute.xlu0 %696
      %v734 = vmax.f32 %v448, %v627
      %v735 = vmax.f32 %v451, %v629
      %v736 = vmax.f32 %v456, %v631
      %v737 = vmax.f32 %v459, %v633
      %v738 = vmax.f32 %v464, %v635
      %v739 = vmax.f32 %v467, %v637
      %v740 = vmax.f32 %v472, %v639
      %v741 = vmax.f32 %v475, %v641
      %v742 = vmax.f32 %v480, %v643
      %v743 = vmax.f32 %v483, %v645
      %v744 = vmax.f32 %v488, %v647
      %v745 = vmax.f32 %v491, %v649
      %v746 = vmax.f32 %v496, %v651
      %v747 = vmax.f32 %v499, %v653
      %v748 = vmax.f32 %v504, %v655
      %v749 = vmax.f32 %v507, %v657
      %v750 = vmax.f32 %v512, %v659
      %v751 = vmax.f32 %v515, %v661
      %v752 = vmax.f32 %v520, %v663
      %v753 = vmax.f32 %v523, %v665
      %v754 = vmax.f32 %v528, %v667
      %v755 = vmax.f32 %v531, %v669
      %v756 = vmax.f32 %v536, %v671
      %v757 = vmax.f32 %v539, %v673
      %v758 = vmax.f32 %v544, %v675
      %v759 = vmax.f32 %v547, %v677
      %v760 = vmax.f32 %v552, %v679
      %v761 = vmax.f32 %v555, %v681
      %v762 = vmax.f32 %v560, %v683
      %v763 = vmax.f32 %v563, %v685
      %v764 = vmax.f32 %v568, %v687
      %v765 = vmax.f32 %v571, %v689
      %v766 = vmax.f32 %v576, %v691
      %v767 = vmax.f32 %v579, %v693
      %v768 = vmax.f32 %v584, %v695
      %v769 = vmax.f32 %v587, %v697
      %806 = vrot.lane.b32.xlu0 %v734, 96
      %v807 = vpop.permute.xlu0 %806
      %808 = vrot.lane.b32.xlu0 %v735, 96
      %v809 = vpop.permute.xlu0 %808
      %810 = vrot.lane.b32.xlu0 %v736, 96
      %v811 = vpop.permute.xlu0 %810
      %812 = vrot.lane.b32.xlu0 %v737, 96
      %v813 = vpop.permute.xlu0 %812
      %814 = vrot.lane.b32.xlu0 %v738, 96
      %v815 = vpop.permute.xlu0 %814
      %816 = vrot.lane.b32.xlu0 %v739, 96
      %v817 = vpop.permute.xlu0 %816
      %818 = vrot.lane.b32.xlu0 %v740, 96
      %v819 = vpop.permute.xlu0 %818
      %820 = vrot.lane.b32.xlu0 %v741, 96
      %v821 = vpop.permute.xlu0 %820
      %822 = vrot.lane.b32.xlu0 %v742, 96
      %v823 = vpop.permute.xlu0 %822
      %824 = vrot.lane.b32.xlu0 %v743, 96
      %v825 = vpop.permute.xlu0 %824
      %826 = vrot.lane.b32.xlu0 %v744, 96
      %v827 = vpop.permute.xlu0 %826
      %828 = vrot.lane.b32.xlu0 %v745, 96
      %v829 = vpop.permute.xlu0 %828
      %830 = vrot.lane.b32.xlu0 %v746, 96
      %v831 = vpop.permute.xlu0 %830
      %832 = vrot.lane.b32.xlu0 %v747, 96
      %v833 = vpop.permute.xlu0 %832
      %834 = vrot.lane.b32.xlu0 %v748, 96
      %v835 = vpop.permute.xlu0 %834
      %836 = vrot.lane.b32.xlu0 %v749, 96
      %v837 = vpop.permute.xlu0 %836
      %838 = vrot.lane.b32.xlu0 %v750, 96
      %v839 = vpop.permute.xlu0 %838
      %840 = vrot.lane.b32.xlu0 %v751, 96
      %v841 = vpop.permute.xlu0 %840
      %842 = vrot.lane.b32.xlu0 %v752, 96
      %v843 = vpop.permute.xlu0 %842
      %844 = vrot.lane.b32.xlu0 %v753, 96
      %v845 = vpop.permute.xlu0 %844
      %846 = vrot.lane.b32.xlu0 %v754, 96
      %v847 = vpop.permute.xlu0 %846
      %848 = vrot.lane.b32.xlu0 %v755, 96
      %v849 = vpop.permute.xlu0 %848
      %850 = vrot.lane.b32.xlu0 %v756, 96
      %v851 = vpop.permute.xlu0 %850
      %852 = vrot.lane.b32.xlu0 %v757, 96
      %v853 = vpop.permute.xlu0 %852
      %854 = vrot.lane.b32.xlu0 %v758, 96
      %v855 = vpop.permute.xlu0 %854
      %856 = vrot.lane.b32.xlu0 %v759, 96
      %v857 = vpop.permute.xlu0 %856
      %858 = vrot.lane.b32.xlu0 %v760, 96
      %v859 = vpop.permute.xlu0 %858
      %860 = vrot.lane.b32.xlu0 %v761, 96
      %v861 = vpop.permute.xlu0 %860
      %862 = vrot.lane.b32.xlu0 %v762, 96
      %v863 = vpop.permute.xlu0 %862
      %864 = vrot.lane.b32.xlu0 %v763, 96
      %v865 = vpop.permute.xlu0 %864
      %866 = vrot.lane.b32.xlu0 %v764, 96
      %v867 = vpop.permute.xlu0 %866
      %868 = vrot.lane.b32.xlu0 %v765, 96
      %v869 = vpop.permute.xlu0 %868
      %870 = vrot.lane.b32.xlu0 %v766, 96
      %v871 = vpop.permute.xlu0 %870
      %872 = vrot.lane.b32.xlu0 %v767, 96
      %v873 = vpop.permute.xlu0 %872
      %874 = vrot.lane.b32.xlu0 %v768, 96
      %v875 = vpop.permute.xlu0 %874
      %876 = vrot.lane.b32.xlu0 %v769, 96
      %v877 = vpop.permute.xlu0 %876
      %v914 = vmax.f32 %v734, %v807
      %v915 = vmax.f32 %v735, %v809
      %v916 = vmax.f32 %v736, %v811
      %v917 = vmax.f32 %v737, %v813
      %v918 = vmax.f32 %v738, %v815
      %v919 = vmax.f32 %v739, %v817
      %v920 = vmax.f32 %v740, %v819
      %v921 = vmax.f32 %v741, %v821
      %v922 = vmax.f32 %v742, %v823
      %v923 = vmax.f32 %v743, %v825
      %v924 = vmax.f32 %v744, %v827
      %v925 = vmax.f32 %v745, %v829
      %v926 = vmax.f32 %v746, %v831
      %v927 = vmax.f32 %v747, %v833
      %v928 = vmax.f32 %v748, %v835
      %v929 = vmax.f32 %v749, %v837
      %v930 = vmax.f32 %v750, %v839
      %v931 = vmax.f32 %v751, %v841
      %v932 = vmax.f32 %v752, %v843
      %v933 = vmax.f32 %v753, %v845
      %v934 = vmax.f32 %v754, %v847
      %v935 = vmax.f32 %v755, %v849
      %v936 = vmax.f32 %v756, %v851
      %v937 = vmax.f32 %v757, %v853
      %v938 = vmax.f32 %v758, %v855
      %v939 = vmax.f32 %v759, %v857
      %v940 = vmax.f32 %v760, %v859
      %v941 = vmax.f32 %v761, %v861
      %v942 = vmax.f32 %v762, %v863
      %v943 = vmax.f32 %v763, %v865
      %v944 = vmax.f32 %v764, %v867
      %v945 = vmax.f32 %v765, %v869
      %v946 = vmax.f32 %v766, %v871
      %v947 = vmax.f32 %v767, %v873
      %v948 = vmax.f32 %v768, %v875
      %v949 = vmax.f32 %v769, %v877
      %v950 = vld [vmem:[%s2] sm:$0x1]
      %v952 = vlaneseq
      %v953 = vshrl.u32 %v952, 7
      %v954 = vsub.s32 0, %v953
      %v955 = vrot.slane %v950, %v954
      %v957 = vadd.f32 %v914, %v955
      %v958 = vadd.f32 %v915, %v955
      %v959 = vadd.f32 %v916, %v955
      %v960 = vadd.f32 %v917, %v955
      %v961 = vadd.f32 %v918, %v955
      %v962 = vadd.f32 %v919, %v955
      %v963 = vadd.f32 %v920, %v955
      %v964 = vadd.f32 %v921, %v955
      %v965 = vadd.f32 %v922, %v955
      %v966 = vadd.f32 %v923, %v955
      %v967 = vadd.f32 %v924, %v955
      %v968 = vadd.f32 %v925, %v955
      %v969 = vadd.f32 %v926, %v955
      %v970 = vadd.f32 %v927, %v955
      %v971 = vadd.f32 %v928, %v955
      %v972 = vadd.f32 %v929, %v955
      %v973 = vadd.f32 %v930, %v955
      %v974 = vadd.f32 %v931, %v955
      %v975 = vadd.f32 %v932, %v955
      %v976 = vadd.f32 %v933, %v955
      %v977 = vadd.f32 %v934, %v955
      %v978 = vadd.f32 %v935, %v955
      %v979 = vadd.f32 %v936, %v955
      %v980 = vadd.f32 %v937, %v955
      %v981 = vadd.f32 %v938, %v955
      %v982 = vadd.f32 %v939, %v955
      %v983 = vadd.f32 %v940, %v955
      %v984 = vadd.f32 %v941, %v955
      %v985 = vadd.f32 %v942, %v955
      %v986 = vadd.f32 %v943, %v955
      %v987 = vadd.f32 %v944, %v955
      %v988 = vadd.f32 %v945, %v955
      %v989 = vadd.f32 %v946, %v955
      %v990 = vadd.f32 %v947, %v955
      %v991 = vadd.f32 %v948, %v955
      %v992 = vadd.f32 %v949, %v955
      %v993 = vmax.f32 %v957, 0.0
      %v994 = vmax.f32 %v958, 0.0
      %v995 = vmax.f32 %v959, 0.0
      %v996 = vmax.f32 %v960, 0.0
      %v997 = vmax.f32 %v961, 0.0
      %v998 = vmax.f32 %v962, 0.0
      %v999 = vmax.f32 %v963, 0.0
      %v1000 = vmax.f32 %v964, 0.0
      %v1001 = vmax.f32 %v965, 0.0
      %v1002 = vmax.f32 %v966, 0.0
      %v1003 = vmax.f32 %v967, 0.0
      %v1004 = vmax.f32 %v968, 0.0
      %v1005 = vmax.f32 %v969, 0.0
      %v1006 = vmax.f32 %v970, 0.0
      %v1007 = vmax.f32 %v971, 0.0
      %v1008 = vmax.f32 %v972, 0.0
      %v1009 = vmax.f32 %v973, 0.0
      %v1010 = vmax.f32 %v974, 0.0
      %v1011 = vmax.f32 %v975, 0.0
      %v1012 = vmax.f32 %v976, 0.0
      %v1013 = vmax.f32 %v977, 0.0
      %v1014 = vmax.f32 %v978, 0.0
      %v1015 = vmax.f32 %v979, 0.0
      %v1016 = vmax.f32 %v980, 0.0
      %v1017 = vmax.f32 %v981, 0.0
      %v1018 = vmax.f32 %v982, 0.0
      %v1019 = vmax.f32 %v983, 0.0
      %v1020 = vmax.f32 %v984, 0.0
      %v1021 = vmax.f32 %v985, 0.0
      %v1022 = vmax.f32 %v986, 0.0
      %v1023 = vmax.f32 %v987, 0.0
      %v1024 = vmax.f32 %v988, 0.0
      %v1025 = vmax.f32 %v989, 0.0
      %v1026 = vmax.f32 %v990, 0.0
      %v1027 = vmax.f32 %v991, 0.0
      %v1028 = vmax.f32 %v992, 0.0
      %1029 = vxpose.xlu0.b32.start [1/16] %v993, 128
      %1030 = vxpose.xlu0.b32.cont [2/16] %v994, 128
      %1031 = vxpose.xlu0.b32.cont [3/16] %v995, 128
      %1032 = vxpose.xlu0.b32.cont [4/16] %v996, 128
      %1033 = vxpose.xlu0.b32.cont [5/16] %v997, 128
      %1034 = vxpose.xlu0.b32.cont [6/16] %v998, 128
      %1035 = vxpose.xlu0.b32.cont [7/16] %v999, 128
      %1036 = vxpose.xlu0.b32.cont [8/16] %v1000, 128
      %1037 = vxpose.xlu0.b32.cont [9/16] %v1001, 128
      %1038 = vxpose.xlu0.b32.cont [10/16] %v1002, 128
      %1039 = vxpose.xlu0.b32.cont [11/16] %v1003, 128
      %1040 = vxpose.xlu0.b32.cont [12/16] %v1004, 128
      %1041 = vxpose.xlu0.b32.cont [13/16] %v1005, 128
      %1042 = vxpose.xlu0.b32.cont [14/16] %v1006, 128
      %1043 = vxpose.xlu0.b32.cont [15/16] %v1007, 128
      %1044 = vxpose.xlu0.b32.end [16/16] %v1008, 128
      %v1045 = vpop.trf.xlu0
      %v1046 = vpop.trf.xlu0
      %v1047 = vpop.trf.xlu0
      %v1048 = vpop.trf.xlu0
      %v1049 = vpop.trf.xlu0
      %v1050 = vpop.trf.xlu0
      %v1051 = vpop.trf.xlu0
      %v1052 = vpop.trf.xlu0
      %v1053 = vpop.trf.xlu0
      %v1054 = vpop.trf.xlu0
      %v1055 = vpop.trf.xlu0
      %v1056 = vpop.trf.xlu0
      %v1057 = vpop.trf.xlu0
      %v1058 = vpop.trf.xlu0
      %v1059 = vpop.trf.xlu0
      %v1060 = vpop.trf.xlu0
      %1061 = vxpose.xlu0.b32.start [1/16] %v1009, 128
      %1062 = vxpose.xlu0.b32.cont [2/16] %v1010, 128
      %1063 = vxpose.xlu0.b32.cont [3/16] %v1011, 128
      %1064 = vxpose.xlu0.b32.cont [4/16] %v1012, 128
      %1065 = vxpose.xlu0.b32.cont [5/16] %v1013, 128
      %1066 = vxpose.xlu0.b32.cont [6/16] %v1014, 128
      %1067 = vxpose.xlu0.b32.cont [7/16] %v1015, 128
      %1068 = vxpose.xlu0.b32.cont [8/16] %v1016, 128
      %1069 = vxpose.xlu0.b32.cont [9/16] %v1017, 128
      %1070 = vxpose.xlu0.b32.cont [10/16] %v1018, 128
      %1071 = vxpose.xlu0.b32.cont [11/16] %v1019, 128
      %1072 = vxpose.xlu0.b32.cont [12/16] %v1020, 128
      %1073 = vxpose.xlu0.b32.cont [13/16] %v1021, 128
      %1074 = vxpose.xlu0.b32.cont [14/16] %v1022, 128
      %1075 = vxpose.xlu0.b32.cont [15/16] %v1023, 128
      %1076 = vxpose.xlu0.b32.end [16/16] %v1024, 128
      %v1077 = vpop.trf.xlu0
      %v1078 = vpop.trf.xlu0
      %v1079 = vpop.trf.xlu0
      %v1080 = vpop.trf.xlu0
      %v1081 = vpop.trf.xlu0
      %v1082 = vpop.trf.xlu0
      %v1083 = vpop.trf.xlu0
      %v1084 = vpop.trf.xlu0
      %v1085 = vpop.trf.xlu0
      %v1086 = vpop.trf.xlu0
      %v1087 = vpop.trf.xlu0
      %v1088 = vpop.trf.xlu0
      %v1089 = vpop.trf.xlu0
      %v1090 = vpop.trf.xlu0
      %v1091 = vpop.trf.xlu0
      %v1092 = vpop.trf.xlu0
      %1093 = vxpose.xlu0.b32.start [1/16] %v1025, 128
      %1094 = vxpose.xlu0.b32.cont [2/16] %v1026, 128
      %1095 = vxpose.xlu0.b32.cont [3/16] %v1027, 128
      %1096 = vxpose.xlu0.b32.cont [4/16] %v1028, 128
      %1097 = vxpose.xlu0.b32.cont [5/16] 0.0, 128
      %1098 = vxpose.xlu0.b32.cont [6/16] 0.0, 128
      %1099 = vxpose.xlu0.b32.cont [7/16] 0.0, 128
      %1100 = vxpose.xlu0.b32.cont [8/16] 0.0, 128
      %1101 = vxpose.xlu0.b32.cont [9/16] 0.0, 128
      %1102 = vxpose.xlu0.b32.cont [10/16] 0.0, 128
      %1103 = vxpose.xlu0.b32.cont [11/16] 0.0, 128
      %1104 = vxpose.xlu0.b32.cont [12/16] 0.0, 128
      %1105 = vxpose.xlu0.b32.cont [13/16] 0.0, 128
      %1106 = vxpose.xlu0.b32.cont [14/16] 0.0, 128
      %1107 = vxpose.xlu0.b32.cont [15/16] 0.0, 128
      %1108 = vxpose.xlu0.b32.end [16/16] 0.0, 128
      %v1109 = vpop.trf.xlu0
      %v1110 = vpop.trf.xlu0
      %v1111 = vpop.trf.xlu0
      %v1112 = vpop.trf.xlu0
      %v1113 = vpop.trf.xlu0
      %v1114 = vpop.trf.xlu0
      %v1115 = vpop.trf.xlu0
      %v1116 = vpop.trf.xlu0
      %v1117 = vpop.trf.xlu0
      %v1118 = vpop.trf.xlu0
      %v1119 = vpop.trf.xlu0
      %v1120 = vpop.trf.xlu0
      %v1121 = vpop.trf.xlu0
      %v1122 = vpop.trf.xlu0
      %v1123 = vpop.trf.xlu0
      %v1124 = vpop.trf.xlu0
      %v1125 = vpack.c.bf16 %v1046, %v1045
      %v1126 = vpack.c.bf16 %v1078, %v1077
      %v1127 = vpack.c.bf16 %v1110, %v1109
      %v1131 = vunpack.c.l.b16 %v1125
      %v1132 = vunpack.c.l.b16 %v1126
      %v1133 = vunpack.c.l.b16 %v1127
      %v1134 = vunpack.c.h.b16 %v1125
      %v1135 = vunpack.c.h.b16 %v1126
      %v1136 = vunpack.c.h.b16 %v1127
      %v1137 = vpack.c.b16 %v1132, %v1131
      %v1138 = vpack.c.b16 %v1133, %v1133
      %v1139 = vpack.c.b16 %v1135, %v1134
      %v1140 = vpack.c.b16 %v1136, %v1136
      %1145 = vst [vmem:[%s206] sm:$0xff] %v1137
      %vm1146 = vcmask 257024
      %1147 = vst.msk [vmem:[%s206 + $0x8] sm:$0xf] %vm1146, %v1138
      %1148 = vst [vmem:[%s206 + $0xc] sm:$0xff] %v1139
      %1149 = vst.msk [vmem:[%s206 + $0x14] sm:$0xf] %vm1146, %v1140
      %p1150 = scmp.lt.s32.totalorder %s18, 1
      %s1151 = scalar_select %p1150, %s18, 1
      %p1152 = scmp.lt.s32.totalorder %s19, 0
      %s1153 = scalar_select %p1152, %s19, 0
      %s1154 = smul.addr %s1153, 6
      %s1155 = smul.addr %s1151, 6
      %s1156 = sadd.s32 %s1154, %s1155
      %s1157 = smul.addr %s1156, 4
      %s1158 = scalar_lea.vmem %s3, %s1157
      // Predicated region
      $region33: #{cnn_tempogram_forward.4} parent=31 // pred_check
        %p1159 = pneg %p116
      $region34: #{cnn_tempogram_forward.4} parent=31 // pred_check_branch
        %1161 = sbr.rel (%p1159) target = $region36
      $region35: #{cnn_tempogram_forward.4} parent=31 // pred_region
        _
      $region36: #{cnn_tempogram_forward.4} parent=31 // pred_fallthru
        _
    $region32: #{cnn_tempogram_forward.4} parent=5 // pred_fallthru
      _
    %p1162 = scmp.le.s32.totalorder 2, %s9
    // Predicated region
    $region37: #{cnn_tempogram_forward.4} parent=5 // pred_check
      %p1163 = pneg %p1162
    $region38: #{cnn_tempogram_forward.4} parent=5 // pred_check_branch
      %1165 = sbr.rel (%p1163) target = $region40
    $region39: #{cnn_tempogram_forward.4} parent=5 // pred_region
      %s1166 = ssub.s32 %s9, 2
      // Predicated region
      $region41: #{cnn_tempogram_forward.4} parent=39 // pred_check
        %p1167 = pneg %p122
      $region42: #{cnn_tempogram_forward.4} parent=39 // pred_check_branch
        %1169 = sbr.rel (%p1167) target = $region44
      $region43: #{cnn_tempogram_forward.4} parent=39 // pred_region
        %p1170 = scmp.lt.s32.totalorder %s20, 1
        %s1171 = scalar_select %p1170, %s20, 1
        %p1172 = scmp.lt.s32.totalorder %s21, 0
        %s1173 = scalar_select %p1172, %s21, 0
        %s1174 = smul.addr %s1173, 6
        %s1175 = smul.addr %s1171, 6
        %s1176 = sadd.s32 %s1174, %s1175
        %s1177 = smul.addr %s1176, 4
        %s1178 = scalar_lea.vmem %s3, %s1177
      $region44: #{cnn_tempogram_forward.4} parent=39 // pred_fallthru
        _
    $region40: #{cnn_tempogram_forward.4} parent=5 // pred_fallthru
      _
  $region6: #{cnn_tempogram_forward.4} parent=0 // loop_footer
    %s13 = sadd.s32 1, %s9
  $region7: #{cnn_tempogram_forward.4} parent=0 // loop_footer_branch
    %8 = sbr.rel target = $region3
  $region8: #{cnn_tempogram_forward.4} parent=0 // loop_exit
    _

// kernel: cnn_tempogram_forward.5
$region0: #{cnn_tempogram_forward.5}
  #allocation0 [shape = 'u32[]', space=smem, size = 0x4, offset = 0x4, fixed_abs, tag = 'smem constant byte address 0x4 - core index']
  #allocation1 [shape = 'u32[144,128]{1,0:T(1,128)}', space=vmem, size = 0x12000, scoped, tag = 'internal scratch']
  #allocation2 [shape = 'bf16[80,576]{1,0:T(16,128)(2,1)}', space=vmem, size = 0x19000, scoped, tag = 'scratch operand']
  %s0 = inlined_call_operand.vmem [shape: bf16[2,1,102,64], index: 0, kind: input, shape index: {}]
  %s1 = inlined_call_operand.vmem [shape: bf16[576,64], index: 1, kind: input, shape index: {}]
  %s2 = inlined_call_operand.vmem [shape: f32[1,16], index: 2, kind: input, shape index: {}]
  %s3 = inlined_call_operand.vmem [shape: bf16[2,1,16,80], index: 3, kind: output, shape index: {}]
  %s4 = sld [smem:[#allocation0]]
  $region45: #{cnn_tempogram_forward.5} parent=0
    _
  %s6 = ssub.s32 1, %s4
  %s7 = scalar_select 0, %s6, %s4
  loop: start=0, step=1, limit=4
  $region2: #{cnn_tempogram_forward.5} parent=0 // loop_pre_header
    _
  $region3: #{cnn_tempogram_forward.5} parent=0 // loop_header
    %s9 = sphi 0, %s13
    %p10 = scmp.ge.s32.totalorder %s9, 4
    %s16 = sphi 0, %s28
    %s17 = sphi 0, %s24
    %s18 = sphi 0, %s16
    %s19 = sphi 0, %s17
    %s20 = sphi 0, %s18
    %s21 = sphi 0, %s19
    %s33 = sphi 0, %s35
    %s36 = sphi 0, %s33
    %s37 = sphi 0, %s36
    %s53 = sphi 0, %s37
    %s57 = sphi 0, %s57
    %s59 = sphi 0, %s57
    %s60 = sphi 0, %s59
    %s74 = sphi 0, %s60
    %s78 = sphi 0, %s78
    %s80 = sphi 0, %s78
    %s81 = sphi 0, %s80
    %s95 = sphi 0, %s81
    %s103 = sphi 0, %s105
    %s106 = sphi 0, %s103
    %s107 = sphi 0, %s106
    %s123 = sphi 0, %s107
  $region4: #{cnn_tempogram_forward.5} parent=0 // loop_header_branch
    %12 = sbr.rel (%p10) target = $region8
  $region5: #{cnn_tempogram_forward.5} parent=0 // loop_body
    %s14 = ssub.s32 %s9, 1
    %s15 = ssub.s32 %s9, 2
    %s22 = sadd.s32 1, %s17
    %p23 = scmp.ge.s32.totalorder %s22, 1
    %s24 = scalar_select %p23, 0, %s22
    %s25 = sadd.s32 1, %s16
    %s26 = scalar_select %p23, %s25, %s16
    %p27 = scmp.ge.s32.totalorder %s26, 2
    %s28 = scalar_select %p27, 0, %s26
    %s29 = ssub.s32 %s16, %s28
    %s30 = ssub.s32 %s17, %s24
    %s31 = sor.u32 %s29, %s30
    %p32 = scmp.eq.s32.totalorder %s31, 0
    %s34 = sadd.s32 %s33, 1
    %s35 = scalar_select %p32, %s33, %s34
    %p38 = pneg %p32
    %p39 = scmp.eq.s32.totalorder %s9, 1
    %p40 = por %p38, %p39
    %p41 = scmp.ne.s32.totalorder %s33, %s36
    %p42 = scmp.eq.s32.totalorder %s9, 0
    %p43 = por %p41, %p42
    %p44 = scmp.ne.s32.totalorder %s33, %s36
    %p45 = scmp.eq.s32.totalorder %s14, 1
    %p46 = por %p44, %p45
    %p47 = scmp.ne.s32.totalorder %s36, %s37
    %p48 = scmp.eq.s32.totalorder %s14, 0
    %p49 = por %p47, %p48
    %p50 = scmp.ne.s32.totalorder %s36, %s37
    %p51 = scmp.eq.s32.totalorder %s15, 1
    %p52 = por %p50, %p51
    %p54 = scmp.ne.s32.totalorder %s37, %s53
    %p55 = scmp.eq.s32.totalorder %s15, 0
    %p56 = por %p54, %p55
    %s58 = sadd.s32 %s57, 1
    %p61 = scmp.eq.s32.totalorder %s9, 1
    %p62 = scmp.ne.s32.totalorder %s57, %s59
    %p63 = scmp.eq.s32.totalorder %s9, 0
    %p64 = por %p62, %p63
    %p65 = scmp.ne.s32.totalorder %s57, %s59
    %p66 = scmp.eq.s32.totalorder %s14, 1
    %p67 = por %p65, %p66
    %p68 = scmp.ne.s32.totalorder %s59, %s60
    %p69 = scmp.eq.s32.totalorder %s14, 0
    %p70 = por %p68, %p69
    %p71 = scmp.ne.s32.totalorder %s59, %s60
    %p72 = scmp.eq.s32.totalorder %s15, 1
    %p73 = por %p71, %p72
    %p75 = scmp.ne.s32.totalorder %s60, %s74
    %p76 = scmp.eq.s32.totalorder %s15, 0
    %p77 = por %p75, %p76
    %s79 = sadd.s32 %s78, 1
    %p82 = scmp.eq.s32.totalorder %s9, 1
    %p83 = scmp.ne.s32.totalorder %s78, %s80
    %p84 = scmp.eq.s32.totalorder %s9, 0
    %p85 = por %p83, %p84
    %p86 = scmp.ne.s32.totalorder %s78, %s80
    %p87 = scmp.eq.s32.totalorder %s14, 1
    %p88 = por %p86, %p87
    %p89 = scmp.ne.s32.totalorder %s80, %s81
    %p90 = scmp.eq.s32.totalorder %s14, 0
    %p91 = por %p89, %p90
    %p92 = scmp.ne.s32.totalorder %s80, %s81
    %p93 = scmp.eq.s32.totalorder %s15, 1
    %p94 = por %p92, %p93
    %p96 = scmp.ne.s32.totalorder %s81, %s95
    %p97 = scmp.eq.s32.totalorder %s15, 0
    %p98 = por %p96, %p97
    %s99 = ssub.s32 %s16, %s28
    %s100 = ssub.s32 %s17, %s24
    %s101 = sor.u32 %s99, %s100
    %p102 = scmp.eq.s32.totalorder %s101, 0
    %s104 = sadd.s32 %s103, 1
    %s105 = scalar_select %p102, %s103, %s104
    %p108 = pneg %p102
    %p109 = scmp.eq.s32.totalorder %s9, 1
    %p110 = por %p108, %p109
    %p111 = scmp.ne.s32.totalorder %s103, %s106
    %p112 = scmp.eq.s32.totalorder %s9, 0
    %p113 = por %p111, %p112
    %p114 = scmp.ne.s32.totalorder %s103, %s106
    %p115 = scmp.eq.s32.totalorder %s14, 1
    %p116 = por %p114, %p115
    %p117 = scmp.ne.s32.totalorder %s106, %s107
    %p118 = scmp.eq.s32.totalorder %s14, 0
    %p119 = por %p117, %p118
    %p120 = scmp.ne.s32.totalorder %s106, %s107
    %p121 = scmp.eq.s32.totalorder %s15, 1
    %p122 = por %p120, %p121
    %p124 = scmp.ne.s32.totalorder %s107, %s123
    %p125 = scmp.eq.s32.totalorder %s15, 0
    %p126 = por %p124, %p125
    %p127 = scmp.le.s32.totalorder 1, %s9
    %p128 = scmp.lt.s32.totalorder %s9, 3
    %p129 = pnand %p127, %p128
    %p130 = pneg %p129
    // Predicated region
    $region9: #{cnn_tempogram_forward.5} parent=5 // pred_check
      _
    $region10: #{cnn_tempogram_forward.5} parent=5 // pred_check_branch
      %132 = sbr.rel (%p129) target = $region12
    $region11: #{cnn_tempogram_forward.5} parent=5 // pred_region
      %s133 = ssub.s32 %s9, 1
      // Predicated region
      $region13: #{cnn_tempogram_forward.5} parent=11 // pred_check
        %p134 = pneg %p70
      $region14: #{cnn_tempogram_forward.5} parent=11 // pred_check_branch
        %136 = sbr.rel (%p134) target = $region16
      $region15: #{cnn_tempogram_forward.5} parent=11 // pred_region
        _
      $region16: #{cnn_tempogram_forward.5} parent=11 // pred_fallthru
        _
      // Predicated region
      $region17: #{cnn_tempogram_forward.5} parent=11 // pred_check
        %p137 = pneg %p91
      $region18: #{cnn_tempogram_forward.5} parent=11 // pred_check_branch
        %139 = sbr.rel (%p137) target = $region20
      $region19: #{cnn_tempogram_forward.5} parent=11 // pred_region
        _
      $region20: #{cnn_tempogram_forward.5} parent=11 // pred_fallthru
        _
    $region12: #{cnn_tempogram_forward.5} parent=5 // pred_fallthru
      _
    %p140 = scmp.lt.s32.totalorder %s9, 2
    // Predicated region
    $region21: #{cnn_tempogram_forward.5} parent=5 // pred_check
      %p141 = pneg %p140
    $region22: #{cnn_tempogram_forward.5} parent=5 // pred_check_branch
      %143 = sbr.rel (%p141) target = $region24
    $region23: #{cnn_tempogram_forward.5} parent=5 // pred_region
      // Predicated region
      $region25: #{cnn_tempogram_forward.5} parent=23 // pred_check
        %p144 = pneg %p43
      $region26: #{cnn_tempogram_forward.5} parent=23 // pred_check_branch
        %146 = sbr.rel (%p144) target = $region28
      $region27: #{cnn_tempogram_forward.5} parent=23 // pred_region
        %p147 = scmp.lt.s32.totalorder %s16, 1
        %s148 = scalar_select %p147, %s16, 1
        %p149 = scmp.lt.s32.totalorder %s17, 0
        %s150 = scalar_select %p149, %s17, 0
        %s151 = smul.addr %s150, 13
        %s152 = smul.addr %s148, 13
        %s153 = sadd.s32 %s151, %s152
        %s154 = smul.addr %s153, 4
        %s155 = scalar_lea.vmem %s0, %s154
      $region28: #{cnn_tempogram_forward.5} parent=23 // pred_fallthru
        _
    $region24: #{cnn_tempogram_forward.5} parent=5 // pred_fallthru
      _
    %p156 = scmp.le.s32.totalorder 1, %s9
    %p157 = scmp.lt.s32.totalorder %s9, 3
    %p158 = pnand %p156, %p157
    %p159 = pneg %p158
    // Predicated region
    $region29: #{cnn_tempogram_forward.5} parent=5 // pred_check
      _
    $region30: #{cnn_tempogram_forward.5} parent=5 // pred_check_branch
      %161 = sbr.rel (%p158) target = $region32
    $region31: #{cnn_tempogram_forward.5} parent=5 // pred_region
      %s162 = ssub.s32 %s9, 1
      %p163 = scmp.lt.s32.totalorder %s18, 1
      %s164 = scalar_select %p163, %s18, 1
      %p165 = scmp.lt.s32.totalorder %s19, 0
      %s166 = scalar_select %p165, %s19, 0
      %s167 = smul.addr %s166, 13
      %s168 = smul.addr %s164, 13
      %s169 = sadd.s32 %s167, %s168
      %s170 = smul.addr %s169, 4
      %s171 = scalar_lea.vmem %s0, %s170
      %p172 = pneg %p49
      %p173 = pneg %p46
      %p174 = pneg %p70
      %p175 = pneg %p67
      %p176 = pneg %p91
      %p177 = pneg %p88
      %p178 = pneg %p119
      %p179 = pneg %p116
      %p180 = scmp.lt.s32.totalorder %s18, 1
      %s181 = scalar_select %p180, %s18, 1
      %p182 = scmp.lt.s32.totalorder %s19, 0
      %s183 = scalar_select %p182, %s19, 0
      %s184 = smul.addr %s183, 2
      %s185 = smul.addr %s181, 2
      %s186 = sadd.s32 %s184, %s185
      %s187 = smul.addr %s186, 4
      %s188 = scalar_lea.vmem %s3, %s187
      %p189 = scmp.lt.s32.totalorder %s18, 1
      %s190 = scalar_select %p189, %s18, 1
      %p191 = scmp.lt.s32.totalorder %s19, 0
      %s192 = scalar_select %p191, %s19, 0
      %s193 = smul.addr %s192, 13
      %s194 = smul.addr %s190, 13
      %s195 = sadd.s32 %s193, %s194
      %s196 = smul.addr %s195, 4
      %s197 = scalar_lea.vmem %s0, %s196
      %p198 = scmp.lt.s32.totalorder %s18, 1
      %s199 = scalar_select %p198, %s18, 1
      %p200 = scmp.lt.s32.totalorder %s19, 0
      %s201 = scalar_select %p200, %s19, 0
      %s202 = smul.addr %s201, 2
      %s203 = smul.addr %s199, 2
      %s204 = sadd.s32 %s202, %s203
      %s205 = smul.addr %s204, 4
      %s206 = scalar_lea.vmem %s3, %s205
      %v208 = vld [vmem:[%s197] sm:$0xf]
      %v209 = vld [vmem:[%s197 + $0x4] sm:$0xf]
      %v210 = vld [vmem:[%s197 + $0x8] sm:$0xf]
      %v211 = vld [vmem:[%s197 + $0xc] sm:$0xf]
      %v212 = vld [vmem:[%s197 + $0x10] sm:$0xf]
      %v213 = vld [vmem:[%s197 + $0x14] sm:$0xf]
      %v214 = vld [vmem:[%s197 + $0x18] sm:$0xf]
      %v215 = vld [vmem:[%s197 + $0x1c] sm:$0xf]
      %v216 = vld [vmem:[%s197 + $0x20] sm:$0xf]
      %v217 = vld [vmem:[%s197 + $0x24] sm:$0xf]
      %v228 = vunpack.c.l.b16 %v208
      %v229 = vunpack.c.l.b16 %v209
      %v230 = vunpack.c.l.b16 %v210
      %v231 = vunpack.c.l.b16 %v211
      %v232 = vunpack.c.l.b16 %v212
      %v233 = vunpack.c.l.b16 %v213
      %v234 = vunpack.c.l.b16 %v214
      %v235 = vunpack.c.l.b16 %v215
      %v236 = vunpack.c.l.b16 %v216
      %v237 = vunpack.c.l.b16 %v217
      %v238 = vpack.c.b16 %v229, %v228
      %v239 = vpack.c.b16 %v231, %v230
      %v240 = vpack.c.b16 %v233, %v232
      %v241 = vpack.c.b16 %v235, %v234
      %v242 = vpack.c.b16 %v237, %v236
      %vm248 = vcmask 523264
      %249 = vst.msk [vmem:[#allocation2] sm:$0xff] %vm248, %v238
      %250 = vst.msk [vmem:[#allocation2 + $0x28] sm:$0xff] %vm248, %v239
      %251 = vst.msk [vmem:[#allocation2 + $0x50] sm:$0xff] %vm248, %v240
      %252 = vst.msk [vmem:[#allocation2 + $0x78] sm:$0xff] %vm248, %v241
      %253 = vst.msk [vmem:[#allocation2 + $0xa0] sm:$0xff] %vm248, %v242
      %v254 = vld [vmem:[%s197] sm:$0xf]
      %v255 = vld [vmem:[%s197 + $0x4] sm:$0xf]
      %v256 = vld [vmem:[%s197 + $0x8] sm:$0xf]
      %v257 = vld [vmem:[%s197 + $0xc] sm:$0xf]
      %v258 = vld [vmem:[%s197 + $0x10] sm:$0xf]
      %v259 = vld [vmem:[%s197 + $0x14] sm:$0xf]
      %v260 = vld [vmem:[%s197 + $0x18] sm:$0xf]
      %v261 = vld [vmem:[%s197 + $0x1c] sm:$0xf]
      %v262 = vld [vmem:[%s197 + $0x20] sm:$0xf]
      %v263 = vld [vmem:[%s197 + $0x24] sm:$0xf]
      %v264 = vld [vmem:[%s197 + $0x28] sm:$0x1]
      %v276 = vunpack.c.l.b16 %v254
      %v277 = vunpack.c.l.b16 %v255
      %v278 = vunpack.c.l.b16 %v256
      %v279 = vunpack.c.l.b16 %v257
      %v280 = vunpack.c.l.b16 %v258
      %v281 = vunpack.c.l.b16 %v259
      %v282 = vunpack.c.l.b16 %v260
      %v283 = vunpack.c.l.b16 %v261
      %v284 = vunpack.c.l.b16 %v262
      %v285 = vunpack.c.l.b16 %v263
      %v286 = vunpack.c.l.b16 %v264
      %v287 = vpack.c.b16 %v277, %v276
      %v288 = vpack.c.b16 %v279, %v278
      %v289 = vpack.c.b16 %v281, %v280
      %v290 = vpack.c.b16 %v283, %v282
      %v291 = vpack.c.b16 %v285, %v284
      %v292 = vpack.c.b16 %v286, %v286
      %vm293 = vsmask.f32 7424
      %v295 = vshrl.u32 %v287, 16
      %v297 = vshll.u32 %v287, 16
      %v299 = vrot.slane %v297, 1
      %v300 = vor.u32 %v295, %v299
      %v302 = vshll.u32 %v288, 16
      %v304 = vrot.slane %v302, 1
      %v305 = vsel %vm293, %v300, %v304
      %v306 = vshrl.u32 %v288, 16
      %v308 = vor.u32 %v306, %v304
      %v310 = vshll.u32 %v289, 16
      %v312 = vrot.slane %v310, 1
      %v313 = vsel %vm293, %v308, %v312
      %v314 = vshrl.u32 %v289, 16
      %v316 = vor.u32 %v314, %v312
      %v318 = vshll.u32 %v290, 16
      %v320 = vrot.slane %v318, 1
      %v321 = vsel %vm293, %v316, %v320
      %v322 = vshrl.u32 %v290, 16
      %v324 = vor.u32 %v322, %v320
      %v326 = vshll.u32 %v291, 16
      %v328 = vrot.slane %v326, 1
      %v329 = vsel %vm293, %v324, %v328
      %v330 = vshrl.u32 %v291, 16
      %v332 = vor.u32 %v330, %v328
      %v334 = vshll.u32 %v292, 16
      %v336 = vrot.slane %v334, 1
      %v337 = vsel %vm293, %v332, %v336
      %338 = vrot.lane.b32.xlu0 %v305, 64
      %v339 = vpop.permute.xlu0 %338
      %340 = vrot.lane.b32.xlu0 %v313, 64
      %v341 = vpop.permute.xlu0 %340
      %342 = vrot.lane.b32.xlu0 %v321, 64
      %v343 = vpop.permute.xlu0 %342
      %344 = vrot.lane.b32.xlu0 %v329, 64
      %v345 = vpop.permute.xlu0 %344
      %346 = vrot.lane.b32.xlu0 %v337, 64
      %v347 = vpop.permute.xlu0 %346
      %vm353 = vcmask 1048064
      %354 = vst.msk [vmem:[#allocation2] sm:$0xff] %vm353, %v339
      %355 = vst.msk [vmem:[#allocation2 + $0x28] sm:$0xff] %vm353, %v341
      %356 = vst.msk [vmem:[#allocation2 + $0x50] sm:$0xff] %vm353, %v343
      %357 = vst.msk [vmem:[#allocation2 + $0x78] sm:$0xff] %vm353, %v345
      %358 = vst.msk [vmem:[#allocation2 + $0xa0] sm:$0xff] %vm353, %v347
      %v359 = vld [vmem:[%s197] sm:$0xe]
      %v360 = vld [vmem:[%s197 + $0x4] sm:$0xf]
      %v361 = vld [vmem:[%s197 + $0x8] sm:$0xf]
      %v362 = vld [vmem:[%s197 + $0xc] sm:$0xf]
      %v363 = vld [vmem:[%s197 + $0x10] sm:$0xf]
      %v364 = vld [vmem:[%s197 + $0x14] sm:$0xf]
      %v365 = vld [vmem:[%s197 + $0x18] sm:$0xf]
      %v366 = vld [vmem:[%s197 + $0x1c] sm:$0xf]
      %v367 = vld [vmem:[%s197 + $0x20] sm:$0xf]
      %v368 = vld [vmem:[%s197 + $0x24] sm:$0xf]
      %v369 = vld [vmem:[%s197 + $0x28] sm:$0x1]
      %v381 = vunpack.c.l.b16 %v359
      %v382 = vunpack.c.l.b16 %v360
      %v383 = vunpack.c.l.b16 %v361
      %v384 = vunpack.c.l.b16 %v362
      %v385 = vunpack.c.l.b16 %v363
      %v386 = vunpack.c.l.b16 %v364
      %v387 = vunpack.c.l.b16 %v365
      %v388 = vunpack.c.l.b16 %v366
      %v389 = vunpack.c.l.b16 %v367
      %v390 = vunpack.c.l.b16 %v368
      %v391 = vunpack.c.l.b16 %v369
      %v392 = vpack.c.b16 %v382, %v381
      %v393 = vpack.c.b16 %v384, %v383
      %v394 = vpack.c.b16 %v386, %v385
      %v395 = vpack.c.b16 %v388, %v387
      %v396 = vpack.c.b16 %v390, %v389
      %v397 = vpack.c.b16 %v391, %v391
      %vm398 = vcmask 1046528
      %v399 = vrot.slane %v392, 1
      %v400 = vrot.slane %v393, 1
      %v401 = vsel %vm398, %v399, %v400
      %v402 = vrot.slane %v394, 1
      %v403 = vsel %vm398, %v400, %v402
      %v404 = vrot.slane %v395, 1
      %v405 = vsel %vm398, %v402, %v404
      %v406 = vrot.slane %v396, 1
      %v407 = vsel %vm398, %v404, %v406
      %v408 = vrot.slane %v397, 1
      %v409 = vsel %vm398, %v406, %v408
      %415 = vst.msk [vmem:[#allocation2 + $0x8] sm:$0xff] %vm248, %v401
      %416 = vst.msk [vmem:[#allocation2 + $0x30] sm:$0xff] %vm248, %v403
      %417 = vst.msk [vmem:[#allocation2 + $0x58] sm:$0xff] %vm248, %v405
      %418 = vst.msk [vmem:[#allocation2 + $0x80] sm:$0xff] %vm248, %v407
      %419 = vst.msk [vmem:[#allocation2 + $0xa8] sm:$0xff] %vm248, %v409
      %v420 = vld [vmem:[%s197 + $0x4] sm:$0xe]
      %v421 = vld [vmem:[%s197 + $0x8] sm:$0xf]
      %v422 = vld [vmem:[%s197 + $0xc] sm:$0xf]
      %v423 = vld [vmem:[%s197 + $0x10] sm:$0xf]
      %v424 = vld [vmem:[%s197 + $0x14] sm:$0xf]
      %v425 = vld [vmem:[%s197 + $0x18] sm:$0xf]
      %v426 = vld [vmem:[%s197 + $0x1c] sm:$0xf]
      %v427 = vld [vmem:[%s197 + $0x20] sm:$0xf]
      %v428 = vld [vmem:[%s197 + $0x24] sm:$0xf]
      %v429 = vld [vmem:[%s197 + $0x28] sm:$0xf]
      %v430 = vld [vmem:[%s197 + $0x2c] sm:$0x1]
      %v442 = vunpack.c.l.b16 %v420
      %v443 = vunpack.c.l.b16 %v421
      %v444 = vunpack.c.l.b16 %v422
      %v445 = vunpack.c.l.b16 %v423
      %v446 = vunpack.c.l.b16 %v424
      %v447 = vunpack.c.l.b16 %v425
      %v448 = vunpack.c.l.b16 %v426
      %v449 = vunpack.c.l.b16 %v427
      %v450 = vunpack.c.l.b16 %v428
      %v451 = vunpack.c.l.b16 %v429
      %v452 = vunpack.c.l.b16 %v430
      %v453 = vpack.c.b16 %v443, %v442
      %v454 = vpack.c.b16 %v445, %v444
      %v455 = vpack.c.b16 %v447, %v446
      %v456 = vpack.c.b16 %v449, %v448
      %v457 = vpack.c.b16 %v451, %v450
      %v458 = vpack.c.b16 %v452, %v452
      %v459 = vrot.slane %v453, 1
      %v460 = vrot.slane %v454, 1
      %v461 = vsel %vm398, %v459, %v460
      %v462 = vrot.slane %v455, 1
      %v463 = vsel %vm398, %v460, %v462
      %v464 = vrot.slane %v456, 1
      %v465 = vsel %vm398, %v462, %v464
      %v466 = vrot.slane %v457, 1
      %v467 = vsel %vm398, %v464, %v466
      %v468 = vrot.slane %v458, 1
      %v469 = vsel %vm398, %v466, %v468
      %470 = vrot.lane.b32.xlu0 %v461, 64
      %v471 = vpop.permute.xlu0 %470
      %472 = vrot.lane.b32.xlu0 %v463, 64
      %v473 = vpop.permute.xlu0 %472
      %474 = vrot.lane.b32.xlu0 %v465, 64
      %v475 = vpop.permute.xlu0 %474
      %476 = vrot.lane.b32.xlu0 %v467, 64
      %v477 = vpop.permute.xlu0 %476
      %478 = vrot.lane.b32.xlu0 %v469, 64
      %v479 = vpop.permute.xlu0 %478
      %485 = vst.msk [vmem:[#allocation2 + $0x8] sm:$0xff] %vm353, %v471
      %486 = vst.msk [vmem:[#allocation2 + $0x30] sm:$0xff] %vm353, %v473
      %487 = vst.msk [vmem:[#allocation2 + $0x58] sm:$0xff] %vm353, %v475
      %488 = vst.msk [vmem:[#allocation2 + $0x80] sm:$0xff] %vm353, %v477
      %489 = vst.msk [vmem:[#allocation2 + $0xa8] sm:$0xff] %vm353, %v479
      %v490 = vld [vmem:[%s197 + $0x4] sm:$0xe]
      %v491 = vld [vmem:[%s197 + $0x8] sm:$0xf]
      %v492 = vld [vmem:[%s197 + $0xc] sm:$0xf]
      %v493 = vld [vmem:[%s197 + $0x10] sm:$0xf]
      %v494 = vld [vmem:[%s197 + $0x14] sm:$0xf]
      %v495 = vld [vmem:[%s197 + $0x18] sm:$0xf]
      %v496 = vld [vmem:[%s197 + $0x1c] sm:$0xf]
      %v497 = vld [vmem:[%s197 + $0x20] sm:$0xf]
      %v498 = vld [vmem:[%s197 + $0x24] sm:$0xf]
      %v499 = vld [vmem:[%s197 + $0x28] sm:$0xf]
      %v500 = vld [vmem:[%s197 + $0x2c] sm:$0x3]
      %v512 = vunpack.c.l.b16 %v490
      %v513 = vunpack.c.l.b16 %v491
      %v514 = vunpack.c.l.b16 %v492
      %v515 = vunpack.c.l.b16 %v493
      %v516 = vunpack.c.l.b16 %v494
      %v517 = vunpack.c.l.b16 %v495
      %v518 = vunpack.c.l.b16 %v496
      %v519 = vunpack.c.l.b16 %v497
      %v520 = vunpack.c.l.b16 %v498
      %v521 = vunpack.c.l.b16 %v499
      %v522 = vunpack.c.l.b16 %v500
      %v523 = vpack.c.b16 %v513, %v512
      %v524 = vpack.c.b16 %v515, %v514
      %v525 = vpack.c.b16 %v517, %v516
      %v526 = vpack.c.b16 %v519, %v518
      %v527 = vpack.c.b16 %v521, %v520
      %v528 = vpack.c.b16 %v522, %v522
      %vm529 = vsmask.f32 6400
      %v531 = vshrl.u32 %v523, 16
      %v533 = vrot.slane %v531, 1
      %v534 = vshll.u32 %v523, 16
      %v536 = vrot.slane %v534, 2
      %v537 = vor.u32 %v533, %v536
      %v539 = vshrl.u32 %v524, 16
      %v541 = vrot.slane %v539, 1
      %v542 = vshll.u32 %v524, 16
      %v544 = vrot.slane %v542, 2
      %v545 = vor.u32 %v541, %v544
      %v546 = vsel %vm529, %v537, %v545
      %v548 = vshrl.u32 %v525, 16
      %v550 = vrot.slane %v548, 1
      %v551 = vshll.u32 %v525, 16
      %v553 = vrot.slane %v551, 2
      %v554 = vor.u32 %v550, %v553
      %v555 = vsel %vm529, %v545, %v554
      %v557 = vshrl.u32 %v526, 16
      %v559 = vrot.slane %v557, 1
      %v560 = vshll.u32 %v526, 16
      %v562 = vrot.slane %v560, 2
      %v563 = vor.u32 %v559, %v562
      %v564 = vsel %vm529, %v554, %v563
      %v566 = vshrl.u32 %v527, 16
      %v568 = vrot.slane %v566, 1
      %v569 = vshll.u32 %v527, 16
      %v571 = vrot.slane %v569, 2
      %v572 = vor.u32 %v568, %v571
      %v573 = vsel %vm529, %v563, %v572
      %v575 = vshrl.u32 %v528, 16
      %v577 = vrot.slane %v575, 1
      %v578 = vshll.u32 %v528, 16
      %v580 = vrot.slane %v578, 2
      %v581 = vor.u32 %v577, %v580
      %v582 = vsel %vm529, %v572, %v581
      %588 = vst.msk [vmem:[#allocation2 + $0x10] sm:$0xff] %vm248, %v546
      %589 = vst.msk [vmem:[#allocation2 + $0x38] sm:$0xff] %vm248, %v555
      %590 = vst.msk [vmem:[#allocation2 + $0x60] sm:$0xff] %vm248, %v564
      %591 = vst.msk [vmem:[#allocation2 + $0x88] sm:$0xff] %vm248, %v573
      %592 = vst.msk [vmem:[#allocation2 + $0xb0] sm:$0xff] %vm248, %v582
      %v593 = vld [vmem:[%s197 + $0x4] sm:$0xc]
      %v594 = vld [vmem:[%s197 + $0x8] sm:$0xf]
      %v595 = vld [vmem:[%s197 + $0xc] sm:$0xf]
      %v596 = vld [vmem:[%s197 + $0x10] sm:$0xf]
      %v597 = vld [vmem:[%s197 + $0x14] sm:$0xf]
      %v598 = vld [vmem:[%s197 + $0x18] sm:$0xf]
      %v599 = vld [vmem:[%s197 + $0x1c] sm:$0xf]
      %v600 = vld [vmem:[%s197 + $0x20] sm:$0xf]
      %v601 = vld [vmem:[%s197 + $0x24] sm:$0xf]
      %v602 = vld [vmem:[%s197 + $0x28] sm:$0xf]
      %v603 = vld [vmem:[%s197 + $0x2c] sm:$0x3]
      %v615 = vunpack.c.l.b16 %v593
      %v616 = vunpack.c.l.b16 %v594
      %v617 = vunpack.c.l.b16 %v595
      %v618 = vunpack.c.l.b16 %v596
      %v619 = vunpack.c.l.b16 %v597
      %v620 = vunpack.c.l.b16 %v598
      %v621 = vunpack.c.l.b16 %v599
      %v622 = vunpack.c.l.b16 %v600
      %v623 = vunpack.c.l.b16 %v601
      %v624 = vunpack.c.l.b16 %v602
      %v625 = vunpack.c.l.b16 %v603
      %v626 = vpack.c.b16 %v616, %v615
      %v627 = vpack.c.b16 %v618, %v617
      %v628 = vpack.c.b16 %v620, %v619
      %v629 = vpack.c.b16 %v622, %v621
      %v630 = vpack.c.b16 %v624, %v623
      %v631 = vpack.c.b16 %v625, %v625
      %vm632 = vcmask 1045504
      %v633 = vrot.slane %v626, 2
      %v634 = vrot.slane %v627, 2
      %v635 = vsel %vm632, %v633, %v634
      %v636 = vrot.slane %v628, 2
      %v637 = vsel %vm632, %v634, %v636
      %v638 = vrot.slane %v629, 2
      %v639 = vsel %vm632, %v636, %v638
      %v640 = vrot.slane %v630, 2
      %v641 = vsel %vm632, %v638, %v640
      %v642 = vrot.slane %v631, 2
      %v643 = vsel %vm632, %v640, %v642
      %644 = vrot.lane.b32.xlu0 %v635, 64
      %v645 = vpop.permute.xlu0 %644
      %646 = vrot.lane.b32.xlu0 %v637, 64
      %v647 = vpop.permute.xlu0 %646
      %648 = vrot.lane.b32.xlu0 %v639, 64
      %v649 = vpop.permute.xlu0 %648
      %650 = vrot.lane.b32.xlu0 %v641, 64
      %v651 = vpop.permute.xlu0 %650
      %652 = vrot.lane.b32.xlu0 %v643, 64
      %v653 = vpop.permute.xlu0 %652
      %659 = vst.msk [vmem:[#allocation2 + $0x10] sm:$0xff] %vm353, %v645
      %660 = vst.msk [vmem:[#allocation2 + $0x38] sm:$0xff] %vm353, %v647
      %661 = vst.msk [vmem:[#allocation2 + $0x60] sm:$0xff] %vm353, %v649
      %662 = vst.msk [vmem:[#allocation2 + $0x88] sm:$0xff] %vm353, %v651
      %663 = vst.msk [vmem:[#allocation2 + $0xb0] sm:$0xff] %vm353, %v653
      %v664 = vld [vmem:[%s197 + $0x8] sm:$0xc]
      %v665 = vld [vmem:[%s197 + $0xc] sm:$0xf]
      %v666 = vld [vmem:[%s197 + $0x10] sm:$0xf]
      %v667 = vld [vmem:[%s197 + $0x14] sm:$0xf]
      %v668 = vld [vmem:[%s197 + $0x18] sm:$0xf]
      %v669 = vld [vmem:[%s197 + $0x1c] sm:$0xf]
      %v670 = vld [vmem:[%s197 + $0x20] sm:$0xf]
      %v671 = vld [vmem:[%s197 + $0x24] sm:$0xf]
      %v672 = vld [vmem:[%s197 + $0x28] sm:$0xf]
      %v673 = vld [vmem:[%s197 + $0x2c] sm:$0xf]
      %v674 = vld [vmem:[%s197 + $0x30] sm:$0x3]
      %v686 = vunpack.c.l.b16 %v664
      %v687 = vunpack.c.l.b16 %v665
      %v688 = vunpack.c.l.b16 %v666
      %v689 = vunpack.c.l.b16 %v667
      %v690 = vunpack.c.l.b16 %v668
      %v691 = vunpack.c.l.b16 %v669
      %v692 = vunpack.c.l.b16 %v670
      %v693 = vunpack.c.l.b16 %v671
      %v694 = vunpack.c.l.b16 %v672
      %v695 = vunpack.c.l.b16 %v673
      %v696 = vunpack.c.l.b16 %v674
      %v697 = vpack.c.b16 %v687, %v686
      %v698 = vpack.c.b16 %v689, %v688
      %v699 = vpack.c.b16 %v691, %v690
      %v700 = vpack.c.b16 %v693, %v692
      %v701 = vpack.c.b16 %v695, %v694
      %v702 = vpack.c.b16 %v696, %v696
      %v703 = vrot.slane %v697, 2
      %v704 = vrot.slane %v698, 2
      %v705 = vsel %vm632, %v703, %v704
      %v706 = vrot.slane %v699, 2
      %v707 = vsel %vm632, %v704, %v706
      %v708 = vrot.slane %v700, 2
      %v709 = vsel %vm632, %v706, %v708
      %v710 = vrot.slane %v701, 2
      %v711 = vsel %vm632, %v708, %v710
      %v712 = vrot.slane %v702, 2
      %v713 = vsel %vm632, %v710, %v712
      %719 = vst.msk [vmem:[#allocation2 + $0x18] sm:$0xff] %vm248, %v705
      %720 = vst.msk [vmem:[#allocation2 + $0x40] sm:$0xff] %vm248, %v707
      %721 = vst.msk [vmem:[#allocation2 + $0x68] sm:$0xff] %vm248, %v709
      %722 = vst.msk [vmem:[#allocation2 + $0x90] sm:$0xff] %vm248, %v711
      %723 = vst.msk [vmem:[#allocation2 + $0xb8] sm:$0xff] %vm248, %v713
      %v724 = vld [vmem:[%s197 + $0x8] sm:$0xc]
      %v725 = vld [vmem:[%s197 + $0xc] sm:$0xf]
      %v726 = vld [vmem:[%s197 + $0x10] sm:$0xf]
      %v727 = vld [vmem:[%s197 + $0x14] sm:$0xf]
      %v728 = vld [vmem:[%s197 + $0x18] sm:$0xf]
      %v729 = vld [vmem:[%s197 + $0x1c] sm:$0xf]
      %v730 = vld [vmem:[%s197 + $0x20] sm:$0xf]
      %v731 = vld [vmem:[%s197 + $0x24] sm:$0xf]
      %v732 = vld [vmem:[%s197 + $0x28] sm:$0xf]
      %v733 = vld [vmem:[%s197 + $0x2c] sm:$0xf]
      %v734 = vld [vmem:[%s197 + $0x30] sm:$0x7]
      %v746 = vunpack.c.l.b16 %v724
      %v747 = vunpack.c.l.b16 %v725
      %v748 = vunpack.c.l.b16 %v726
      %v749 = vunpack.c.l.b16 %v727
      %v750 = vunpack.c.l.b16 %v728
      %v751 = vunpack.c.l.b16 %v729
      %v752 = vunpack.c.l.b16 %v730
      %v753 = vunpack.c.l.b16 %v731
      %v754 = vunpack.c.l.b16 %v732
      %v755 = vunpack.c.l.b16 %v733
      %v756 = vunpack.c.l.b16 %v734
      %v757 = vpack.c.b16 %v747, %v746
      %v758 = vpack.c.b16 %v749, %v748
      %v759 = vpack.c.b16 %v751, %v750
      %v760 = vpack.c.b16 %v753, %v752
      %v761 = vpack.c.b16 %v755, %v754
      %v762 = vpack.c.b16 %v756, %v756
      %vm763 = vsmask.f32 5376
      %v765 = vshrl.u32 %v757, 16
      %v767 = vrot.slane %v765, 2
      %v768 = vshll.u32 %v757, 16
      %v770 = vrot.slane %v768, 3
      %v771 = vor.u32 %v767, %v770
      %v773 = vshrl.u32 %v758, 16
      %v775 = vrot.slane %v773, 2
      %v776 = vshll.u32 %v758, 16
      %v778 = vrot.slane %v776, 3
      %v779 = vor.u32 %v775, %v778
      %v780 = vsel %vm763, %v771, %v779
      %v782 = vshrl.u32 %v759, 16
      %v784 = vrot.slane %v782, 2
      %v785 = vshll.u32 %v759, 16
      %v787 = vrot.slane %v785, 3
      %v788 = vor.u32 %v784, %v787
      %v789 = vsel %vm763, %v779, %v788
      %v791 = vshrl.u32 %v760, 16
      %v793 = vrot.slane %v791, 2
      %v794 = vshll.u32 %v760, 16
      %v796 = vrot.slane %v794, 3
      %v797 = vor.u32 %v793, %v796
      %v798 = vsel %vm763, %v788, %v797
      %v800 = vshrl.u32 %v761, 16
      %v802 = vrot.slane %v800, 2
      %v803 = vshll.u32 %v761, 16
      %v805 = vrot.slane %v803, 3
      %v806 = vor.u32 %v802, %v805
      %v807 = vsel %vm763, %v797, %v806
      %v809 = vshrl.u32 %v762, 16
      %v811 = vrot.slane %v809, 2
      %v812 = vshll.u32 %v762, 16
      %v814 = vrot.slane %v812, 3
      %v815 = vor.u32 %v811, %v814
      %v816 = vsel %vm763, %v806, %v815
      %817 = vrot.lane.b32.xlu0 %v780, 64
      %v818 = vpop.permute.xlu0 %817
      %819 = vrot.lane.b32.xlu0 %v789, 64
      %v820 = vpop.permute.xlu0 %819
      %821 = vrot.lane.b32.xlu0 %v798, 64
      %v822 = vpop.permute.xlu0 %821
      %823 = vrot.lane.b32.xlu0 %v807, 64
      %v824 = vpop.permute.xlu0 %823
      %825 = vrot.lane.b32.xlu0 %v816, 64
      %v826 = vpop.permute.xlu0 %825
      %832 = vst.msk [vmem:[#allocation2 + $0x18] sm:$0xff] %vm353, %v818
      %833 = vst.msk [vmem:[#allocation2 + $0x40] sm:$0xff] %vm353, %v820
      %834 = vst.msk [vmem:[#allocation2 + $0x68] sm:$0xff] %vm353, %v822
      %835 = vst.msk [vmem:[#allocation2 + $0x90] sm:$0xff] %vm353, %v824
      %836 = vst.msk [vmem:[#allocation2 + $0xb8] sm:$0xff] %vm353, %v826
      %v837 = vld [vmem:[%s197 + $0x8] sm:$0x8]
      %v838 = vld [vmem:[%s197 + $0xc] sm:$0xf]
      %v839 = vld [vmem:[%s197 + $0x10] sm:$0xf]
      %v840 = vld [vmem:[%s197 + $0x14] sm:$0xf]
      %v841 = vld [vmem:[%s197 + $0x18] sm:$0xf]
      %v842 = vld [vmem:[%s197 + $0x1c] sm:$0xf]
      %v843 = vld [vmem:[%s197 + $0x20] sm:$0xf]
      %v844 = vld [vmem:[%s197 + $0x24] sm:$0xf]
      %v845 = vld [vmem:[%s197 + $0x28] sm:$0xf]
      %v846 = vld [vmem:[%s197 + $0x2c] sm:$0xf]
      %v847 = vld [vmem:[%s197 + $0x30] sm:$0x7]
      %v859 = vunpack.c.l.b16 %v837
      %v860 = vunpack.c.l.b16 %v838
      %v861 = vunpack.c.l.b16 %v839
      %v862 = vunpack.c.l.b16 %v840
      %v863 = vunpack.c.l.b16 %v841
      %v864 = vunpack.c.l.b16 %v842
      %v865 = vunpack.c.l.b16 %v843
      %v866 = vunpack.c.l.b16 %v844
      %v867 = vunpack.c.l.b16 %v845
      %v868 = vunpack.c.l.b16 %v846
      %v869 = vunpack.c.l.b16 %v847
      %v870 = vpack.c.b16 %v860, %v859
      %v871 = vpack.c.b16 %v862, %v861
      %v872 = vpack.c.b16 %v864, %v863
      %v873 = vpack.c.b16 %v866, %v865
      %v874 = vpack.c.b16 %v868, %v867
      %v875 = vpack.c.b16 %v869, %v869
      %vm876 = vcmask 1044480
      %v877 = vrot.slane %v870, 3
      %v878 = vrot.slane %v871, 3
      %v879 = vsel %vm876, %v877, %v878
      %v880 = vrot.slane %v872, 3
      %v881 = vsel %vm876, %v878, %v880
      %v882 = vrot.slane %v873, 3
      %v883 = vsel %vm876, %v880, %v882
      %v884 = vrot.slane %v874, 3
      %v885 = vsel %vm876, %v882, %v884
      %v886 = vrot.slane %v875, 3
      %v887 = vsel %vm876, %v884, %v886
      %893 = vst.msk [vmem:[#allocation2 + $0x20] sm:$0xff] %vm248, %v879
      %894 = vst.msk [vmem:[#allocation2 + $0x48] sm:$0xff] %vm248, %v881
      %895 = vst.msk [vmem:[#allocation2 + $0x70] sm:$0xff] %vm248, %v883
      %896 = vst.msk [vmem:[#allocation2 + $0x98] sm:$0xff] %vm248, %v885
      %897 = vst.msk [vmem:[#allocation2 + $0xc0] sm:$0xff] %vm248, %v887
      %v898 = vld [vmem:[#allocation2] sm:$0xff]
      %v899 = vld [vmem:[#allocation2 + $0x8] sm:$0xff]
      %v900 = vld [vmem:[#allocation2 + $0x10] sm:$0xff]
      %v901 = vld [vmem:[#allocation2 + $0x18] sm:$0xff]
      %v902 = vld [vmem:[#allocation2 + $0x20] sm:$0xff]
      %v903 = vld [vmem:[#allocation2 + $0x28] sm:$0xff]
      %v904 = vld [vmem:[#allocation2 + $0x30] sm:$0xff]
      %v905 = vld [vmem:[#allocation2 + $0x38] sm:$0xff]
      %v906 = vld [vmem:[#allocation2 + $0x40] sm:$0xff]
      %v907 = vld [vmem:[#allocation2 + $0x48] sm:$0xff]
      %v908 = vld [vmem:[#allocation2 + $0x50] sm:$0xff]
      %v909 = vld [vmem:[#allocation2 + $0x58] sm:$0xff]
      %v910 = vld [vmem:[#allocation2 + $0x60] sm:$0xff]
      %v911 = vld [vmem:[#allocation2 + $0x68] sm:$0xff]
      %v912 = vld [vmem:[#allocation2 + $0x70] sm:$0xff]
      %v913 = vld [vmem:[#allocation2 + $0x78] sm:$0xff]
      %v914 = vld [vmem:[#allocation2 + $0x80] sm:$0xff]
      %v915 = vld [vmem:[#allocation2 + $0x88] sm:$0xff]
      %v916 = vld [vmem:[#allocation2 + $0x90] sm:$0xff]
      %v917 = vld [vmem:[#allocation2 + $0x98] sm:$0xff]
      %v918 = vld [vmem:[#allocation2 + $0xa0] sm:$0xff]
      %v919 = vld [vmem:[#allocation2 + $0xa8] sm:$0xff]
      %v920 = vld [vmem:[#allocation2 + $0xb0] sm:$0xff]
      %v921 = vld [vmem:[#allocation2 + $0xb8] sm:$0xff]
      %v922 = vld [vmem:[#allocation2 + $0xc0] sm:$0xff]
      %v923 = vld [vmem:[%s1] sm:$0xf]
      %v924 = vld [vmem:[%s1 + $0x4] sm:$0xf]
      %v925 = vld [vmem:[%s1 + $0x8] sm:$0xf]
      %v926 = vld [vmem:[%s1 + $0xc] sm:$0xf]
      %v927 = vld [vmem:[%s1 + $0x10] sm:$0xf]
      %v928 = vld [vmem:[%s1 + $0x14] sm:$0xf]
      %v929 = vld [vmem:[%s1 + $0x18] sm:$0xf]
      %v930 = vld [vmem:[%s1 + $0x1c] sm:$0xf]
      %v931 = vld [vmem:[%s1 + $0x20] sm:$0xf]
      %v932 = vld [vmem:[%s1 + $0x24] sm:$0xf]
      %v933 = vld [vmem:[%s1 + $0x28] sm:$0xf]
      %v934 = vld [vmem:[%s1 + $0x2c] sm:$0xf]
      %v935 = vld [vmem:[%s1 + $0x30] sm:$0xf]
      %v936 = vld [vmem:[%s1 + $0x34] sm:$0xf]
      %v937 = vld [vmem:[%s1 + $0x38] sm:$0xf]
      %v938 = vld [vmem:[%s1 + $0x3c] sm:$0xf]
      %v939 = vld [vmem:[%s1 + $0x40] sm:$0xf]
      %v940 = vld [vmem:[%s1 + $0x44] sm:$0xf]
      %v941 = vld [vmem:[%s1 + $0x48] sm:$0xf]
      %v942 = vld [vmem:[%s1 + $0x4c] sm:$0xf]
      %v943 = vld [vmem:[%s1 + $0x50] sm:$0xf]
      %v944 = vld [vmem:[%s1 + $0x54] sm:$0xf]
      %v945 = vld [vmem:[%s1 + $0x58] sm:$0xf]
      %v946 = vld [vmem:[%s1 + $0x5c] sm:$0xf]
      %v947 = vld [vmem:[%s1 + $0x60] sm:$0xf]
      %v948 = vld [vmem:[%s1 + $0x64] sm:$0xf]
      %v949 = vld [vmem:[%s1 + $0x68] sm:$0xf]
      %v950 = vld [vmem:[%s1 + $0x6c] sm:$0xf]
      %v951 = vld [vmem:[%s1 + $0x70] sm:$0xf]
      %v952 = vld [vmem:[%s1 + $0x74] sm:$0xf]
      %v953 = vld [vmem:[%s1 + $0x78] sm:$0xf]
      %v954 = vld [vmem:[%s1 + $0x7c] sm:$0xf]
      %v955 = vld [vmem:[%s1 + $0x80] sm:$0xf]
      %v956 = vld [vmem:[%s1 + $0x84] sm:$0xf]
      %v957 = vld [vmem:[%s1 + $0x88] sm:$0xf]
      %v958 = vld [vmem:[%s1 + $0x8c] sm:$0xf]
      %v959 = vld [vmem:[%s1 + $0x90] sm:$0xf]
      %v960 = vld [vmem:[%s1 + $0x94] sm:$0xf]
      %v961 = vld [vmem:[%s1 + $0x98] sm:$0xf]
      %v962 = vld [vmem:[%s1 + $0x9c] sm:$0xf]
      %v963 = vld [vmem:[%s1 + $0xa0] sm:$0xf]
      %v964 = vld [vmem:[%s1 + $0xa4] sm:$0xf]
      %v965 = vld [vmem:[%s1 + $0xa8] sm:$0xf]
      %v966 = vld [vmem:[%s1 + $0xac] sm:$0xf]
      %v967 = vld [vmem:[%s1 + $0xb0] sm:$0xf]
      %v968 = vld [vmem:[%s1 + $0xb4] sm:$0xf]
      %v969 = vld [vmem:[%s1 + $0xb8] sm:$0xf]
      %v970 = vld [vmem:[%s1 + $0xbc] sm:$0xf]
      %v971 = vld [vmem:[%s1 + $0xc0] sm:$0xf]
      %v972 = vld [vmem:[%s1 + $0xc4] sm:$0xf]
      %v973 = vld [vmem:[%s1 + $0xc8] sm:$0xf]
      %v974 = vld [vmem:[%s1 + $0xcc] sm:$0xf]
      %v975 = vld [vmem:[%s1 + $0xd0] sm:$0xf]
      %v976 = vld [vmem:[%s1 + $0xd4] sm:$0xf]
      %v977 = vld [vmem:[%s1 + $0xd8] sm:$0xf]
      %v978 = vld [vmem:[%s1 + $0xdc] sm:$0xf]
      %v979 = vld [vmem:[%s1 + $0xe0] sm:$0xf]
      %v980 = vld [vmem:[%s1 + $0xe4] sm:$0xf]
      %v981 = vld [vmem:[%s1 + $0xe8] sm:$0xf]
      %v982 = vld [vmem:[%s1 + $0xec] sm:$0xf]
      %v983 = vld [vmem:[%s1 + $0xf0] sm:$0xf]
      %v984 = vld [vmem:[%s1 + $0xf4] sm:$0xf]
      %v985 = vld [vmem:[%s1 + $0xf8] sm:$0xf]
      %v986 = vld [vmem:[%s1 + $0xfc] sm:$0xf]
      %v987 = vld [vmem:[%s1 + $0x100] sm:$0xf]
      %v988 = vld [vmem:[%s1 + $0x104] sm:$0xf]
      %v989 = vld [vmem:[%s1 + $0x108] sm:$0xf]
      %v990 = vld [vmem:[%s1 + $0x10c] sm:$0xf]
      %v991 = vld [vmem:[%s1 + $0x110] sm:$0xf]
      %v992 = vld [vmem:[%s1 + $0x114] sm:$0xf]
      %v993 = vld [vmem:[%s1 + $0x118] sm:$0xf]
      %v994 = vld [vmem:[%s1 + $0x11c] sm:$0xf]
      %v1067 = vunpack.c.l.b16 %v923
      %v1068 = vunpack.c.l.b16 %v924
      %v1069 = vunpack.c.l.b16 %v925
      %v1070 = vunpack.c.l.b16 %v926
      %v1071 = vunpack.c.l.b16 %v927
      %v1072 = vunpack.c.l.b16 %v928
      %v1073 = vunpack.c.l.b16 %v929
      %v1074 = vunpack.c.l.b16 %v930
      %v1075 = vunpack.c.l.b16 %v931
      %v1076 = vunpack.c.l.b16 %v932
      %v1077 = vunpack.c.l.b16 %v933
      %v1078 = vunpack.c.l.b16 %v934
      %v1079 = vunpack.c.l.b16 %v935
      %v1080 = vunpack.c.l.b16 %v936
      %v1081 = vunpack.c.l.b16 %v937
      %v1082 = vunpack.c.l.b16 %v938
      %v1083 = vunpack.c.l.b16 %v939
      %v1084 = vunpack.c.l.b16 %v940
      %v1085 = vunpack.c.l.b16 %v941
      %v1086 = vunpack.c.l.b16 %v942
      %v1087 = vunpack.c.l.b16 %v943
      %v1088 = vunpack.c.l.b16 %v944
      %v1089 = vunpack.c.l.b16 %v945
      %v1090 = vunpack.c.l.b16 %v946
      %v1091 = vunpack.c.l.b16 %v947
      %v1092 = vunpack.c.l.b16 %v948
      %v1093 = vunpack.c.l.b16 %v949
      %v1094 = vunpack.c.l.b16 %v950
      %v1095 = vunpack.c.l.b16 %v951
      %v1096 = vunpack.c.l.b16 %v952
      %v1097 = vunpack.c.l.b16 %v953
      %v1098 = vunpack.c.l.b16 %v954
      %v1099 = vunpack.c.l.b16 %v955
      %v1100 = vunpack.c.l.b16 %v956
      %v1101 = vunpack.c.l.b16 %v957
      %v1102 = vunpack.c.l.b16 %v958
      %v1103 = vunpack.c.l.b16 %v959
      %v1104 = vunpack.c.l.b16 %v960
      %v1105 = vunpack.c.l.b16 %v961
      %v1106 = vunpack.c.l.b16 %v962
      %v1107 = vunpack.c.l.b16 %v963
      %v1108 = vunpack.c.l.b16 %v964
      %v1109 = vunpack.c.l.b16 %v965
      %v1110 = vunpack.c.l.b16 %v966
      %v1111 = vunpack.c.l.b16 %v967
      %v1112 = vunpack.c.l.b16 %v968
      %v1113 = vunpack.c.l.b16 %v969
      %v1114 = vunpack.c.l.b16 %v970
      %v1115 = vunpack.c.l.b16 %v971
      %v1116 = vunpack.c.l.b16 %v972
      %v1117 = vunpack.c.l.b16 %v973
      %v1118 = vunpack.c.l.b16 %v974
      %v1119 = vunpack.c.l.b16 %v975
      %v1120 = vunpack.c.l.b16 %v976
      %v1121 = vunpack.c.l.b16 %v977
      %v1122 = vunpack.c.l.b16 %v978
      %v1123 = vunpack.c.l.b16 %v979
      %v1124 = vunpack.c.l.b16 %v980
      %v1125 = vunpack.c.l.b16 %v981
      %v1126 = vunpack.c.l.b16 %v982
      %v1127 = vunpack.c.l.b16 %v983
      %v1128 = vunpack.c.l.b16 %v984
      %v1129 = vunpack.c.l.b16 %v985
      %v1130 = vunpack.c.l.b16 %v986
      %v1131 = vunpack.c.l.b16 %v987
      %v1132 = vunpack.c.l.b16 %v988
      %v1133 = vunpack.c.l.b16 %v989
      %v1134 = vunpack.c.l.b16 %v990
      %v1135 = vunpack.c.l.b16 %v991
      %v1136 = vunpack.c.l.b16 %v992
      %v1137 = vunpack.c.l.b16 %v993
      %v1138 = vunpack.c.l.b16 %v994
      %v1139 = vpack.c.b16 %v1068, %v1067
      %v1140 = vpack.c.b16 %v1070, %v1069
      %v1141 = vpack.c.b16 %v1072, %v1071
      %v1142 = vpack.c.b16 %v1074, %v1073
      %v1143 = vpack.c.b16 %v1076, %v1075
      %v1144 = vpack.c.b16 %v1078, %v1077
      %v1145 = vpack.c.b16 %v1080, %v1079
      %v1146 = vpack.c.b16 %v1082, %v1081
      %v1147 = vpack.c.b16 %v1084, %v1083
      %v1148 = vpack.c.b16 %v1086, %v1085
      %v1149 = vpack.c.b16 %v1088, %v1087
      %v1150 = vpack.c.b16 %v1090, %v1089
      %v1151 = vpack.c.b16 %v1092, %v1091
      %v1152 = vpack.c.b16 %v1094, %v1093
      %v1153 = vpack.c.b16 %v1096, %v1095
      %v1154 = vpack.c.b16 %v1098, %v1097
      %v1155 = vpack.c.b16 %v1100, %v1099
      %v1156 = vpack.c.b16 %v1102, %v1101
      %v1157 = vpack.c.b16 %v1104, %v1103
      %v1158 = vpack.c.b16 %v1106, %v1105
      %v1159 = vpack.c.b16 %v1108, %v1107
      %v1160 = vpack.c.b16 %v1110, %v1109
      %v1161 = vpack.c.b16 %v1112, %v1111
      %v1162 = vpack.c.b16 %v1114, %v1113
      %v1163 = vpack.c.b16 %v1116, %v1115
      %v1164 = vpack.c.b16 %v1118, %v1117
      %v1165 = vpack.c.b16 %v1120, %v1119
      %v1166 = vpack.c.b16 %v1122, %v1121
      %v1167 = vpack.c.b16 %v1124, %v1123
      %v1168 = vpack.c.b16 %v1126, %v1125
      %v1169 = vpack.c.b16 %v1128, %v1127
      %v1170 = vpack.c.b16 %v1130, %v1129
      %v1171 = vpack.c.b16 %v1132, %v1131
      %v1172 = vpack.c.b16 %v1134, %v1133
      %v1173 = vpack.c.b16 %v1136, %v1135
      %v1174 = vpack.c.b16 %v1138, %v1137
      %v1212 = vsel %vm248, %v902, 0
      %v1215 = vsel %vm248, %v907, 0
      %v1218 = vsel %vm248, %v912, 0
      %v1221 = vsel %vm248, %v917, 0
      %v1224 = vsel %vm248, %v922, 0
      %1226 = vmatprep.subr.bf16.mxu0 0
      %1227 = vmatpush1.bf16.msra.mxu0 %v1139
      %1228 = vmatprep.subr.bf16.mxu0 0
      %1229 = vmatpush1.bf16.msra.mxu0 %v1140
      %1230 = vmatprep.subr.bf16.mxu0 0
      %1231 = vmatpush1.bf16.msra.mxu0 %v1141
      %1232 = vmatprep.subr.bf16.mxu0 0
      %1233 = vmatpush1.bf16.msra.mxu0 %v1142
      %1234 = vmatprep.subr.bf16.mxu0 0
      %1235 = vmatpush1.bf16.msra.mxu0 %v1143
      %1236 = vmatprep.subr.bf16.mxu0 0
      %1237 = vmatpush1.bf16.msra.mxu0 %v1144
      %1238 = vmatprep.subr.bf16.mxu0 0
      %1239 = vmatpush1.bf16.msra.mxu0 %v1145
      %1240 = vmatprep.subr.bf16.mxu0 0
      %1241 = vmatpush1.bf16.msra.mxu0 %v1146
      %1242 = vmatprep.subr.bf16.mxu0 0
      %1243 = vmatpush1.bf16.msra.mxu0 %v1147
      %1244 = vmatprep.subr.bf16.mxu0 0
      %1245 = vmatpush1.bf16.msra.mxu0 %v1148
      %1246 = vmatprep.subr.bf16.mxu0 0
      %1247 = vmatpush1.bf16.msra.mxu0 %v1149
      %1248 = vmatprep.subr.bf16.mxu0 0
      %1249 = vmatpush1.bf16.msra.mxu0 %v1150
      %1250 = vmatprep.subr.bf16.mxu0 0
      %1251 = vmatpush1.bf16.msra.mxu0 %v1151
      %1252 = vmatprep.subr.bf16.mxu0 0
      %1253 = vmatpush1.bf16.msra.mxu0 %v1152
      %1254 = vmatprep.subr.bf16.mxu0 0
      %1255 = vmatpush1.bf16.msra.mxu0 %v1153
      %1256 = vmatprep.subr.bf16.mxu0 0
      %1257 = vmatpush1.bf16.msra.mxu0 %v1154
      %1258 = vmatprep.mubr.bf16.mxu0 %v899
      %1259 = vmatmul.mubr.bf16.gmra.mrb[0].mxu0 %v898
      %v1260 = vpop.f32.mrb[0].mxu0
      %v1261 = vadd.f32 0.0, %v1260
      %v1262 = vpop.f32.mrb[0].mxu0
      %v1263 = vpop.f32.mrb[0].mxu0
      %v1264 = vadd.f32 0.0, %v1263
      %v1265 = vpop.f32.mrb[0].mxu0
      %1266 = vmatprep.mubr.bf16.mxu0 %v904
      %1267 = vmatmul.mubr.bf16.gmra.mrb[0].mxu0 %v903
      %v1268 = vpop.f32.mrb[0].mxu0
      %v1269 = vadd.f32 0.0, %v1268
      %v1270 = vpop.f32.mrb[0].mxu0
      %v1271 = vpop.f32.mrb[0].mxu0
      %v1272 = vadd.f32 0.0, %v1271
      %v1273 = vpop.f32.mrb[0].mxu0
      %1274 = vmatprep.mubr.bf16.mxu0 %v909
      %1275 = vmatmul.mubr.bf16.gmra.mrb[0].mxu0 %v908
      %v1276 = vpop.f32.mrb[0].mxu0
      %v1277 = vadd.f32 0.0, %v1276
      %v1278 = vpop.f32.mrb[0].mxu0
      %v1279 = vpop.f32.mrb[0].mxu0
      %v1280 = vadd.f32 0.0, %v1279
      %v1281 = vpop.f32.mrb[0].mxu0
      %1282 = vmatprep.mubr.bf16.mxu0 %v914
      %1283 = vmatmul.mubr.bf16.gmra.mrb[0].mxu0 %v913
      %v1284 = vpop.f32.mrb[0].mxu0
      %v1285 = vadd.f32 0.0, %v1284
      %v1286 = vpop.f32.mrb[0].mxu0
      %v1287 = vpop.f32.mrb[0].mxu0
      %v1288 = vadd.f32 0.0, %v1287
      %v1289 = vpop.f32.mrb[0].mxu0
      %1290 = vmatprep.mubr.bf16.mxu0 %v919
      %1291 = vmatmul.mubr.bf16.gmra.mrb[0].mxu0 %v918
      %v1292 = vpop.f32.mrb[0].mxu0
      %v1293 = vadd.f32 0.0, %v1292
      %v1294 = vpop.f32.mrb[0].mxu0
      %v1295 = vpop.f32.mrb[0].mxu0
      %v1296 = vadd.f32 0.0, %v1295
      %v1297 = vpop.f32.mrb[0].mxu0
      %1298 = vdwg.mxu0
      %1299 = vmatprep.subr.bf16.mxu0 0
      %1300 = vmatpush1.bf16.msra.mxu0 %v1155
      %1301 = vmatprep.subr.bf16.mxu0 0
      %1302 = vmatpush1.bf16.msra.mxu0 %v1156
      %1303 = vmatprep.subr.bf16.mxu0 0
      %1304 = vmatpush1.bf16.msra.mxu0 %v1157
      %1305 = vmatprep.subr.bf16.mxu0 0
      %1306 = vmatpush1.bf16.msra.mxu0 %v1158
      %1307 = vmatprep.subr.bf16.mxu0 0
      %1308 = vmatpush1.bf16.msra.mxu0 %v1159
      %1309 = vmatprep.subr.bf16.mxu0 0
      %1310 = vmatpush1.bf16.msra.mxu0 %v1160
      %1311 = vmatprep.subr.bf16.mxu0 0
      %1312 = vmatpush1.bf16.msra.mxu0 %v1161
      %1313 = vmatprep.subr.bf16.mxu0 0
      %1314 = vmatpush1.bf16.msra.mxu0 %v1162
      %1315 = vmatprep.subr.bf16.mxu0 0
      %1316 = vmatpush1.bf16.msra.mxu0 %v1163
      %1317 = vmatprep.subr.bf16.mxu0 0
      %1318 = vmatpush1.bf16.msra.mxu0 %v1164
      %1319 = vmatprep.subr.bf16.mxu0 0
      %1320 = vmatpush1.bf16.msra.mxu0 %v1165
      %1321 = vmatprep.subr.bf16.mxu0 0
      %1322 = vmatpush1.bf16.msra.mxu0 %v1166
      %1323 = vmatprep.subr.bf16.mxu0 0
      %1324 = vmatpush1.bf16.msra.mxu0 %v1167
      %1325 = vmatprep.subr.bf16.mxu0 0
      %1326 = vmatpush1.bf16.msra.mxu0 %v1168
      %1327 = vmatprep.subr.bf16.mxu0 0
      %1328 = vmatpush1.bf16.msra.mxu0 %v1169
      %1329 = vmatprep.subr.bf16.mxu0 0
      %1330 = vmatpush1.bf16.msra.mxu0 %v1170
      %1331 = vmatprep.mubr.bf16.mxu0 %v901
      %1332 = vmatmul.mubr.bf16.gmra.mrb[0].mxu0 %v900
      %v1333 = vpop.f32.mrb[0].mxu0
      %v1334 = vadd.f32 %v1261, %v1333
      %v1335 = vpop.f32.mrb[0].mxu0
      %v1336 = vpop.f32.mrb[0].mxu0
      %v1337 = vadd.f32 %v1264, %v1336
      %v1338 = vpop.f32.mrb[0].mxu0
      %1339 = vmatprep.mubr.bf16.mxu0 %v906
      %1340 = vmatmul.mubr.bf16.gmra.mrb[0].mxu0 %v905
      %v1341 = vpop.f32.mrb[0].mxu0
      %v1342 = vadd.f32 %v1269, %v1341
      %v1343 = vpop.f32.mrb[0].mxu0
      %v1344 = vpop.f32.mrb[0].mxu0
      %v1345 = vadd.f32 %v1272, %v1344
      %v1346 = vpop.f32.mrb[0].mxu0
      %1347 = vmatprep.mubr.bf16.mxu0 %v911
      %1348 = vmatmul.mubr.bf16.gmra.mrb[0].mxu0 %v910
      %v1349 = vpop.f32.mrb[0].mxu0
      %v1350 = vadd.f32 %v1277, %v1349
      %v1351 = vpop.f32.mrb[0].mxu0
      %v1352 = vpop.f32.mrb[0].mxu0
      %v1353 = vadd.f32 %v1280, %v1352
      %v1354 = vpop.f32.mrb[0].mxu0
      %1355 = vmatprep.mubr.bf16.mxu0 %v916
      %1356 = vmatmul.mubr.bf16.gmra.mrb[0].mxu0 %v915
      %v1357 = vpop.f32.mrb[0].mxu0
      %v1358 = vadd.f32 %v1285, %v1357
      %v1359 = vpop.f32.mrb[0].mxu0
      %v1360 = vpop.f32.mrb[0].mxu0
      %v1361 = vadd.f32 %v1288, %v1360
      %v1362 = vpop.f32.mrb[0].mxu0
      %1363 = vmatprep.mubr.bf16.mxu0 %v921
      %1364 = vmatmul.mubr.bf16.gmra.mrb[0].mxu0 %v920
      %v1365 = vpop.f32.mrb[0].mxu0
      %v1366 = vadd.f32 %v1293, %v1365
      %v1367 = vpop.f32.mrb[0].mxu0
      %v1368 = vpop.f32.mrb[0].mxu0
      %v1369 = vadd.f32 %v1296, %v1368
      %v1370 = vpop.f32.mrb[0].mxu0
      %1371 = vdwg.mxu0
      %1372 = vmatprep.subr.bf16.mxu0 0
      %1373 = vmatpush1.bf16.msra.mxu0 %v1171
      %1374 = vmatprep.subr.bf16.mxu0 0
      %1375 = vmatpush1.bf16.msra.mxu0 %v1172
      %1376 = vmatprep.subr.bf16.mxu0 0
      %1377 = vmatpush1.bf16.msra.mxu0 %v1173
      %1378 = vmatprep.subr.bf16.mxu0 0
      %1379 = vmatpush1.bf16.msra.mxu0 %v1174
      %1380 = vmatprep.subr.bf16.mxu0 0
      %1381 = vmatpush1.bf16.msra.mxu0 0
      %1382 = vmatprep.subr.bf16.mxu0 0
      %1383 = vmatpush1.bf16.msra.mxu0 0
      %1384 = vmatprep.subr.bf16.mxu0 0
      %1385 = vmatpush1.bf16.msra.mxu0 0
      %1386 = vmatprep.subr.bf16.mxu0 0
      %1387 = vmatpush1.bf16.msra.mxu0 0
      %1388 = vmatprep.subr.bf16.mxu0 0
      %1389 = vmatpush1.bf16.msra.mxu0 0
      %1390 = vmatprep.subr.bf16.mxu0 0
      %1391 = vmatpush1.bf16.msra.mxu0 0
      %1392 = vmatprep.subr.bf16.mxu0 0
      %1393 = vmatpush1.bf16.msra.mxu0 0
      %1394 = vmatprep.subr.bf16.mxu0 0
      %1395 = vmatpush1.bf16.msra.mxu0 0
      %1396 = vmatprep.subr.bf16.mxu0 0
      %1397 = vmatpush1.bf16.msra.mxu0 0
      %1398 = vmatprep.subr.bf16.mxu0 0
      %1399 = vmatpush1.bf16.msra.mxu0 0
      %1400 = vmatprep.subr.bf16.mxu0 0
      %1401 = vmatpush1.bf16.msra.mxu0 0
      %1402 = vmatprep.subr.bf16.mxu0 0
      %1403 = vmatpush1.bf16.msra.mxu0 0
      %1404 = vmatprep.mubr.bf16.mxu0 0
      %1405 = vmatmul.mubr.bf16.gmra.mrb[0].mxu0 %v1212
      %v1406 = vpop.f32.mrb[0].mxu0
      %v1407 = vadd.f32 %v1334, %v1406
      %v1408 = vpop.f32.mrb[0].mxu0
      %v1409 = vpop.f32.mrb[0].mxu0
      %v1410 = vadd.f32 %v1337, %v1409
      %v1411 = vpop.f32.mrb[0].mxu0
      %1412 = vmatprep.mubr.bf16.mxu0 0
      %1413 = vmatmul.mubr.bf16.gmra.mrb[0].mxu0 %v1215
      %v1414 = vpop.f32.mrb[0].mxu0
      %v1415 = vadd.f32 %v1342, %v1414
      %v1416 = vpop.f32.mrb[0].mxu0
      %v1417 = vpop.f32.mrb[0].mxu0
      %v1418 = vadd.f32 %v1345, %v1417
      %v1419 = vpop.f32.mrb[0].mxu0
      %1420 = vmatprep.mubr.bf16.mxu0 0
      %1421 = vmatmul.mubr.bf16.gmra.mrb[0].mxu0 %v1218
      %v1422 = vpop.f32.mrb[0].mxu0
      %v1423 = vadd.f32 %v1350, %v1422
      %v1424 = vpop.f32.mrb[0].mxu0
      %v1425 = vpop.f32.mrb[0].mxu0
      %v1426 = vadd.f32 %v1353, %v1425
      %v1427 = vpop.f32.mrb[0].mxu0
      %1428 = vmatprep.mubr.bf16.mxu0 0
      %1429 = vmatmul.mubr.bf16.gmra.mrb[0].mxu0 %v1221
      %v1430 = vpop.f32.mrb[0].mxu0
      %v1431 = vadd.f32 %v1358, %v1430
      %v1432 = vpop.f32.mrb[0].mxu0
      %v1433 = vpop.f32.mrb[0].mxu0
      %v1434 = vadd.f32 %v1361, %v1433
      %v1435 = vpop.f32.mrb[0].mxu0
      %1436 = vmatprep.mubr.bf16.mxu0 0
      %1437 = vmatmul.mubr.bf16.gmra.mrb[0].mxu0 %v1224
      %v1438 = vpop.f32.mrb[0].mxu0
      %v1439 = vadd.f32 %v1366, %v1438
      %v1440 = vpop.f32.mrb[0].mxu0
      %v1441 = vpop.f32.mrb[0].mxu0
      %v1442 = vadd.f32 %v1369, %v1441
      %v1443 = vpop.f32.mrb[0].mxu0
      %1444 = vdwg.mxu0
      %1455 = vrot.lane.b32.xlu0 %v1407, 112
      %v1456 = vpop.permute.xlu0 %1455
      %1457 = vrot.lane.b32.xlu0 %v1410, 112
      %v1458 = vpop.permute.xlu0 %1457
      %1459 = vrot.lane.b32.xlu0 %v1415, 112
      %v1460 = vpop.permute.xlu0 %1459
      %1461 = vrot.lane.b32.xlu0 %v1418, 112
      %v1462 = vpop.permute.xlu0 %1461
      %1463 = vrot.lane.b32.xlu0 %v1423, 112
      %v1464 = vpop.permute.xlu0 %1463
      %1465 = vrot.lane.b32.xlu0 %v1426, 112
      %v1466 = vpop.permute.xlu0 %1465
      %1467 = vrot.lane.b32.xlu0 %v1431, 112
      %v1468 = vpop.permute.xlu0 %1467
      %1469 = vrot.lane.b32.xlu0 %v1434, 112
      %v1470 = vpop.permute.xlu0 %1469
      %1471 = vrot.lane.b32.xlu0 %v1439, 112
      %v1472 = vpop.permute.xlu0 %1471
      %1473 = vrot.lane.b32.xlu0 %v1442, 112
      %v1474 = vpop.permute.xlu0 %1473
      %v1485 = vmax.f32 %v1407, %v1456
      %v1486 = vmax.f32 %v1410, %v1458
      %v1487 = vmax.f32 %v1415, %v1460
      %v1488 = vmax.f32 %v1418, %v1462
      %v1489 = vmax.f32 %v1423, %v1464
      %v1490 = vmax.f32 %v1426, %v1466
      %v1491 = vmax.f32 %v1431, %v1468
      %v1492 = vmax.f32 %v1434, %v1470
      %v1493 = vmax.f32 %v1439, %v1472
      %v1494 = vmax.f32 %v1442, %v1474
      %1505 = vrot.lane.b32.xlu0 %v1485, 96
      %v1506 = vpop.permute.xlu0 %1505
      %1507 = vrot.lane.b32.xlu0 %v1486, 96
      %v1508 = vpop.permute.xlu0 %1507
      %1509 = vrot.lane.b32.xlu0 %v1487, 96
      %v1510 = vpop.permute.xlu0 %1509
      %1511 = vrot.lane.b32.xlu0 %v1488, 96
      %v1512 = vpop.permute.xlu0 %1511
      %1513 = vrot.lane.b32.xlu0 %v1489, 96
      %v1514 = vpop.permute.xlu0 %1513
      %1515 = vrot.lane.b32.xlu0 %v1490, 96
      %v1516 = vpop.permute.xlu0 %1515
      %1517 = vrot.lane.b32.xlu0 %v1491, 96
      %v1518 = vpop.permute.xlu0 %1517
      %1519 = vrot.lane.b32.xlu0 %v1492, 96
      %v1520 = vpop.permute.xlu0 %1519
      %1521 = vrot.lane.b32.xlu0 %v1493, 96
      %v1522 = vpop.permute.xlu0 %1521
      %1523 = vrot.lane.b32.xlu0 %v1494, 96
      %v1524 = vpop.permute.xlu0 %1523
      %v1535 = vmax.f32 %v1485, %v1506
      %v1536 = vmax.f32 %v1486, %v1508
      %v1537 = vmax.f32 %v1487, %v1510
      %v1538 = vmax.f32 %v1488, %v1512
      %v1539 = vmax.f32 %v1489, %v1514
      %v1540 = vmax.f32 %v1490, %v1516
      %v1541 = vmax.f32 %v1491, %v1518
      %v1542 = vmax.f32 %v1492, %v1520
      %v1543 = vmax.f32 %v1493, %v1522
      %v1544 = vmax.f32 %v1494, %v1524
      %v1545 = vld [vmem:[%s2] sm:$0x1]
      %v1547 = vlaneseq
      %v1548 = vshrl.u32 %v1547, 7
      %v1549 = vsub.s32 0, %v1548
      %v1550 = vrot.slane %v1545, %v1549
      %v1552 = vadd.f32 %v1535, %v1550
      %v1553 = vadd.f32 %v1536, %v1550
      %v1554 = vadd.f32 %v1537, %v1550
      %v1555 = vadd.f32 %v1538, %v1550
      %v1556 = vadd.f32 %v1539, %v1550
      %v1557 = vadd.f32 %v1540, %v1550
      %v1558 = vadd.f32 %v1541, %v1550
      %v1559 = vadd.f32 %v1542, %v1550
      %v1560 = vadd.f32 %v1543, %v1550
      %v1561 = vadd.f32 %v1544, %v1550
      %v1562 = vmax.f32 %v1552, 0.0
      %v1563 = vmax.f32 %v1553, 0.0
      %v1564 = vmax.f32 %v1554, 0.0
      %v1565 = vmax.f32 %v1555, 0.0
      %v1566 = vmax.f32 %v1556, 0.0
      %v1567 = vmax.f32 %v1557, 0.0
      %v1568 = vmax.f32 %v1558, 0.0
      %v1569 = vmax.f32 %v1559, 0.0
      %v1570 = vmax.f32 %v1560, 0.0
      %v1571 = vmax.f32 %v1561, 0.0
      %1572 = vxpose.xlu0.b32.start [1/16] %v1562, 128
      %1573 = vxpose.xlu0.b32.cont [2/16] %v1563, 128
      %1574 = vxpose.xlu0.b32.cont [3/16] %v1564, 128
      %1575 = vxpose.xlu0.b32.cont [4/16] %v1565, 128
      %1576 = vxpose.xlu0.b32.cont [5/16] %v1566, 128
      %1577 = vxpose.xlu0.b32.cont [6/16] %v1567, 128
      %1578 = vxpose.xlu0.b32.cont [7/16] %v1568, 128
      %1579 = vxpose.xlu0.b32.cont [8/16] %v1569, 128
      %1580 = vxpose.xlu0.b32.cont [9/16] %v1570, 128
      %1581 = vxpose.xlu0.b32.cont [10/16] %v1571, 128
      %1582 = vxpose.xlu0.b32.cont [11/16] 0.0, 128
      %1583 = vxpose.xlu0.b32.cont [12/16] 0.0, 128
      %1584 = vxpose.xlu0.b32.cont [13/16] 0.0, 128
      %1585 = vxpose.xlu0.b32.cont [14/16] 0.0, 128
      %1586 = vxpose.xlu0.b32.cont [15/16] 0.0, 128
      %1587 = vxpose.xlu0.b32.end [16/16] 0.0, 128
      %v1588 = vpop.trf.xlu0
      %v1589 = vpop.trf.xlu0
      %v1590 = vpop.trf.xlu0
      %v1591 = vpop.trf.xlu0
      %v1592 = vpop.trf.xlu0
      %v1593 = vpop.trf.xlu0
      %v1594 = vpop.trf.xlu0
      %v1595 = vpop.trf.xlu0
      %v1596 = vpop.trf.xlu0
      %v1597 = vpop.trf.xlu0
      %v1598 = vpop.trf.xlu0
      %v1599 = vpop.trf.xlu0
      %v1600 = vpop.trf.xlu0
      %v1601 = vpop.trf.xlu0
      %v1602 = vpop.trf.xlu0
      %v1603 = vpop.trf.xlu0
      %v1604 = vpack.c.bf16 %v1589, %v1588
      %v1606 = vunpack.c.l.b16 %v1604
      %v1607 = vunpack.c.h.b16 %v1604
      %v1608 = vpack.c.b16 %v1606, %v1606
      %v1609 = vpack.c.b16 %v1607, %v1607
      %vm1612 = vcmask 650240
      %1613 = vst.msk [vmem:[%s206] sm:$0xf] %vm1612, %v1608
      %1614 = vst.msk [vmem:[%s206 + $0x4] sm:$0xf] %vm1612, %v1609
      %p1615 = scmp.lt.s32.totalorder %s18, 1
      %s1616 = scalar_select %p1615, %s18, 1
      %p1617 = scmp.lt.s32.totalorder %s19, 0
      %s1618 = scalar_select %p1617, %s19, 0
      %s1619 = smul.addr %s1618, 2
      %s1620 = smul.addr %s1616, 2
      %s1621 = sadd.s32 %s1619, %s1620
      %s1622 = smul.addr %s1621, 4
      %s1623 = scalar_lea.vmem %s3, %s1622
      // Predicated region
      $region33: #{cnn_tempogram_forward.5} parent=31 // pred_check
        %p1624 = pneg %p116
      $region34: #{cnn_tempogram_forward.5} parent=31 // pred_check_branch
        %1626 = sbr.rel (%p1624) target = $region36
      $region35: #{cnn_tempogram_forward.5} parent=31 // pred_region
        _
      $region36: #{cnn_tempogram_forward.5} parent=31 // pred_fallthru
        _
    $region32: #{cnn_tempogram_forward.5} parent=5 // pred_fallthru
      _
    %p1627 = scmp.le.s32.totalorder 2, %s9
    // Predicated region
    $region37: #{cnn_tempogram_forward.5} parent=5 // pred_check
      %p1628 = pneg %p1627
    $region38: #{cnn_tempogram_forward.5} parent=5 // pred_check_branch
      %1630 = sbr.rel (%p1628) target = $region40
    $region39: #{cnn_tempogram_forward.5} parent=5 // pred_region
      %s1631 = ssub.s32 %s9, 2
      // Predicated region
      $region41: #{cnn_tempogram_forward.5} parent=39 // pred_check
        %p1632 = pneg %p122
      $region42: #{cnn_tempogram_forward.5} parent=39 // pred_check_branch
        %1634 = sbr.rel (%p1632) target = $region44
      $region43: #{cnn_tempogram_forward.5} parent=39 // pred_region
        %p1635 = scmp.lt.s32.totalorder %s20, 1
        %s1636 = scalar_select %p1635, %s20, 1
        %p1637 = scmp.lt.s32.totalorder %s21, 0
        %s1638 = scalar_select %p1637, %s21, 0
        %s1639 = smul.addr %s1638, 2
        %s1640 = smul.addr %s1636, 2
        %s1641 = sadd.s32 %s1639, %s1640
        %s1642 = smul.addr %s1641, 4
        %s1643 = scalar_lea.vmem %s3, %s1642
      $region44: #{cnn_tempogram_forward.5} parent=39 // pred_fallthru
        _
    $region40: #{cnn_tempogram_forward.5} parent=5 // pred_fallthru
      _
  $region6: #{cnn_tempogram_forward.5} parent=0 // loop_footer
    %s13 = sadd.s32 1, %s9
  $region7: #{cnn_tempogram_forward.5} parent=0 // loop_footer_branch
    %8 = sbr.rel target = $region3
  $region8: #{cnn_tempogram_forward.5} parent=0 // loop_exit
    _

// kernel: cnn_tempogram_forward.6
$region0: #{cnn_tempogram_forward.6}
  #allocation0 [shape = 'u32[]', space=smem, size = 0x4, offset = 0x4, fixed_abs, tag = 'smem constant byte address 0x4 - core index']
  #allocation1 [shape = 'u32[144,128]{1,0:T(1,128)}', space=vmem, size = 0x12000, scoped, tag = 'internal scratch']
  #allocation2 [shape = 'bf16[20,256]{1,0:T(8,128)(2,1)}', space=vmem, size = 0x3000, scoped, tag = 'scratch operand']
  %s0 = inlined_call_operand.vmem [shape: bf16[2,1,26,64], index: 0, kind: input, shape index: {}]
  %s1 = inlined_call_operand.vmem [shape: bf16[256,128], index: 1, kind: input, shape index: {}]
  %s2 = inlined_call_operand.vmem [shape: f32[1,32], index: 2, kind: input, shape index: {}]
  %s3 = inlined_call_operand.vmem [shape: bf16[2,1,32,20], index: 3, kind: output, shape index: {}]
  %s4 = sld [smem:[#allocation0]]
  $region45: #{cnn_tempogram_forward.6} parent=0
    _
  %s6 = ssub.s32 1, %s4
  %s7 = scalar_select 0, %s6, %s4
  loop: start=0, step=1, limit=4
  $region2: #{cnn_tempogram_forward.6} parent=0 // loop_pre_header
    _
  $region3: #{cnn_tempogram_forward.6} parent=0 // loop_header
    %s9 = sphi 0, %s13
    %p10 = scmp.ge.s32.totalorder %s9, 4
    %s16 = sphi 0, %s28
    %s17 = sphi 0, %s24
    %s18 = sphi 0, %s16
    %s19 = sphi 0, %s17
    %s20 = sphi 0, %s18
    %s21 = sphi 0, %s19
    %s33 = sphi 0, %s35
    %s36 = sphi 0, %s33
    %s37 = sphi 0, %s36
    %s53 = sphi 0, %s37
    %s57 = sphi 0, %s57
    %s59 = sphi 0, %s57
    %s60 = sphi 0, %s59
    %s74 = sphi 0, %s60
    %s78 = sphi 0, %s78
    %s80 = sphi 0, %s78
    %s81 = sphi 0, %s80
    %s95 = sphi 0, %s81
    %s103 = sphi 0, %s105
    %s106 = sphi 0, %s103
    %s107 = sphi 0, %s106
    %s123 = sphi 0, %s107
  $region4: #{cnn_tempogram_forward.6} parent=0 // loop_header_branch
    %12 = sbr.rel (%p10) target = $region8
  $region5: #{cnn_tempogram_forward.6} parent=0 // loop_body
    %s14 = ssub.s32 %s9, 1
    %s15 = ssub.s32 %s9, 2
    %s22 = sadd.s32 1, %s17
    %p23 = scmp.ge.s32.totalorder %s22, 1
    %s24 = scalar_select %p23, 0, %s22
    %s25 = sadd.s32 1, %s16
    %s26 = scalar_select %p23, %s25, %s16
    %p27 = scmp.ge.s32.totalorder %s26, 2
    %s28 = scalar_select %p27, 0, %s26
    %s29 = ssub.s32 %s16, %s28
    %s30 = ssub.s32 %s17, %s24
    %s31 = sor.u32 %s29, %s30
    %p32 = scmp.eq.s32.totalorder %s31, 0
    %s34 = sadd.s32 %s33, 1
    %s35 = scalar_select %p32, %s33, %s34
    %p38 = pneg %p32
    %p39 = scmp.eq.s32.totalorder %s9, 1
    %p40 = por %p38, %p39
    %p41 = scmp.ne.s32.totalorder %s33, %s36
    %p42 = scmp.eq.s32.totalorder %s9, 0
    %p43 = por %p41, %p42
    %p44 = scmp.ne.s32.totalorder %s33, %s36
    %p45 = scmp.eq.s32.totalorder %s14, 1
    %p46 = por %p44, %p45
    %p47 = scmp.ne.s32.totalorder %s36, %s37
    %p48 = scmp.eq.s32.totalorder %s14, 0
    %p49 = por %p47, %p48
    %p50 = scmp.ne.s32.totalorder %s36, %s37
    %p51 = scmp.eq.s32.totalorder %s15, 1
    %p52 = por %p50, %p51
    %p54 = scmp.ne.s32.totalorder %s37, %s53
    %p55 = scmp.eq.s32.totalorder %s15, 0
    %p56 = por %p54, %p55
    %s58 = sadd.s32 %s57, 1
    %p61 = scmp.eq.s32.totalorder %s9, 1
    %p62 = scmp.ne.s32.totalorder %s57, %s59
    %p63 = scmp.eq.s32.totalorder %s9, 0
    %p64 = por %p62, %p63
    %p65 = scmp.ne.s32.totalorder %s57, %s59
    %p66 = scmp.eq.s32.totalorder %s14, 1
    %p67 = por %p65, %p66
    %p68 = scmp.ne.s32.totalorder %s59, %s60
    %p69 = scmp.eq.s32.totalorder %s14, 0
    %p70 = por %p68, %p69
    %p71 = scmp.ne.s32.totalorder %s59, %s60
    %p72 = scmp.eq.s32.totalorder %s15, 1
    %p73 = por %p71, %p72
    %p75 = scmp.ne.s32.totalorder %s60, %s74
    %p76 = scmp.eq.s32.totalorder %s15, 0
    %p77 = por %p75, %p76
    %s79 = sadd.s32 %s78, 1
    %p82 = scmp.eq.s32.totalorder %s9, 1
    %p83 = scmp.ne.s32.totalorder %s78, %s80
    %p84 = scmp.eq.s32.totalorder %s9, 0
    %p85 = por %p83, %p84
    %p86 = scmp.ne.s32.totalorder %s78, %s80
    %p87 = scmp.eq.s32.totalorder %s14, 1
    %p88 = por %p86, %p87
    %p89 = scmp.ne.s32.totalorder %s80, %s81
    %p90 = scmp.eq.s32.totalorder %s14, 0
    %p91 = por %p89, %p90
    %p92 = scmp.ne.s32.totalorder %s80, %s81
    %p93 = scmp.eq.s32.totalorder %s15, 1
    %p94 = por %p92, %p93
    %p96 = scmp.ne.s32.totalorder %s81, %s95
    %p97 = scmp.eq.s32.totalorder %s15, 0
    %p98 = por %p96, %p97
    %s99 = ssub.s32 %s16, %s28
    %s100 = ssub.s32 %s17, %s24
    %s101 = sor.u32 %s99, %s100
    %p102 = scmp.eq.s32.totalorder %s101, 0
    %s104 = sadd.s32 %s103, 1
    %s105 = scalar_select %p102, %s103, %s104
    %p108 = pneg %p102
    %p109 = scmp.eq.s32.totalorder %s9, 1
    %p110 = por %p108, %p109
    %p111 = scmp.ne.s32.totalorder %s103, %s106
    %p112 = scmp.eq.s32.totalorder %s9, 0
    %p113 = por %p111, %p112
    %p114 = scmp.ne.s32.totalorder %s103, %s106
    %p115 = scmp.eq.s32.totalorder %s14, 1
    %p116 = por %p114, %p115
    %p117 = scmp.ne.s32.totalorder %s106, %s107
    %p118 = scmp.eq.s32.totalorder %s14, 0
    %p119 = por %p117, %p118
    %p120 = scmp.ne.s32.totalorder %s106, %s107
    %p121 = scmp.eq.s32.totalorder %s15, 1
    %p122 = por %p120, %p121
    %p124 = scmp.ne.s32.totalorder %s107, %s123
    %p125 = scmp.eq.s32.totalorder %s15, 0
    %p126 = por %p124, %p125
    %p127 = scmp.le.s32.totalorder 1, %s9
    %p128 = scmp.lt.s32.totalorder %s9, 3
    %p129 = pnand %p127, %p128
    %p130 = pneg %p129
    // Predicated region
    $region9: #{cnn_tempogram_forward.6} parent=5 // pred_check
      _
    $region10: #{cnn_tempogram_forward.6} parent=5 // pred_check_branch
      %132 = sbr.rel (%p129) target = $region12
    $region11: #{cnn_tempogram_forward.6} parent=5 // pred_region
      %s133 = ssub.s32 %s9, 1
      // Predicated region
      $region13: #{cnn_tempogram_forward.6} parent=11 // pred_check
        %p134 = pneg %p70
      $region14: #{cnn_tempogram_forward.6} parent=11 // pred_check_branch
        %136 = sbr.rel (%p134) target = $region16
      $region15: #{cnn_tempogram_forward.6} parent=11 // pred_region
        _
      $region16: #{cnn_tempogram_forward.6} parent=11 // pred_fallthru
        _
      // Predicated region
      $region17: #{cnn_tempogram_forward.6} parent=11 // pred_check
        %p137 = pneg %p91
      $region18: #{cnn_tempogram_forward.6} parent=11 // pred_check_branch
        %139 = sbr.rel (%p137) target = $region20
      $region19: #{cnn_tempogram_forward.6} parent=11 // pred_region
        _
      $region20: #{cnn_tempogram_forward.6} parent=11 // pred_fallthru
        _
    $region12: #{cnn_tempogram_forward.6} parent=5 // pred_fallthru
      _
    %p140 = scmp.lt.s32.totalorder %s9, 2
    // Predicated region
    $region21: #{cnn_tempogram_forward.6} parent=5 // pred_check
      %p141 = pneg %p140
    $region22: #{cnn_tempogram_forward.6} parent=5 // pred_check_branch
      %143 = sbr.rel (%p141) target = $region24
    $region23: #{cnn_tempogram_forward.6} parent=5 // pred_region
      // Predicated region
      $region25: #{cnn_tempogram_forward.6} parent=23 // pred_check
        %p144 = pneg %p43
      $region26: #{cnn_tempogram_forward.6} parent=23 // pred_check_branch
        %146 = sbr.rel (%p144) target = $region28
      $region27: #{cnn_tempogram_forward.6} parent=23 // pred_region
        %p147 = scmp.lt.s32.totalorder %s16, 1
        %s148 = scalar_select %p147, %s16, 1
        %p149 = scmp.lt.s32.totalorder %s17, 0
        %s150 = scalar_select %p149, %s17, 0
        %s151 = smul.addr %s150, 4
        %s152 = smul.addr %s148, 4
        %s153 = sadd.s32 %s151, %s152
        %s154 = smul.addr %s153, 4
        %s155 = scalar_lea.vmem %s0, %s154
      $region28: #{cnn_tempogram_forward.6} parent=23 // pred_fallthru
        _
    $region24: #{cnn_tempogram_forward.6} parent=5 // pred_fallthru
      _
    %p156 = scmp.le.s32.totalorder 1, %s9
    %p157 = scmp.lt.s32.totalorder %s9, 3
    %p158 = pnand %p156, %p157
    %p159 = pneg %p158
    // Predicated region
    $region29: #{cnn_tempogram_forward.6} parent=5 // pred_check
      _
    $region30: #{cnn_tempogram_forward.6} parent=5 // pred_check_branch
      %161 = sbr.rel (%p158) target = $region32
    $region31: #{cnn_tempogram_forward.6} parent=5 // pred_region
      %s162 = ssub.s32 %s9, 1
      %p163 = scmp.lt.s32.totalorder %s18, 1
      %s164 = scalar_select %p163, %s18, 1
      %p165 = scmp.lt.s32.totalorder %s19, 0
      %s166 = scalar_select %p165, %s19, 0
      %s167 = smul.addr %s166, 4
      %s168 = smul.addr %s164, 4
      %s169 = sadd.s32 %s167, %s168
      %s170 = smul.addr %s169, 4
      %s171 = scalar_lea.vmem %s0, %s170
      %p172 = pneg %p49
      %p173 = pneg %p46
      %p174 = pneg %p70
      %p175 = pneg %p67
      %p176 = pneg %p91
      %p177 = pneg %p88
      %p178 = pneg %p119
      %p179 = pneg %p116
      %p180 = scmp.lt.s32.totalorder %s18, 1
      %s181 = scalar_select %p180, %s18, 1
      %p182 = scmp.lt.s32.totalorder %s19, 0
      %s183 = scalar_select %p182, %s19, 0
      %s184 = smul.addr %s183, 4
      %s185 = smul.addr %s181, 4
      %s186 = sadd.s32 %s184, %s185
      %s187 = smul.addr %s186, 4
      %s188 = scalar_lea.vmem %s3, %s187
      %p189 = scmp.lt.s32.totalorder %s18, 1
      %s190 = scalar_select %p189, %s18, 1
      %p191 = scmp.lt.s32.totalorder %s19, 0
      %s192 = scalar_select %p191, %s19, 0
      %s193 = smul.addr %s192, 4
      %s194 = smul.addr %s190, 4
      %s195 = sadd.s32 %s193, %s194
      %s196 = smul.addr %s195, 4
      %s197 = scalar_lea.vmem %s0, %s196
      %p198 = scmp.lt.s32.totalorder %s18, 1
      %s199 = scalar_select %p198, %s18, 1
      %p200 = scmp.lt.s32.totalorder %s19, 0
      %s201 = scalar_select %p200, %s19, 0
      %s202 = smul.addr %s201, 4
      %s203 = smul.addr %s199, 4
      %s204 = sadd.s32 %s202, %s203
      %s205 = smul.addr %s204, 4
      %s206 = scalar_lea.vmem %s3, %s205
      %v208 = vld [vmem:[%s197] sm:$0xf]
      %v209 = vld [vmem:[%s197 + $0x4] sm:$0xf]
      %v210 = vld [vmem:[%s197 + $0x8] sm:$0x3]
      %vm211 = vcmask 519168
      %212 = vst.msk [vmem:[#allocation2] sm:$0xf] %vm211, %v208
      %213 = vst.msk [vmem:[#allocation2 + $0x8] sm:$0xf] %vm211, %v209
      %vm214 = vcmask 517120
      %215 = vst.msk [vmem:[#allocation2 + $0x10] sm:$0x3] %vm214, %v210
      %v216 = vld [vmem:[%s197] sm:$0xf]
      %v217 = vld [vmem:[%s197 + $0x4] sm:$0xf]
      %v218 = vld [vmem:[%s197 + $0x8] sm:$0x7]
      %vm219 = vsmask.f32 3328
      %vm220 = vsmask.f32 7440
      %vm221 = vmor %vm219, %vm220
      %v223 = vshrl.u32 %v216, 16
      %v225 = vrot.slane %v223, 4
      %v226 = vshll.u32 %v216, 16
      %v228 = vrot.slane %v226, 5
      %v229 = vor.u32 %v225, %v228
      %v230 = vrot.slane %v229, 4
      %v232 = vshll.u32 %v217, 16
      %v234 = vrot.slane %v232, 5
      %v235 = vsel %vm221, %v230, %v234
      %v236 = vshrl.u32 %v217, 16
      %v238 = vrot.slane %v236, 4
      %v239 = vor.u32 %v238, %v234
      %v240 = vrot.slane %v239, 4
      %v242 = vshll.u32 %v218, 16
      %v244 = vrot.slane %v242, 5
      %v245 = vsel %vm221, %v240, %v244
      %v246 = vshrl.u32 %v218, 16
      %v248 = vrot.slane %v246, 4
      %v249 = vor.u32 %v248, %v244
      %v250 = vrot.slane %v249, 4
      %251 = vrot.lane.b32.xlu0 %v235, 64
      %v252 = vpop.permute.xlu0 %251
      %253 = vrot.lane.b32.xlu0 %v245, 64
      %v254 = vpop.permute.xlu0 %253
      %255 = vrot.lane.b32.xlu0 %v250, 64
      %v256 = vpop.permute.xlu0 %255
      %vm260 = vcmask 1043968
      %261 = vst.msk [vmem:[#allocation2] sm:$0xf] %vm260, %v252
      %262 = vst.msk [vmem:[#allocation2 + $0x8] sm:$0xf] %vm260, %v254
      %vm263 = vcmask 1041920
      %264 = vst.msk [vmem:[#allocation2 + $0x10] sm:$0x3] %vm263, %v256
      %v265 = vld [vmem:[%s197] sm:$0xc]
      %v266 = vld [vmem:[%s197 + $0x4] sm:$0xf]
      %v267 = vld [vmem:[%s197 + $0x8] sm:$0xf]
      %v268 = vld [vmem:[%s197 + $0xc] sm:$0x1]
      %vm269 = vsmask.f32 1280
      %vm270 = vsmask.f32 5392
      %vm271 = vmor %vm269, %vm270
      %v273 = vshrl.u32 %v265, 16
      %v275 = vrot.slane %v273, 6
      %v276 = vshll.u32 %v265, 16
      %v278 = vrot.slane %v276, 7
      %v279 = vor.u32 %v275, %v278
      %v280 = vrot.slane %v279, 4
      %v282 = vshrl.u32 %v266, 16
      %v284 = vrot.slane %v282, 6
      %v285 = vshll.u32 %v266, 16
      %v287 = vrot.slane %v285, 7
      %v288 = vor.u32 %v284, %v287
      %v289 = vsel %vm271, %v280, %v288
      %v290 = vrot.slane %v288, 4
      %v292 = vshrl.u32 %v267, 16
      %v294 = vrot.slane %v292, 6
      %v295 = vshll.u32 %v267, 16
      %v297 = vrot.slane %v295, 7
      %v298 = vor.u32 %v294, %v297
      %v299 = vsel %vm271, %v290, %v298
      %v300 = vrot.slane %v298, 4
      %v302 = vshll.u32 %v268, 16
      %v304 = vrot.slane %v302, 7
      %v305 = vsel %vm271, %v300, %v304
      %309 = vst.msk [vmem:[#allocation2 + $0x4] sm:$0xf] %vm211, %v289
      %310 = vst.msk [vmem:[#allocation2 + $0xc] sm:$0xf] %vm211, %v299
      %311 = vst.msk [vmem:[#allocation2 + $0x14] sm:$0x3] %vm214, %v305
      %v312 = vld [vmem:[%s197] sm:$0x8]
      %v313 = vld [vmem:[%s197 + $0x4] sm:$0xf]
      %v314 = vld [vmem:[%s197 + $0x8] sm:$0xf]
      %v315 = vld [vmem:[%s197 + $0xc] sm:$0x1]
      %vm320 = vcmask 1040384
      %vm321 = vcmask 1044484
      %vm322 = vmor %vm320, %vm321
      %v323 = vrot.slane %v312, 7
      %v324 = vrot.slane %v323, 4
      %v325 = vrot.slane %v313, 7
      %v326 = vsel %vm322, %v324, %v325
      %v327 = vrot.slane %v325, 4
      %v328 = vrot.slane %v314, 7
      %v329 = vsel %vm322, %v327, %v328
      %v330 = vrot.slane %v328, 4
      %v331 = vrot.slane %v315, 7
      %v332 = vsel %vm322, %v330, %v331
      %333 = vrot.lane.b32.xlu0 %v326, 64
      %v334 = vpop.permute.xlu0 %333
      %335 = vrot.lane.b32.xlu0 %v329, 64
      %v336 = vpop.permute.xlu0 %335
      %337 = vrot.lane.b32.xlu0 %v332, 64
      %v338 = vpop.permute.xlu0 %337
      %342 = vst.msk [vmem:[#allocation2 + $0x4] sm:$0xf] %vm260, %v334
      %343 = vst.msk [vmem:[#allocation2 + $0xc] sm:$0xf] %vm260, %v336
      %344 = vst.msk [vmem:[#allocation2 + $0x14] sm:$0x3] %vm263, %v338
      %v345 = vld [vmem:[#allocation2] sm:$0xff]
      %v346 = vld [vmem:[#allocation2 + $0x8] sm:$0xff]
      %v347 = vld [vmem:[#allocation2 + $0x10] sm:$0x33]
      %v348 = vld [vmem:[%s1] sm:$0xf]
      %v349 = vld [vmem:[%s1 + $0x4] sm:$0xf]
      %v350 = vld [vmem:[%s1 + $0x8] sm:$0xf]
      %v351 = vld [vmem:[%s1 + $0xc] sm:$0xf]
      %v352 = vld [vmem:[%s1 + $0x10] sm:$0xf]
      %v353 = vld [vmem:[%s1 + $0x14] sm:$0xf]
      %v354 = vld [vmem:[%s1 + $0x18] sm:$0xf]
      %v355 = vld [vmem:[%s1 + $0x1c] sm:$0xf]
      %v356 = vld [vmem:[%s1 + $0x20] sm:$0xf]
      %v357 = vld [vmem:[%s1 + $0x24] sm:$0xf]
      %v358 = vld [vmem:[%s1 + $0x28] sm:$0xf]
      %v359 = vld [vmem:[%s1 + $0x2c] sm:$0xf]
      %v360 = vld [vmem:[%s1 + $0x30] sm:$0xf]
      %v361 = vld [vmem:[%s1 + $0x34] sm:$0xf]
      %v362 = vld [vmem:[%s1 + $0x38] sm:$0xf]
      %v363 = vld [vmem:[%s1 + $0x3c] sm:$0xf]
      %v364 = vld [vmem:[%s1 + $0x40] sm:$0xf]
      %v365 = vld [vmem:[%s1 + $0x44] sm:$0xf]
      %v366 = vld [vmem:[%s1 + $0x48] sm:$0xf]
      %v367 = vld [vmem:[%s1 + $0x4c] sm:$0xf]
      %v368 = vld [vmem:[%s1 + $0x50] sm:$0xf]
      %v369 = vld [vmem:[%s1 + $0x54] sm:$0xf]
      %v370 = vld [vmem:[%s1 + $0x58] sm:$0xf]
      %v371 = vld [vmem:[%s1 + $0x5c] sm:$0xf]
      %v372 = vld [vmem:[%s1 + $0x60] sm:$0xf]
      %v373 = vld [vmem:[%s1 + $0x64] sm:$0xf]
      %v374 = vld [vmem:[%s1 + $0x68] sm:$0xf]
      %v375 = vld [vmem:[%s1 + $0x6c] sm:$0xf]
      %v376 = vld [vmem:[%s1 + $0x70] sm:$0xf]
      %v377 = vld [vmem:[%s1 + $0x74] sm:$0xf]
      %v378 = vld [vmem:[%s1 + $0x78] sm:$0xf]
      %v379 = vld [vmem:[%s1 + $0x7c] sm:$0xf]
      %v383 = vunpack.c.l.b16 %v345
      %v384 = vunpack.c.h.b16 %v345
      %v385 = vunpack.c.l.b16 %v346
      %v386 = vunpack.c.h.b16 %v346
      %v387 = vunpack.c.l.b16 %v347
      %v388 = vunpack.c.h.b16 %v347
      %v389 = vpack.c.b16 %v385, %v383
      %v390 = vpack.c.b16 %v386, %v384
      %v391 = vpack.c.b16 %v387, %v387
      %v392 = vpack.c.b16 %v388, %v388
      %v429 = vunpack.c.l.b16 %v348
      %v430 = vunpack.c.l.b16 %v349
      %v431 = vunpack.c.l.b16 %v350
      %v432 = vunpack.c.l.b16 %v351
      %v433 = vunpack.c.l.b16 %v352
      %v434 = vunpack.c.l.b16 %v353
      %v435 = vunpack.c.l.b16 %v354
      %v436 = vunpack.c.l.b16 %v355
      %v437 = vunpack.c.l.b16 %v356
      %v438 = vunpack.c.l.b16 %v357
      %v439 = vunpack.c.l.b16 %v358
      %v440 = vunpack.c.l.b16 %v359
      %v441 = vunpack.c.l.b16 %v360
      %v442 = vunpack.c.l.b16 %v361
      %v443 = vunpack.c.l.b16 %v362
      %v444 = vunpack.c.l.b16 %v363
      %v445 = vunpack.c.l.b16 %v364
      %v446 = vunpack.c.l.b16 %v365
      %v447 = vunpack.c.l.b16 %v366
      %v448 = vunpack.c.l.b16 %v367
      %v449 = vunpack.c.l.b16 %v368
      %v450 = vunpack.c.l.b16 %v369
      %v451 = vunpack.c.l.b16 %v370
      %v452 = vunpack.c.l.b16 %v371
      %v453 = vunpack.c.l.b16 %v372
      %v454 = vunpack.c.l.b16 %v373
      %v455 = vunpack.c.l.b16 %v374
      %v456 = vunpack.c.l.b16 %v375
      %v457 = vunpack.c.l.b16 %v376
      %v458 = vunpack.c.l.b16 %v377
      %v459 = vunpack.c.l.b16 %v378
      %v460 = vunpack.c.l.b16 %v379
      %v461 = vpack.c.b16 %v430, %v429
      %v462 = vpack.c.b16 %v432, %v431
      %v463 = vpack.c.b16 %v434, %v433
      %v464 = vpack.c.b16 %v436, %v435
      %v465 = vpack.c.b16 %v438, %v437
      %v466 = vpack.c.b16 %v440, %v439
      %v467 = vpack.c.b16 %v442, %v441
      %v468 = vpack.c.b16 %v444, %v443
      %v469 = vpack.c.b16 %v446, %v445
      %v470 = vpack.c.b16 %v448, %v447
      %v471 = vpack.c.b16 %v450, %v449
      %v472 = vpack.c.b16 %v452, %v451
      %v473 = vpack.c.b16 %v454, %v453
      %v474 = vpack.c.b16 %v456, %v455
      %v475 = vpack.c.b16 %v458, %v457
      %v476 = vpack.c.b16 %v460, %v459
      %493 = vmatprep.subr.bf16.mxu0 0
      %494 = vmatpush1.bf16.msra.mxu0 %v461
      %495 = vmatprep.subr.bf16.mxu0 0
      %496 = vmatpush1.bf16.msra.mxu0 %v462
      %497 = vmatprep.subr.bf16.mxu0 0
      %498 = vmatpush1.bf16.msra.mxu0 %v463
      %499 = vmatprep.subr.bf16.mxu0 0
      %500 = vmatpush1.bf16.msra.mxu0 %v464
      %501 = vmatprep.subr.bf16.mxu0 0
      %502 = vmatpush1.bf16.msra.mxu0 %v465
      %503 = vmatprep.subr.bf16.mxu0 0
      %504 = vmatpush1.bf16.msra.mxu0 %v466
      %505 = vmatprep.subr.bf16.mxu0 0
      %506 = vmatpush1.bf16.msra.mxu0 %v467
      %507 = vmatprep.subr.bf16.mxu0 0
      %508 = vmatpush1.bf16.msra.mxu0 %v468
      %509 = vmatprep.subr.bf16.mxu0 0
      %510 = vmatpush1.bf16.msra.mxu0 %v469
      %511 = vmatprep.subr.bf16.mxu0 0
      %512 = vmatpush1.bf16.msra.mxu0 %v470
      %513 = vmatprep.subr.bf16.mxu0 0
      %514 = vmatpush1.bf16.msra.mxu0 %v471
      %515 = vmatprep.subr.bf16.mxu0 0
      %516 = vmatpush1.bf16.msra.mxu0 %v472
      %517 = vmatprep.subr.bf16.mxu0 0
      %518 = vmatpush1.bf16.msra.mxu0 %v473
      %519 = vmatprep.subr.bf16.mxu0 0
      %520 = vmatpush1.bf16.msra.mxu0 %v474
      %521 = vmatprep.subr.bf16.mxu0 0
      %522 = vmatpush1.bf16.msra.mxu0 %v475
      %523 = vmatprep.subr.bf16.mxu0 0
      %524 = vmatpush1.bf16.msra.mxu0 %v476
      %525 = vmatprep.mubr.bf16.mxu0 %v390
      %526 = vmatmul.mubr.bf16.gmra.mrb[0].mxu0 %v389
      %v527 = vpop.f32.mrb[0].mxu0
      %v528 = vadd.f32 0.0, %v527
      %v529 = vpop.f32.mrb[0].mxu0
      %v530 = vpop.f32.mrb[0].mxu0
      %v531 = vadd.f32 0.0, %v530
      %v532 = vpop.f32.mrb[0].mxu0
      %533 = vmatprep.mubr.bf16.mxu0 %v392
      %534 = vmatmul.mubr.bf16.gmra.mrb[0].mxu0 %v391
      %v535 = vpop.f32.mrb[0].mxu0
      %v536 = vadd.f32 0.0, %v535
      %v537 = vpop.f32.mrb[0].mxu0
      %v538 = vpop.f32.mrb[0].mxu0
      %v539 = vpop.f32.mrb[0].mxu0
      %540 = vdwg.mxu0
      %544 = vrot.lane.b32.xlu0 %v528, 96
      %v545 = vpop.permute.xlu0 %544
      %546 = vrot.lane.b32.xlu0 %v531, 96
      %v547 = vpop.permute.xlu0 %546
      %548 = vrot.lane.b32.xlu0 %v536, 96
      %v549 = vpop.permute.xlu0 %548
      %v553 = vmax.f32 %v528, %v545
      %v554 = vmax.f32 %v531, %v547
      %v555 = vmax.f32 %v536, %v549
      %559 = vrot.lane.b32.xlu0 %v553, 64
      %v560 = vpop.permute.xlu0 %559
      %561 = vrot.lane.b32.xlu0 %v554, 64
      %v562 = vpop.permute.xlu0 %561
      %563 = vrot.lane.b32.xlu0 %v555, 64
      %v564 = vpop.permute.xlu0 %563
      %v568 = vmax.f32 %v553, %v560
      %v569 = vmax.f32 %v554, %v562
      %v570 = vmax.f32 %v555, %v564
      %v571 = vld [vmem:[%s2] sm:$0x1]
      %v573 = vlaneseq
      %v574 = vshrl.u32 %v573, 7
      %v575 = vsub.s32 0, %v574
      %v576 = vrot.slane %v571, %v575
      %v578 = vadd.f32 %v568, %v576
      %v579 = vadd.f32 %v569, %v576
      %v580 = vadd.f32 %v570, %v576
      %v581 = vmax.f32 %v578, 0.0
      %v582 = vmax.f32 %v579, 0.0
      %v583 = vmax.f32 %v580, 0.0
      %584 = vxpose.xlu0.b32.start [1/16] %v581, 128
      %585 = vxpose.xlu0.b32.cont [2/16] %v582, 128
      %586 = vxpose.xlu0.b32.cont [3/16] %v583, 128
      %587 = vxpose.xlu0.b32.cont [4/16] 0.0, 128
      %588 = vxpose.xlu0.b32.cont [5/16] 0.0, 128
      %589 = vxpose.xlu0.b32.cont [6/16] 0.0, 128
      %590 = vxpose.xlu0.b32.cont [7/16] 0.0, 128
      %591 = vxpose.xlu0.b32.cont [8/16] 0.0, 128
      %592 = vxpose.xlu0.b32.cont [9/16] 0.0, 128
      %593 = vxpose.xlu0.b32.cont [10/16] 0.0, 128
      %594 = vxpose.xlu0.b32.cont [11/16] 0.0, 128
      %595 = vxpose.xlu0.b32.cont [12/16] 0.0, 128
      %596 = vxpose.xlu0.b32.cont [13/16] 0.0, 128
      %597 = vxpose.xlu0.b32.cont [14/16] 0.0, 128
      %598 = vxpose.xlu0.b32.cont [15/16] 0.0, 128
      %599 = vxpose.xlu0.b32.end [16/16] 0.0, 128
      %v600 = vpop.trf.xlu0
      %v601 = vpop.trf.xlu0
      %v602 = vpop.trf.xlu0
      %v603 = vpop.trf.xlu0
      %v604 = vpop.trf.xlu0
      %v605 = vpop.trf.xlu0
      %v606 = vpop.trf.xlu0
      %v607 = vpop.trf.xlu0
      %v608 = vpop.trf.xlu0
      %v609 = vpop.trf.xlu0
      %v610 = vpop.trf.xlu0
      %v611 = vpop.trf.xlu0
      %v612 = vpop.trf.xlu0
      %v613 = vpop.trf.xlu0
      %v614 = vpop.trf.xlu0
      %v615 = vpop.trf.xlu0
      %v616 = vpack.c.bf16 %v601, %v600
      %v617 = vpack.c.bf16 %v603, %v602
      %v620 = vunpack.c.l.b16 %v616
      %v621 = vunpack.c.h.b16 %v616
      %v622 = vunpack.c.l.b16 %v617
      %v623 = vunpack.c.h.b16 %v617
      %v624 = vpack.c.b16 %v620, %v620
      %v625 = vpack.c.b16 %v621, %v621
      %v626 = vpack.c.b16 %v622, %v622
      %v627 = vpack.c.b16 %v623, %v623
      %vm632 = vcmask 158720
      %633 = vst.msk [vmem:[%s206] sm:$0xf] %vm632, %v624
      %634 = vst.msk [vmem:[%s206 + $0x4] sm:$0xf] %vm632, %v625
      %635 = vst.msk [vmem:[%s206 + $0x8] sm:$0xf] %vm632, %v626
      %636 = vst.msk [vmem:[%s206 + $0xc] sm:$0xf] %vm632, %v627
      %p637 = scmp.lt.s32.totalorder %s18, 1
      %s638 = scalar_select %p637, %s18, 1
      %p639 = scmp.lt.s32.totalorder %s19, 0
      %s640 = scalar_select %p639, %s19, 0
      %s641 = smul.addr %s640, 4
      %s642 = smul.addr %s638, 4
      %s643 = sadd.s32 %s641, %s642
      %s644 = smul.addr %s643, 4
      %s645 = scalar_lea.vmem %s3, %s644
      // Predicated region
      $region33: #{cnn_tempogram_forward.6} parent=31 // pred_check
        %p646 = pneg %p116
      $region34: #{cnn_tempogram_forward.6} parent=31 // pred_check_branch
        %648 = sbr.rel (%p646) target = $region36
      $region35: #{cnn_tempogram_forward.6} parent=31 // pred_region
        _
      $region36: #{cnn_tempogram_forward.6} parent=31 // pred_fallthru
        _
    $region32: #{cnn_tempogram_forward.6} parent=5 // pred_fallthru
      _
    %p649 = scmp.le.s32.totalorder 2, %s9
    // Predicated region
    $region37: #{cnn_tempogram_forward.6} parent=5 // pred_check
      %p650 = pneg %p649
    $region38: #{cnn_tempogram_forward.6} parent=5 // pred_check_branch
      %652 = sbr.rel (%p650) target = $region40
    $region39: #{cnn_tempogram_forward.6} parent=5 // pred_region
      %s653 = ssub.s32 %s9, 2
      // Predicated region
      $region41: #{cnn_tempogram_forward.6} parent=39 // pred_check
        %p654 = pneg %p122
      $region42: #{cnn_tempogram_forward.6} parent=39 // pred_check_branch
        %656 = sbr.rel (%p654) target = $region44
      $region43: #{cnn_tempogram_forward.6} parent=39 // pred_region
        %p657 = scmp.lt.s32.totalorder %s20, 1
        %s658 = scalar_select %p657, %s20, 1
        %p659 = scmp.lt.s32.totalorder %s21, 0
        %s660 = scalar_select %p659, %s21, 0
        %s661 = smul.addr %s660, 4
        %s662 = smul.addr %s658, 4
        %s663 = sadd.s32 %s661, %s662
        %s664 = smul.addr %s663, 4
        %s665 = scalar_lea.vmem %s3, %s664
      $region44: #{cnn_tempogram_forward.6} parent=39 // pred_fallthru
        _
    $region40: #{cnn_tempogram_forward.6} parent=5 // pred_fallthru
      _
  $region6: #{cnn_tempogram_forward.6} parent=0 // loop_footer
    %s13 = sadd.s32 1, %s9
  $region7: #{cnn_tempogram_forward.6} parent=0 // loop_footer_branch
    %8 = sbr.rel target = $region3
  $region8: #{cnn_tempogram_forward.6} parent=0 // loop_exit
    _

// kernel: cnn_tempogram_forward.7
$region0: #{cnn_tempogram_forward.7}
  #allocation0 [shape = 'u32[]', space=smem, size = 0x4, offset = 0x4, fixed_abs, tag = 'smem constant byte address 0x4 - core index']
  #allocation1 [shape = 'u32[144,128]{1,0:T(1,128)}', space=vmem, size = 0x12000, scoped, tag = 'internal scratch']
  %s0 = inlined_call_operand.vmem [shape: bf16[2,512], index: 0, kind: input, shape index: {}]
  %s1 = inlined_call_operand.vmem [shape: bf16[512,10], index: 1, kind: input, shape index: {}]
  %s2 = inlined_call_operand.vmem [shape: f32[1,10], index: 2, kind: input, shape index: {}]
  %s3 = inlined_call_operand.hbm [shape: f32[2,10], index: 3, kind: output, shape index: {}]
  %s4 = sld [smem:[#allocation0]]
  $region22: #{cnn_tempogram_forward.7} parent=0
    _
  %s6 = ssub.s32 1, %s4
  %s7 = scalar_select 0, %s6, %s4
  $region1: #{cnn_tempogram_forward.7} parent=0
    #allocation2 [shape = 'u8[1024]{0}', space=vmem, size = 0x400, scoped, tag = 'output window, operand 0, single buffered']
    #allocation3 [shape = 's32[1]{0}', space=sflag, size = 0x4, scoped, tag = 'scoped memory for cnn_tempogram_forward.7']
    %8 = vsyncpa [#allocation3], 0
    // Predicated region
    $region2: #{cnn_tempogram_forward.7} parent=1 // pred_check
      _
    $region3: #{cnn_tempogram_forward.7} parent=1 // pred_check_branch
      %10 = sbr.rel (0) target = $region5
    $region4: #{cnn_tempogram_forward.7} parent=1 // pred_region
      _
    $region5: #{cnn_tempogram_forward.7} parent=1 // pred_fallthru
      _
    // Predicated region
    $region6: #{cnn_tempogram_forward.7} parent=1 // pred_check
      _
    $region7: #{cnn_tempogram_forward.7} parent=1 // pred_check_branch
      %12 = sbr.rel (0) target = $region9
    $region8: #{cnn_tempogram_forward.7} parent=1 // pred_region
      _
    $region9: #{cnn_tempogram_forward.7} parent=1 // pred_fallthru
      _
    // Predicated region
    $region10: #{cnn_tempogram_forward.7} parent=1 // pred_check
      _
    $region11: #{cnn_tempogram_forward.7} parent=1 // pred_check_branch
      %14 = sbr.rel (0) target = $region13
    $region12: #{cnn_tempogram_forward.7} parent=1 // pred_region
      _
    $region13: #{cnn_tempogram_forward.7} parent=1 // pred_fallthru
      _
    %v16 = vld [vmem:[%s0] sm:$0xf]
    %v17 = vld [vmem:[%s1] sm:$0xf]
    %v18 = vld [vmem:[%s1 + $0x4] sm:$0xf]
    %v19 = vld [vmem:[%s1 + $0x8] sm:$0xf]
    %v20 = vld [vmem:[%s1 + $0xc] sm:$0xf]
    %v21 = vld [vmem:[%s1 + $0x10] sm:$0xf]
    %v22 = vld [vmem:[%s1 + $0x14] sm:$0xf]
    %v23 = vld [vmem:[%s1 + $0x18] sm:$0xf]
    %v24 = vld [vmem:[%s1 + $0x1c] sm:$0xf]
    %v25 = vld [vmem:[%s1 + $0x20] sm:$0xf]
    %v26 = vld [vmem:[%s1 + $0x24] sm:$0xf]
    %v27 = vld [vmem:[%s1 + $0x28] sm:$0xf]
    %v28 = vld [vmem:[%s1 + $0x2c] sm:$0xf]
    %v29 = vld [vmem:[%s1 + $0x30] sm:$0xf]
    %v30 = vld [vmem:[%s1 + $0x34] sm:$0xf]
    %v31 = vld [vmem:[%s1 + $0x38] sm:$0xf]
    %v32 = vld [vmem:[%s1 + $0x3c] sm:$0xf]
    %v33 = vld [vmem:[%s1 + $0x40] sm:$0xf]
    %v34 = vld [vmem:[%s1 + $0x44] sm:$0xf]
    %v35 = vld [vmem:[%s1 + $0x48] sm:$0xf]
    %v36 = vld [vmem:[%s1 + $0x4c] sm:$0xf]
    %v37 = vld [vmem:[%s1 + $0x50] sm:$0xf]
    %v38 = vld [vmem:[%s1 + $0x54] sm:$0xf]
    %v39 = vld [vmem:[%s1 + $0x58] sm:$0xf]
    %v40 = vld [vmem:[%s1 + $0x5c] sm:$0xf]
    %v41 = vld [vmem:[%s1 + $0x60] sm:$0xf]
    %v42 = vld [vmem:[%s1 + $0x64] sm:$0xf]
    %v43 = vld [vmem:[%s1 + $0x68] sm:$0xf]
    %v44 = vld [vmem:[%s1 + $0x6c] sm:$0xf]
    %v45 = vld [vmem:[%s1 + $0x70] sm:$0xf]
    %v46 = vld [vmem:[%s1 + $0x74] sm:$0xf]
    %v47 = vld [vmem:[%s1 + $0x78] sm:$0xf]
    %v48 = vld [vmem:[%s1 + $0x7c] sm:$0xf]
    %v49 = vld [vmem:[%s1 + $0x80] sm:$0xf]
    %v50 = vld [vmem:[%s1 + $0x84] sm:$0xf]
    %v51 = vld [vmem:[%s1 + $0x88] sm:$0xf]
    %v52 = vld [vmem:[%s1 + $0x8c] sm:$0xf]
    %v53 = vld [vmem:[%s1 + $0x90] sm:$0xf]
    %v54 = vld [vmem:[%s1 + $0x94] sm:$0xf]
    %v55 = vld [vmem:[%s1 + $0x98] sm:$0xf]
    %v56 = vld [vmem:[%s1 + $0x9c] sm:$0xf]
    %v57 = vld [vmem:[%s1 + $0xa0] sm:$0xf]
    %v58 = vld [vmem:[%s1 + $0xa4] sm:$0xf]
    %v59 = vld [vmem:[%s1 + $0xa8] sm:$0xf]
    %v60 = vld [vmem:[%s1 + $0xac] sm:$0xf]
    %v61 = vld [vmem:[%s1 + $0xb0] sm:$0xf]
    %v62 = vld [vmem:[%s1 + $0xb4] sm:$0xf]
    %v63 = vld [vmem:[%s1 + $0xb8] sm:$0xf]
    %v64 = vld [vmem:[%s1 + $0xbc] sm:$0xf]
    %v65 = vld [vmem:[%s1 + $0xc0] sm:$0xf]
    %v66 = vld [vmem:[%s1 + $0xc4] sm:$0xf]
    %v67 = vld [vmem:[%s1 + $0xc8] sm:$0xf]
    %v68 = vld [vmem:[%s1 + $0xcc] sm:$0xf]
    %v69 = vld [vmem:[%s1 + $0xd0] sm:$0xf]
    %v70 = vld [vmem:[%s1 + $0xd4] sm:$0xf]
    %v71 = vld [vmem:[%s1 + $0xd8] sm:$0xf]
    %v72 = vld [vmem:[%s1 + $0xdc] sm:$0xf]
    %v73 = vld [vmem:[%s1 + $0xe0] sm:$0xf]
    %v74 = vld [vmem:[%s1 + $0xe4] sm:$0xf]
    %v75 = vld [vmem:[%s1 + $0xe8] sm:$0xf]
    %v76 = vld [vmem:[%s1 + $0xec] sm:$0xf]
    %v77 = vld [vmem:[%s1 + $0xf0] sm:$0xf]
    %v78 = vld [vmem:[%s1 + $0xf4] sm:$0xf]
    %v79 = vld [vmem:[%s1 + $0xf8] sm:$0xf]
    %v80 = vld [vmem:[%s1 + $0xfc] sm:$0xf]
    %v81 = vld [vmem:[%s2] sm:$0x1]
    %v83 = vlaneseq
    %v84 = vshrl.u32 %v83, 7
    %v85 = vsub.s32 0, %v84
    %v86 = vrot.slane %v81, %v85
    %v90 = vunpack.c.l.s4 1966171168
    %v91 = vunpack.c.0.s8 %v90
    %v92 = vlaneseq
    %v93 = vshrl.u32 %v92, 7
    %v94 = vsub.s32 %v91, %v93
    %v95 = vrot.slane %v16, %v94
    %v96 = vcombine.high %v95, %v95
    %v98 = vunpack.c.l.s4 1966171168
    %v99 = vunpack.c.0.s8 %v98
    %v100 = vlaneseq
    %v101 = vshrl.u32 %v100, 7
    %v102 = vsub.s32 %v99, %v101
    %v103 = vrot.slane %v95, %v102
    %v105 = vunpack.c.l.s4 1966171168
    %v106 = vunpack.c.0.s8 %v105
    %v107 = vlaneseq
    %v108 = vshrl.u32 %v107, 7
    %v109 = vsub.s32 %v106, %v108
    %v110 = vrot.slane %v96, %v109
    %v111 = vcombine.high %v103, %v103
    %v112 = vcombine.high %v110, %v110
    %v181 = vunpack.c.l.b16 %v17
    %v182 = vunpack.c.l.b16 %v18
    %v183 = vunpack.c.l.b16 %v19
    %v184 = vunpack.c.l.b16 %v20
    %v185 = vunpack.c.l.b16 %v21
    %v186 = vunpack.c.l.b16 %v22
    %v187 = vunpack.c.l.b16 %v23
    %v188 = vunpack.c.l.b16 %v24
    %v189 = vunpack.c.l.b16 %v25
    %v190 = vunpack.c.l.b16 %v26
    %v191 = vunpack.c.l.b16 %v27
    %v192 = vunpack.c.l.b16 %v28
    %v193 = vunpack.c.l.b16 %v29
    %v194 = vunpack.c.l.b16 %v30
    %v195 = vunpack.c.l.b16 %v31
    %v196 = vunpack.c.l.b16 %v32
    %v197 = vunpack.c.l.b16 %v33
    %v198 = vunpack.c.l.b16 %v34
    %v199 = vunpack.c.l.b16 %v35
    %v200 = vunpack.c.l.b16 %v36
    %v201 = vunpack.c.l.b16 %v37
    %v202 = vunpack.c.l.b16 %v38
    %v203 = vunpack.c.l.b16 %v39
    %v204 = vunpack.c.l.b16 %v40
    %v205 = vunpack.c.l.b16 %v41
    %v206 = vunpack.c.l.b16 %v42
    %v207 = vunpack.c.l.b16 %v43
    %v208 = vunpack.c.l.b16 %v44
    %v209 = vunpack.c.l.b16 %v45
    %v210 = vunpack.c.l.b16 %v46
    %v211 = vunpack.c.l.b16 %v47
    %v212 = vunpack.c.l.b16 %v48
    %v213 = vunpack.c.l.b16 %v49
    %v214 = vunpack.c.l.b16 %v50
    %v215 = vunpack.c.l.b16 %v51
    %v216 = vunpack.c.l.b16 %v52
    %v217 = vunpack.c.l.b16 %v53
    %v218 = vunpack.c.l.b16 %v54
    %v219 = vunpack.c.l.b16 %v55
    %v220 = vunpack.c.l.b16 %v56
    %v221 = vunpack.c.l.b16 %v57
    %v222 = vunpack.c.l.b16 %v58
    %v223 = vunpack.c.l.b16 %v59
    %v224 = vunpack.c.l.b16 %v60
    %v225 = vunpack.c.l.b16 %v61
    %v226 = vunpack.c.l.b16 %v62
    %v227 = vunpack.c.l.b16 %v63
    %v228 = vunpack.c.l.b16 %v64
    %v229 = vunpack.c.l.b16 %v65
    %v230 = vunpack.c.l.b16 %v66
    %v231 = vunpack.c.l.b16 %v67
    %v232 = vunpack.c.l.b16 %v68
    %v233 = vunpack.c.l.b16 %v69
    %v234 = vunpack.c.l.b16 %v70
    %v235 = vunpack.c.l.b16 %v71
    %v236 = vunpack.c.l.b16 %v72
    %v237 = vunpack.c.l.b16 %v73
    %v238 = vunpack.c.l.b16 %v74
    %v239 = vunpack.c.l.b16 %v75
    %v240 = vunpack.c.l.b16 %v76
    %v241 = vunpack.c.l.b16 %v77
    %v242 = vunpack.c.l.b16 %v78
    %v243 = vunpack.c.l.b16 %v79
    %v244 = vunpack.c.l.b16 %v80
    %v245 = vpack.c.b16 %v182, %v181
    %v246 = vpack.c.b16 %v184, %v183
    %v247 = vpack.c.b16 %v186, %v185
    %v248 = vpack.c.b16 %v188, %v187
    %v249 = vpack.c.b16 %v190, %v189
    %v250 = vpack.c.b16 %v192, %v191
    %v251 = vpack.c.b16 %v194, %v193
    %v252 = vpack.c.b16 %v196, %v195
    %v253 = vpack.c.b16 %v198, %v197
    %v254 = vpack.c.b16 %v200, %v199
    %v255 = vpack.c.b16 %v202, %v201
    %v256 = vpack.c.b16 %v204, %v203
    %v257 = vpack.c.b16 %v206, %v205
    %v258 = vpack.c.b16 %v208, %v207
    %v259 = vpack.c.b16 %v210, %v209
    %v260 = vpack.c.b16 %v212, %v211
    %v261 = vpack.c.b16 %v214, %v213
    %v262 = vpack.c.b16 %v216, %v215
    %v263 = vpack.c.b16 %v218, %v217
    %v264 = vpack.c.b16 %v220, %v219
    %v265 = vpack.c.b16 %v222, %v221
    %v266 = vpack.c.b16 %v224, %v223
    %v267 = vpack.c.b16 %v226, %v225
    %v268 = vpack.c.b16 %v228, %v227
    %v269 = vpack.c.b16 %v230, %v229
    %v270 = vpack.c.b16 %v232, %v231
    %v271 = vpack.c.b16 %v234, %v233
    %v272 = vpack.c.b16 %v236, %v235
    %v273 = vpack.c.b16 %v238, %v237
    %v274 = vpack.c.b16 %v240, %v239
    %v275 = vpack.c.b16 %v242, %v241
    %v276 = vpack.c.b16 %v244, %v243
    %309 = vmatprep.subr.bf16.mxu0 0
    %310 = vmatpush1.bf16.msra.mxu0 %v245
    %311 = vmatprep.subr.bf16.mxu0 0
    %312 = vmatpush1.bf16.msra.mxu0 %v246
    %313 = vmatprep.subr.bf16.mxu0 0
    %314 = vmatpush1.bf16.msra.mxu0 %v247
    %315 = vmatprep.subr.bf16.mxu0 0
    %316 = vmatpush1.bf16.msra.mxu0 %v248
    %317 = vmatprep.subr.bf16.mxu0 0
    %318 = vmatpush1.bf16.msra.mxu0 %v249
    %319 = vmatprep.subr.bf16.mxu0 0
    %320 = vmatpush1.bf16.msra.mxu0 %v250
    %321 = vmatprep.subr.bf16.mxu0 0
    %322 = vmatpush1.bf16.msra.mxu0 %v251
    %323 = vmatprep.subr.bf16.mxu0 0
    %324 = vmatpush1.bf16.msra.mxu0 %v252
    %325 = vmatprep.subr.bf16.mxu0 0
    %326 = vmatpush1.bf16.msra.mxu0 %v253
    %327 = vmatprep.subr.bf16.mxu0 0
    %328 = vmatpush1.bf16.msra.mxu0 %v254
    %329 = vmatprep.subr.bf16.mxu0 0
    %330 = vmatpush1.bf16.msra.mxu0 %v255
    %331 = vmatprep.subr.bf16.mxu0 0
    %332 = vmatpush1.bf16.msra.mxu0 %v256
    %333 = vmatprep.subr.bf16.mxu0 0
    %334 = vmatpush1.bf16.msra.mxu0 %v257
    %335 = vmatprep.subr.bf16.mxu0 0
    %336 = vmatpush1.bf16.msra.mxu0 %v258
    %337 = vmatprep.subr.bf16.mxu0 0
    %338 = vmatpush1.bf16.msra.mxu0 %v259
    %339 = vmatprep.subr.bf16.mxu0 0
    %340 = vmatpush1.bf16.msra.mxu0 %v260
    %341 = vmatprep.mubr.bf16.mxu0 %v110
    %342 = vmatmul.mubr.bf16.gmra.mrb[0].mxu0 %v103
    %v343 = vpop.f32.mrb[0].mxu0
    %v344 = vadd.f32 %v86, %v343
    %v345 = vpop.f32.mrb[0].mxu0
    %v346 = vpop.f32.mrb[0].mxu0
    %v347 = vpop.f32.mrb[0].mxu0
    %348 = vdwg.mxu0
    %349 = vmatprep.subr.bf16.mxu0 0
    %350 = vmatpush1.bf16.msra.mxu0 %v261
    %351 = vmatprep.subr.bf16.mxu0 0
    %352 = vmatpush1.bf16.msra.mxu0 %v262
    %353 = vmatprep.subr.bf16.mxu0 0
    %354 = vmatpush1.bf16.msra.mxu0 %v263
    %355 = vmatprep.subr.bf16.mxu0 0
    %356 = vmatpush1.bf16.msra.mxu0 %v264
    %357 = vmatprep.subr.bf16.mxu0 0
    %358 = vmatpush1.bf16.msra.mxu0 %v265
    %359 = vmatprep.subr.bf16.mxu0 0
    %360 = vmatpush1.bf16.msra.mxu0 %v266
    %361 = vmatprep.subr.bf16.mxu0 0
    %362 = vmatpush1.bf16.msra.mxu0 %v267
    %363 = vmatprep.subr.bf16.mxu0 0
    %364 = vmatpush1.bf16.msra.mxu0 %v268
    %365 = vmatprep.subr.bf16.mxu0 0
    %366 = vmatpush1.bf16.msra.mxu0 %v269
    %367 = vmatprep.subr.bf16.mxu0 0
    %368 = vmatpush1.bf16.msra.mxu0 %v270
    %369 = vmatprep.subr.bf16.mxu0 0
    %370 = vmatpush1.bf16.msra.mxu0 %v271
    %371 = vmatprep.subr.bf16.mxu0 0
    %372 = vmatpush1.bf16.msra.mxu0 %v272
    %373 = vmatprep.subr.bf16.mxu0 0
    %374 = vmatpush1.bf16.msra.mxu0 %v273
    %375 = vmatprep.subr.bf16.mxu0 0
    %376 = vmatpush1.bf16.msra.mxu0 %v274
    %377 = vmatprep.subr.bf16.mxu0 0
    %378 = vmatpush1.bf16.msra.mxu0 %v275
    %379 = vmatprep.subr.bf16.mxu0 0
    %380 = vmatpush1.bf16.msra.mxu0 %v276
    %381 = vmatprep.mubr.bf16.mxu0 %v112
    %382 = vmatmul.mubr.bf16.gmra.mrb[0].mxu0 %v111
    %v383 = vpop.f32.mrb[0].mxu0
    %v384 = vadd.f32 %v344, %v383
    %v385 = vpop.f32.mrb[0].mxu0
    %v386 = vpop.f32.mrb[0].mxu0
    %v387 = vpop.f32.mrb[0].mxu0
    %388 = vdwg.mxu0
    %vm389 = vcmask 74752
    %390 = vst.msk [vmem:[#allocation2] sm:$0x3] %vm389, %v384
    // Predicated region
    $region14: #{cnn_tempogram_forward.7} parent=1 // pred_check
      _
    $region15: #{cnn_tempogram_forward.7} parent=1 // pred_check_branch
      %392 = sbr.rel (0) target = $region17
    $region16: #{cnn_tempogram_forward.7} parent=1 // pred_region
      %s394 = ssub.s32 32, 32
      %395 = vsyncadd [#allocation3], %s394
      %s397 = sshll.u32 [#allocation2], 4
      %s398 = int_to_ptr.vmem [resolvable:$true] %s397
      %400 = dma.vmem_to_hbm [thread:$0]  %s398, 32, %s3, [#allocation3]
    $region17: #{cnn_tempogram_forward.7} parent=1 // pred_fallthru
      _
    // Predicated region
    $region18: #{cnn_tempogram_forward.7} parent=1 // pred_check
      _
    $region19: #{cnn_tempogram_forward.7} parent=1 // pred_check_branch
      %402 = sbr.rel (0) target = $region21
    $region20: #{cnn_tempogram_forward.7} parent=1 // pred_region
      %403 = dma.done [#allocation3], 32
    $region21: #{cnn_tempogram_forward.7} parent=1 // pred_fallthru
      _
    %404 = vsyncpa [#allocation3], 1

</llo_original>
